<compile_context>
chip_gen: v6e
topology: v6e:2x2x1
jax: 0.10.0
libtpu: 0.0.40
codegen_flags: <defaults>
</compile_context>

<pallas_src>
import functools
import math

import jax
import jax.numpy as jnp
from jax.experimental import pallas as pl
from jax.experimental.pallas import tpu as pltpu


# ----------------------------------------------------------------------------
# Fused Pallas kernel: one grid step == one batch sample, everything in VMEM.
# ----------------------------------------------------------------------------
def _relformer_fused_kernel(
    seq_ref, wqkv_ref, qkvb_ref, wo_ref, bo_ref,
    ln1g_ref, ln1b_ref, w1_ref, b1_ref, w2_ref, b2_ref, ln2g_ref, ln2b_ref,
    whyp_ref, bhyp_ref, rep_ref, repone_ref, sel_ref, h2w2_ref, h2b2_ref,
    out_ref,
    *, nheads, eps):
  f32 = jnp.float32
  x = seq_ref[0].astype(f32)                       # (S, D) src (token at row 0)
  S, D = x.shape
  dh = D // nheads
  scale = 1.0 / math.sqrt(dh)

  # --- fused Q/K/V projection: one (S,D)x(D,3D) MXU matmul -------------------
  # (x+pos)@Wq + bq, (x+pos)@Wk + bk, x@Wv + bv  with the pos contribution
  # pre-folded into the per-row bias qkvb (shared across the batch).
  qkv = jnp.dot(x, wqkv_ref[...].astype(f32),
                preferred_element_type=f32) + qkvb_ref[...].astype(f32)
  q = qkv[:, :D]
  k = qkv[:, D:2 * D]
  v = qkv[:, 2 * D:]

  # --- multi-head softmax attention; output projection folded per head -------
  #   concat(heads) @ Wo == sum_h head_h @ Wo[h*dh:(h+1)*dh, :]
  wo = wo_ref[...].astype(f32)                     # (D, D)
  attn = None
  for h in range(nheads):                          # static unroll, nheads tiny
    sl = slice(h * dh, (h + 1) * dh)
    s = jnp.dot(q[:, sl], k[:, sl].T, preferred_element_type=f32) * scale
    s = s - jnp.max(s, axis=-1, keepdims=True)
    p = jnp.exp(s)
    p = p * pl.reciprocal(jnp.sum(p, axis=-1, keepdims=True), approx=True)
    oh = jnp.dot(p, v[:, sl], preferred_element_type=f32)        # (S, dh)
    contrib = jnp.dot(oh, wo[sl, :], preferred_element_type=f32)
    attn = contrib if attn is None else attn + contrib
  attn = attn + bo_ref[...].astype(f32)

  def _layernorm(t, g_ref, b_ref):
    mu = jnp.mean(t, axis=-1, keepdims=True)
    var = jnp.mean((t - mu) ** 2, axis=-1, keepdims=True)
    return ((t - mu) * jax.lax.rsqrt(var + eps)
            * g_ref[...].astype(f32) + b_ref[...].astype(f32))

  # --- post-norm DETR encoder layer ------------------------------------------
  y = _layernorm(x + attn, ln1g_ref, ln1b_ref)
  ff = jnp.maximum(
      jnp.dot(y, w1_ref[...].astype(f32), preferred_element_type=f32)
      + b1_ref[...].astype(f32), 0.0)
  ff = jnp.dot(ff, w2_ref[...].astype(f32),
               preferred_element_type=f32) + b2_ref[...].astype(f32)
  z = _layernorm(y + ff, ln2g_ref, ln2b_ref)

  dz = z[0:1, :]                                   # (1, D) rel-pose-token output

  # --- hypernet fc1 + head2 first Linear fused: one (1,D)x(D,J+D) matmul -----
  J = rep_ref.shape[1]
  hh = jnp.dot(dz, whyp_ref[...].astype(f32),
               preferred_element_type=f32) + bhyp_ref[...].astype(f32)
  w_1 = hh[:, :J]
  w_1 = w_1 * jax.nn.sigmoid(w_1)                  # _swish
  g = hh[:, J:]
  g = 0.5 * g * (1.0 + jax.lax.erf(g * (1.0 / math.sqrt(2.0))))   # exact GELU

  # --- batched_linear_layer([dz, 1], w_1.view(D+1, out_dim)) -----------------
  # Avoid an in-kernel (1, J) -> (D+1, out_dim) reshape:
  #   x_rep[j]  = x_aug[j // out_dim]           (rep / repone constant matrices)
  #   delta1[o] = sum_j w_1[j] * x_rep[j] * (j % out_dim == o)    (sel one-hot)
  # which equals x_aug @ w_1.view(D+1, out_dim) (row-major, matches torch .view)
  x_rep = jnp.dot(dz, rep_ref[...].astype(f32),
                  preferred_element_type=f32) + repone_ref[...].astype(f32)
  delta1 = jnp.dot(w_1 * x_rep, sel_ref[...].astype(f32),
                   preferred_element_type=f32)                    # (1, out_dim)

  # --- head2 second Linear (GELU already applied above) ----------------------
  delta2 = jnp.dot(g, h2w2_ref[...].astype(f32),
                   preferred_element_type=f32) + h2b2_ref[...].astype(f32)

  out_ref[0] = (delta1 + delta2).astype(out_ref.dtype)


def _full_block(shape):
  zero = (0,) * len(shape)
  return pl.BlockSpec(shape, lambda b, _z=zero: _z)


# ----------------------------------------------------------------------------
# Parameter init (PyTorch xavier_uniform_ convention for dim>1 params)
# ----------------------------------------------------------------------------
def _xavier(key, shape):
  fan_in, fan_out = shape[-2], shape[-1]
  bound = math.sqrt(6.0 / (fan_in + fan_out))
  return jax.random.uniform(key, shape, jnp.float32, -bound, bound)


def init_params(key, hidden_dim, out_dim, nheads, ffn_dim, in_channels, max_pos=50):
  D = hidden_dim
  npf = D // 2
  keys = iter(jax.random.split(key, 32))
  p = {
      # TDeltaNet.proj : 1x1 conv (2*reduction_channels -> hidden_dim)
      "proj_w": _xavier(next(keys), (D, in_channels)),
      "proj_b": jnp.zeros((D,), jnp.float32),
      # Relformer
      "rel_pose_token": _xavier(next(keys), (1, D)),
      "hyper_w": _xavier(next(keys), (D, (D + 1) * out_dim)),
      "hyper_b": jnp.zeros(((D + 1) * out_dim,), jnp.float32),
      "head2_w1": _xavier(next(keys), (D, D)),
      "head2_b1": jnp.zeros((D,), jnp.float32),
      "head2_w2": _xavier(next(keys), (D, out_dim)),
      "head2_b2": jnp.zeros((out_dim,), jnp.float32),
      # PositionEmbeddingLearnedWithPoseToken(hidden_dim // 2)
      "row_embed": _xavier(next(keys), (max_pos, npf)),
      "col_embed": _xavier(next(keys), (max_pos, npf)),
      "pose_token_embed": _xavier(next(keys), (1, D)),
      # Single DETR-style post-norm TransformerEncoder layer
      "enc": {
          "nheads": nheads,
          "wq": _xavier(next(keys), (D, D)), "bq": jnp.zeros((D,), jnp.float32),
          "wk": _xavier(next(keys), (D, D)), "bk": jnp.zeros((D,), jnp.float32),
          "wv": _xavier(next(keys), (D, D)), "bv": jnp.zeros((D,), jnp.float32),
          "wo": _xavier(next(keys), (D, D)), "bo": jnp.zeros((D,), jnp.float32),
          "ln1_g": jnp.ones((D,), jnp.float32), "ln1_b": jnp.zeros((D,), jnp.float32),
          "ln2_g": jnp.ones((D,), jnp.float32), "ln2_b": jnp.zeros((D,), jnp.float32),
          "w1": _xavier(next(keys), (D, ffn_dim)), "b1": jnp.zeros((ffn_dim,), jnp.float32),
          "w2": _xavier(next(keys), (ffn_dim, D)), "b2": jnp.zeros((D,), jnp.float32),
      },
  }
  return p


# ----------------------------------------------------------------------------
# Relformer forward (glue + single fused pallas_call)
# ----------------------------------------------------------------------------
def relformer_forward(params, delta_img_proj, delta_img, query_endpoints_h,
                      ref_endpoints_h, global_hyper, *, out_dim, do_hyper=22):
  """Relformer.forward for do_hyper == 22 (delta_img / endpoints / global_hyper unused)."""
  del delta_img, query_endpoints_h, ref_endpoints_h, global_hyper, do_hyper
  B, D, H, W = delta_img_proj.shape
  npf = D // 2
  enc = params["enc"]
  nheads = enc["nheads"]
  S = H * W + 1
  J = (D + 1) * out_dim
  ffn_dim = enc["w1"].shape[1]

  # sequence: rel_pose_token prepended to flattened image features -> (B, S, D)
  delta_seq = delta_img_proj.reshape(B, D, H * W).transpose(0, 2, 1)
  rel_token = jnp.broadcast_to(params["rel_pose_token"][None], (B, 1, D))
  seq = jnp.concatenate([rel_token, delta_seq], axis=1)

  # shared positional encoding (identical for all samples): (S, D)
  col = params["col_embed"][:W]
  row = params["row_embed"][:H]
  pos_hw = jnp.concatenate(
      [jnp.broadcast_to(col[None, :, :], (H, W, npf)),
       jnp.broadcast_to(row[:, None, :], (H, W, npf))], axis=-1).reshape(H * W, D)
  pos = jnp.concatenate([params["pose_token_embed"], pos_hw], axis=0)

  # fused QKV weights; positional contribution folded into a per-row bias,
  # computed ONCE here (amortized over the batch) instead of per sample.
  wqkv = jnp.concatenate([enc["wq"], enc["wk"], enc["wv"]], axis=1)       # (D, 3D)
  qkv_bias = jnp.concatenate(
      [pos @ enc["wq"] + enc["bq"][None, :],
       pos @ enc["wk"] + enc["bk"][None, :],
       jnp.broadcast_to(enc["bv"][None, :], (S, D))], axis=1)             # (S, 3D)

  # hypernet fc1 + head2 first Linear fused (both read only dz)
  whyp = jnp.concatenate([params["hyper_w"], params["head2_w1"]], axis=1)  # (D, J+D)
  bhyp = jnp.concatenate([params["hyper_b"], params["head2_b1"]]).reshape(1, J + D)

  # constant matrices for the in-kernel batched_linear (replace the .view/reshape)
  j = jnp.arange(J)
  rep = (j[None, :] // out_dim == jnp.arange(D)[:, None]).astype(jnp.float32)       # (D, J)
  rep_one = (j[None, :] // out_dim == D).astype(jnp.float32)                        # (1, J)
  sel = (j[:, None] % out_dim == jnp.arange(out_dim)[None, :]).astype(jnp.float32)  # (J, out_dim)

  in_arrays = [
      seq, wqkv, qkv_bias,
      enc["wo"], enc["bo"].reshape(1, D),
      enc["ln1_g"].reshape(1, D), enc["ln1_b"].reshape(1, D),
      enc["w1"], enc["b1"].reshape(1, ffn_dim),
      enc["w2"], enc["b2"].reshape(1, D),
      enc["ln2_g"].reshape(1, D), enc["ln2_b"].reshape(1, D),
      whyp, bhyp, rep, rep_one, sel,
      params["head2_w2"], params["head2_b2"].reshape(1, out_dim),
  ]
  in_specs = ([pl.BlockSpec((1, S, D), lambda b: (b, 0, 0))] +
              [_full_block(a.shape) for a in in_arrays[1:]])

  out = pl.pallas_call(
      functools.partial(_relformer_fused_kernel, nheads=nheads, eps=1e-5),
      out_shape=jax.ShapeDtypeStruct((B, 1, out_dim), jnp.float32),
      grid=(B,),
      in_specs=in_specs,
      out_specs=pl.BlockSpec((1, 1, out_dim), lambda b: (b, 0, 0)),
      compiler_params=pltpu.CompilerParams(
          dimension_semantics=("parallel",)),   # shards batch across v7x's 2 TCs
  )(*in_arrays)
  return out.reshape(B, out_dim)


# ----------------------------------------------------------------------------
# TDeltaNet forward (backbone endpoints are inputs; backbone itself external)
# ----------------------------------------------------------------------------
def tdeltanet_forward(params, query_endpoints, ref_endpoints, *, out_dim,
                      pose_type="rotation"):
  # TODO(synk): the EfficientNet backbone (torch.load(backbone_path),
  # extract_endpoints) has no in-script equivalent; endpoints are taken as inputs.
  delta_img = jnp.concatenate([query_endpoints, ref_endpoints], axis=1)   # (B, 2C, H, W)
  # 1x1-conv projection == per-pixel channel matmul (XLA glue, one op per call)
  delta_img_proj = (jnp.einsum("bchw,dc->bdhw", delta_img, params["proj_w"])
                    + params["proj_b"][None, :, None, None])
  delta = relformer_forward(params, delta_img_proj, delta_img, None, None, None,
                            out_dim=out_dim)
  B = delta.shape[0]
  if pose_type == "rotation":
    # TODO(synk): rot_repr_type == '10d' (A_vec_to_quat via torch.symeig) not implemented.
    rel_pose = jnp.concatenate([jnp.zeros((B, 3), delta.dtype), delta], axis=1)
  else:
    rel_pose = jnp.concatenate([delta, jnp.zeros((B, 4), delta.dtype)], axis=1)
  return {"rel_pose": rel_pose, "delta": delta}


# TODO(synk): do_hyper branches 15-19/21 need the second TransformerEncoder and the
# 1x1-conv hypernet_input_proj; only the do_hyper == 22 branch is implemented here.
# At realistic Relformer sizes (D=256, S=197, large B) the per-sample whole-sequence
# block should be tiled over S and vmem_limit_bytes set explicitly (v7x: 64 MiB VMEM).

# ----------------------------------------------------------------------------
# main
# ----------------------------------------------------------------------------
if __name__ == "__main__":
  B, hidden_dim, H, W = 2, 32, 4, 4
  out_dim = 6
  reduction_dim = 4
  nheads = 4
  ffn_dim = 64

  root = jax.random.PRNGKey(0)
  k_params, k_q, k_r = jax.random.split(root, 3)

  params = init_params(k_params, hidden_dim, out_dim, nheads, ffn_dim,
                       in_channels=2 * reduction_dim)

  query_endpoints = jax.random.normal(k_q, (B, reduction_dim, H, W), jnp.float32)
  ref_endpoints = jax.random.normal(k_r, (B, reduction_dim, H, W), jnp.float32)

  result = tdeltanet_forward(params, query_endpoints, ref_endpoints,
                             out_dim=out_dim, pose_type="rotation")
  rel_pose = jax.block_until_ready(result["rel_pose"])

  assert result["delta"].shape == (B, out_dim)
  assert rel_pose.shape == (B, 3 + out_dim)
  assert bool(jnp.all(jnp.isfinite(rel_pose)))
  print("KERNEL_OK")
</pallas_src>

<mosaic_0001>
module attributes {stable_mosaic.version = 11 : i64} {
  func.func @_relformer_fused_kernel(%arg0: i32, %arg1: memref<1x17x32xf32, #tpu.memory_space<vmem>>, %arg2: memref<32x96xf32, #tpu.memory_space<vmem>>, %arg3: memref<17x96xf32, #tpu.memory_space<vmem>>, %arg4: memref<32x32xf32, #tpu.memory_space<vmem>>, %arg5: memref<1x32xf32, #tpu.memory_space<vmem>>, %arg6: memref<1x32xf32, #tpu.memory_space<vmem>>, %arg7: memref<1x32xf32, #tpu.memory_space<vmem>>, %arg8: memref<32x64xf32, #tpu.memory_space<vmem>>, %arg9: memref<1x64xf32, #tpu.memory_space<vmem>>, %arg10: memref<64x32xf32, #tpu.memory_space<vmem>>, %arg11: memref<1x32xf32, #tpu.memory_space<vmem>>, %arg12: memref<1x32xf32, #tpu.memory_space<vmem>>, %arg13: memref<1x32xf32, #tpu.memory_space<vmem>>, %arg14: memref<32x230xf32, #tpu.memory_space<vmem>>, %arg15: memref<1x230xf32, #tpu.memory_space<vmem>>, %arg16: memref<32x198xf32, #tpu.memory_space<vmem>>, %arg17: memref<1x198xf32, #tpu.memory_space<vmem>>, %arg18: memref<198x6xf32, #tpu.memory_space<vmem>>, %arg19: memref<32x6xf32, #tpu.memory_space<vmem>>, %arg20: memref<1x6xf32, #tpu.memory_space<vmem>>, %arg21: memref<1x1x6xf32, #tpu.memory_space<vmem>>) attributes {dimension_semantics = [#tpu.dimension_semantics<parallel>], iteration_bounds = array<i64: 2>, scalar_prefetch = 0 : i64, scratch_operands = 0 : i64, tpu.core_type = #tpu.core_type<tc>, window_params = [{transform_indices = @transform_0, window_bounds = array<i64: 1, 17, 32>}, {pipeline_mode = #tpu.pipeline_mode<synchronous>, transform_indices = @transform_1, window_bounds = array<i64: 32, 96>}, {pipeline_mode = #tpu.pipeline_mode<synchronous>, transform_indices = @transform_2, window_bounds = array<i64: 17, 96>}, {pipeline_mode = #tpu.pipeline_mode<synchronous>, transform_indices = @transform_3, window_bounds = array<i64: 32, 32>}, {pipeline_mode = #tpu.pipeline_mode<synchronous>, transform_indices = @transform_4, window_bounds = array<i64: 1, 32>}, {pipeline_mode = #tpu.pipeline_mode<synchronous>, transform_indices = @transform_5, window_bounds = array<i64: 1, 32>}, {pipeline_mode = #tpu.pipeline_mode<synchronous>, transform_indices = @transform_6, window_bounds = array<i64: 1, 32>}, {pipeline_mode = #tpu.pipeline_mode<synchronous>, transform_indices = @transform_7, window_bounds = array<i64: 32, 64>}, {pipeline_mode = #tpu.pipeline_mode<synchronous>, transform_indices = @transform_8, window_bounds = array<i64: 1, 64>}, {pipeline_mode = #tpu.pipeline_mode<synchronous>, transform_indices = @transform_9, window_bounds = array<i64: 64, 32>}, {pipeline_mode = #tpu.pipeline_mode<synchronous>, transform_indices = @transform_10, window_bounds = array<i64: 1, 32>}, {pipeline_mode = #tpu.pipeline_mode<synchronous>, transform_indices = @transform_11, window_bounds = array<i64: 1, 32>}, {pipeline_mode = #tpu.pipeline_mode<synchronous>, transform_indices = @transform_12, window_bounds = array<i64: 1, 32>}, {pipeline_mode = #tpu.pipeline_mode<synchronous>, transform_indices = @transform_13, window_bounds = array<i64: 32, 230>}, {pipeline_mode = #tpu.pipeline_mode<synchronous>, transform_indices = @transform_14, window_bounds = array<i64: 1, 230>}, {pipeline_mode = #tpu.pipeline_mode<synchronous>, transform_indices = @transform_15, window_bounds = array<i64: 32, 198>}, {pipeline_mode = #tpu.pipeline_mode<synchronous>, transform_indices = @transform_16, window_bounds = array<i64: 1, 198>}, {pipeline_mode = #tpu.pipeline_mode<synchronous>, transform_indices = @transform_17, window_bounds = array<i64: 198, 6>}, {pipeline_mode = #tpu.pipeline_mode<synchronous>, transform_indices = @transform_18, window_bounds = array<i64: 32, 6>}, {pipeline_mode = #tpu.pipeline_mode<synchronous>, transform_indices = @transform_19, window_bounds = array<i64: 1, 6>}, {transform_indices = @transform_20, window_bounds = array<i64: 1, 1, 6>}]} {
    %c0 = arith.constant 0 : index
    %c0_0 = arith.constant 0 : index
    %c0_1 = arith.constant 0 : index
    %0 = vector.load %arg1[%c0, %c0_0, %c0_1] : memref<1x17x32xf32, #tpu.memory_space<vmem>>, vector<1x17x32xf32>
    %1 = vector.shape_cast %0 : vector<1x17x32xf32> to vector<17x32xf32>
    %c0_2 = arith.constant 0 : index
    %c0_3 = arith.constant 0 : index
    %2 = vector.load %arg2[%c0_2, %c0_3] : memref<32x96xf32, #tpu.memory_space<vmem>>, vector<32x96xf32>
    %cst = arith.constant dense<0.000000e+00> : vector<17x96xf32>
    %3 = tpu.matmul %1, %2, %cst {dimension_numbers = #tpu.dot_dimension_numbers<[1], [0], [0], [1], [0, 0, 1, 1], [], []>} : vector<17x32xf32>, vector<32x96xf32>, vector<17x96xf32> -> vector<17x96xf32>
    %c0_4 = arith.constant 0 : index
    %c0_5 = arith.constant 0 : index
    %4 = vector.load %arg3[%c0_4, %c0_5] : memref<17x96xf32, #tpu.memory_space<vmem>>, vector<17x96xf32>
    %5 = arith.addf %3, %4 : vector<17x96xf32>
    %6 = vector.extract_strided_slice %5 {offsets = [0, 0], sizes = [17, 32], strides = [1, 1]} : vector<17x96xf32> to vector<17x32xf32>
    %7 = vector.extract_strided_slice %5 {offsets = [0, 32], sizes = [17, 32], strides = [1, 1]} : vector<17x96xf32> to vector<17x32xf32>
    %8 = vector.extract_strided_slice %5 {offsets = [0, 64], sizes = [17, 32], strides = [1, 1]} : vector<17x96xf32> to vector<17x32xf32>
    %c0_6 = arith.constant 0 : index
    %c0_7 = arith.constant 0 : index
    %9 = vector.load %arg4[%c0_6, %c0_7] : memref<32x32xf32, #tpu.memory_space<vmem>>, vector<32x32xf32>
    %10 = vector.extract_strided_slice %6 {offsets = [0, 0], sizes = [17, 8], strides = [1, 1]} : vector<17x32xf32> to vector<17x8xf32>
    %11 = vector.extract_strided_slice %7 {offsets = [0, 0], sizes = [17, 8], strides = [1, 1]} : vector<17x32xf32> to vector<17x8xf32>
    %12 = tpu.transpose %11, [1, 0] : vector<17x8xf32> -> vector<8x17xf32>
    %cst_8 = arith.constant dense<0.000000e+00> : vector<17x17xf32>
    %13 = tpu.matmul %10, %12, %cst_8 {dimension_numbers = #tpu.dot_dimension_numbers<[1], [0], [0], [1], [0, 0, 1, 1], [], []>} : vector<17x8xf32>, vector<8x17xf32>, vector<17x17xf32> -> vector<17x17xf32>
    %cst_9 = arith.constant 0.353553385 : f32
    %14 = vector.broadcast %cst_9 : f32 to vector<17x17xf32>
    %15 = arith.mulf %13, %14 : vector<17x17xf32>
    %cst_10 = arith.constant dense<0xFF800000> : vector<17xf32>
    %16 = vector.multi_reduction <maximumf>, %15, %cst_10 [1] : vector<17x17xf32> to vector<17xf32>
    %17 = vector.shape_cast %16 : vector<17xf32> to vector<17x1xf32>
    %18 = vector.broadcast %17 : vector<17x1xf32> to vector<17x17xf32>
    %19 = arith.subf %15, %18 : vector<17x17xf32>
    %20 = math.exp %19 : vector<17x17xf32>
    %cst_11 = arith.constant dense<0.000000e+00> : vector<17xf32>
    %21 = vector.multi_reduction <add>, %20, %cst_11 [1] : vector<17x17xf32> to vector<17xf32>
    %22 = vector.shape_cast %21 : vector<17xf32> to vector<17x1xf32>
    %23 = tpu.reciprocal %22 {approx = true} : vector<17x1xf32> -> vector<17x1xf32>
    %24 = vector.broadcast %23 : vector<17x1xf32> to vector<17x17xf32>
    %25 = arith.mulf %20, %24 : vector<17x17xf32>
    %26 = vector.extract_strided_slice %8 {offsets = [0, 0], sizes = [17, 8], strides = [1, 1]} : vector<17x32xf32> to vector<17x8xf32>
    %cst_12 = arith.constant dense<0.000000e+00> : vector<17x8xf32>
    %27 = tpu.matmul %25, %26, %cst_12 {dimension_numbers = #tpu.dot_dimension_numbers<[1], [0], [0], [1], [0, 0, 1, 1], [], []>} : vector<17x17xf32>, vector<17x8xf32>, vector<17x8xf32> -> vector<17x8xf32>
    %28 = vector.extract_strided_slice %9 {offsets = [0, 0], sizes = [8, 32], strides = [1, 1]} : vector<32x32xf32> to vector<8x32xf32>
    %cst_13 = arith.constant dense<0.000000e+00> : vector<17x32xf32>
    %29 = tpu.matmul %27, %28, %cst_13 {dimension_numbers = #tpu.dot_dimension_numbers<[1], [0], [0], [1], [0, 0, 1, 1], [], []>} : vector<17x8xf32>, vector<8x32xf32>, vector<17x32xf32> -> vector<17x32xf32>
    %30 = vector.extract_strided_slice %6 {offsets = [0, 8], sizes = [17, 8], strides = [1, 1]} : vector<17x32xf32> to vector<17x8xf32>
    %31 = vector.extract_strided_slice %7 {offsets = [0, 8], sizes = [17, 8], strides = [1, 1]} : vector<17x32xf32> to vector<17x8xf32>
    %32 = tpu.transpose %31, [1, 0] : vector<17x8xf32> -> vector<8x17xf32>
    %cst_14 = arith.constant dense<0.000000e+00> : vector<17x17xf32>
    %33 = tpu.matmul %30, %32, %cst_14 {dimension_numbers = #tpu.dot_dimension_numbers<[1], [0], [0], [1], [0, 0, 1, 1], [], []>} : vector<17x8xf32>, vector<8x17xf32>, vector<17x17xf32> -> vector<17x17xf32>
    %cst_15 = arith.constant 0.353553385 : f32
    %34 = vector.broadcast %cst_15 : f32 to vector<17x17xf32>
    %35 = arith.mulf %33, %34 : vector<17x17xf32>
    %cst_16 = arith.constant dense<0xFF800000> : vector<17xf32>
    %36 = vector.multi_reduction <maximumf>, %35, %cst_16 [1] : vector<17x17xf32> to vector<17xf32>
    %37 = vector.shape_cast %36 : vector<17xf32> to vector<17x1xf32>
    %38 = vector.broadcast %37 : vector<17x1xf32> to vector<17x17xf32>
    %39 = arith.subf %35, %38 : vector<17x17xf32>
    %40 = math.exp %39 : vector<17x17xf32>
    %cst_17 = arith.constant dense<0.000000e+00> : vector<17xf32>
    %41 = vector.multi_reduction <add>, %40, %cst_17 [1] : vector<17x17xf32> to vector<17xf32>
    %42 = vector.shape_cast %41 : vector<17xf32> to vector<17x1xf32>
    %43 = tpu.reciprocal %42 {approx = true} : vector<17x1xf32> -> vector<17x1xf32>
    %44 = vector.broadcast %43 : vector<17x1xf32> to vector<17x17xf32>
    %45 = arith.mulf %40, %44 : vector<17x17xf32>
    %46 = vector.extract_strided_slice %8 {offsets = [0, 8], sizes = [17, 8], strides = [1, 1]} : vector<17x32xf32> to vector<17x8xf32>
    %cst_18 = arith.constant dense<0.000000e+00> : vector<17x8xf32>
    %47 = tpu.matmul %45, %46, %cst_18 {dimension_numbers = #tpu.dot_dimension_numbers<[1], [0], [0], [1], [0, 0, 1, 1], [], []>} : vector<17x17xf32>, vector<17x8xf32>, vector<17x8xf32> -> vector<17x8xf32>
    %48 = vector.extract_strided_slice %9 {offsets = [8, 0], sizes = [8, 32], strides = [1, 1]} : vector<32x32xf32> to vector<8x32xf32>
    %cst_19 = arith.constant dense<0.000000e+00> : vector<17x32xf32>
    %49 = tpu.matmul %47, %48, %cst_19 {dimension_numbers = #tpu.dot_dimension_numbers<[1], [0], [0], [1], [0, 0, 1, 1], [], []>} : vector<17x8xf32>, vector<8x32xf32>, vector<17x32xf32> -> vector<17x32xf32>
    %50 = arith.addf %29, %49 : vector<17x32xf32>
    %51 = vector.extract_strided_slice %6 {offsets = [0, 16], sizes = [17, 8], strides = [1, 1]} : vector<17x32xf32> to vector<17x8xf32>
    %52 = vector.extract_strided_slice %7 {offsets = [0, 16], sizes = [17, 8], strides = [1, 1]} : vector<17x32xf32> to vector<17x8xf32>
    %53 = tpu.transpose %52, [1, 0] : vector<17x8xf32> -> vector<8x17xf32>
    %cst_20 = arith.constant dense<0.000000e+00> : vector<17x17xf32>
    %54 = tpu.matmul %51, %53, %cst_20 {dimension_numbers = #tpu.dot_dimension_numbers<[1], [0], [0], [1], [0, 0, 1, 1], [], []>} : vector<17x8xf32>, vector<8x17xf32>, vector<17x17xf32> -> vector<17x17xf32>
    %cst_21 = arith.constant 0.353553385 : f32
    %55 = vector.broadcast %cst_21 : f32 to vector<17x17xf32>
    %56 = arith.mulf %54, %55 : vector<17x17xf32>
    %cst_22 = arith.constant dense<0xFF800000> : vector<17xf32>
    %57 = vector.multi_reduction <maximumf>, %56, %cst_22 [1] : vector<17x17xf32> to vector<17xf32>
    %58 = vector.shape_cast %57 : vector<17xf32> to vector<17x1xf32>
    %59 = vector.broadcast %58 : vector<17x1xf32> to vector<17x17xf32>
    %60 = arith.subf %56, %59 : vector<17x17xf32>
    %61 = math.exp %60 : vector<17x17xf32>
    %cst_23 = arith.constant dense<0.000000e+00> : vector<17xf32>
    %62 = vector.multi_reduction <add>, %61, %cst_23 [1] : vector<17x17xf32> to vector<17xf32>
    %63 = vector.shape_cast %62 : vector<17xf32> to vector<17x1xf32>
    %64 = tpu.reciprocal %63 {approx = true} : vector<17x1xf32> -> vector<17x1xf32>
    %65 = vector.broadcast %64 : vector<17x1xf32> to vector<17x17xf32>
    %66 = arith.mulf %61, %65 : vector<17x17xf32>
    %67 = vector.extract_strided_slice %8 {offsets = [0, 16], sizes = [17, 8], strides = [1, 1]} : vector<17x32xf32> to vector<17x8xf32>
    %cst_24 = arith.constant dense<0.000000e+00> : vector<17x8xf32>
    %68 = tpu.matmul %66, %67, %cst_24 {dimension_numbers = #tpu.dot_dimension_numbers<[1], [0], [0], [1], [0, 0, 1, 1], [], []>} : vector<17x17xf32>, vector<17x8xf32>, vector<17x8xf32> -> vector<17x8xf32>
    %69 = vector.extract_strided_slice %9 {offsets = [16, 0], sizes = [8, 32], strides = [1, 1]} : vector<32x32xf32> to vector<8x32xf32>
    %cst_25 = arith.constant dense<0.000000e+00> : vector<17x32xf32>
    %70 = tpu.matmul %68, %69, %cst_25 {dimension_numbers = #tpu.dot_dimension_numbers<[1], [0], [0], [1], [0, 0, 1, 1], [], []>} : vector<17x8xf32>, vector<8x32xf32>, vector<17x32xf32> -> vector<17x32xf32>
    %71 = arith.addf %50, %70 : vector<17x32xf32>
    %72 = vector.extract_strided_slice %6 {offsets = [0, 24], sizes = [17, 8], strides = [1, 1]} : vector<17x32xf32> to vector<17x8xf32>
    %73 = vector.extract_strided_slice %7 {offsets = [0, 24], sizes = [17, 8], strides = [1, 1]} : vector<17x32xf32> to vector<17x8xf32>
    %74 = tpu.transpose %73, [1, 0] : vector<17x8xf32> -> vector<8x17xf32>
    %cst_26 = arith.constant dense<0.000000e+00> : vector<17x17xf32>
    %75 = tpu.matmul %72, %74, %cst_26 {dimension_numbers = #tpu.dot_dimension_numbers<[1], [0], [0], [1], [0, 0, 1, 1], [], []>} : vector<17x8xf32>, vector<8x17xf32>, vector<17x17xf32> -> vector<17x17xf32>
    %cst_27 = arith.constant 0.353553385 : f32
    %76 = vector.broadcast %cst_27 : f32 to vector<17x17xf32>
    %77 = arith.mulf %75, %76 : vector<17x17xf32>
    %cst_28 = arith.constant dense<0xFF800000> : vector<17xf32>
    %78 = vector.multi_reduction <maximumf>, %77, %cst_28 [1] : vector<17x17xf32> to vector<17xf32>
    %79 = vector.shape_cast %78 : vector<17xf32> to vector<17x1xf32>
    %80 = vector.broadcast %79 : vector<17x1xf32> to vector<17x17xf32>
    %81 = arith.subf %77, %80 : vector<17x17xf32>
    %82 = math.exp %81 : vector<17x17xf32>
    %cst_29 = arith.constant dense<0.000000e+00> : vector<17xf32>
    %83 = vector.multi_reduction <add>, %82, %cst_29 [1] : vector<17x17xf32> to vector<17xf32>
    %84 = vector.shape_cast %83 : vector<17xf32> to vector<17x1xf32>
    %85 = tpu.reciprocal %84 {approx = true} : vector<17x1xf32> -> vector<17x1xf32>
    %86 = vector.broadcast %85 : vector<17x1xf32> to vector<17x17xf32>
    %87 = arith.mulf %82, %86 : vector<17x17xf32>
    %88 = vector.extract_strided_slice %8 {offsets = [0, 24], sizes = [17, 8], strides = [1, 1]} : vector<17x32xf32> to vector<17x8xf32>
    %cst_30 = arith.constant dense<0.000000e+00> : vector<17x8xf32>
    %89 = tpu.matmul %87, %88, %cst_30 {dimension_numbers = #tpu.dot_dimension_numbers<[1], [0], [0], [1], [0, 0, 1, 1], [], []>} : vector<17x17xf32>, vector<17x8xf32>, vector<17x8xf32> -> vector<17x8xf32>
    %90 = vector.extract_strided_slice %9 {offsets = [24, 0], sizes = [8, 32], strides = [1, 1]} : vector<32x32xf32> to vector<8x32xf32>
    %cst_31 = arith.constant dense<0.000000e+00> : vector<17x32xf32>
    %91 = tpu.matmul %89, %90, %cst_31 {dimension_numbers = #tpu.dot_dimension_numbers<[1], [0], [0], [1], [0, 0, 1, 1], [], []>} : vector<17x8xf32>, vector<8x32xf32>, vector<17x32xf32> -> vector<17x32xf32>
    %92 = arith.addf %71, %91 : vector<17x32xf32>
    %c0_32 = arith.constant 0 : index
    %c0_33 = arith.constant 0 : index
    %93 = vector.load %arg5[%c0_32, %c0_33] : memref<1x32xf32, #tpu.memory_space<vmem>>, vector<1x32xf32>
    %94 = vector.broadcast %93 : vector<1x32xf32> to vector<17x32xf32>
    %95 = arith.addf %92, %94 : vector<17x32xf32>
    %96 = arith.addf %1, %95 : vector<17x32xf32>
    %cst_34 = arith.constant dense<0.000000e+00> : vector<17xf32>
    %97 = vector.multi_reduction <add>, %96, %cst_34 [1] : vector<17x32xf32> to vector<17xf32>
    %98 = vector.shape_cast %97 : vector<17xf32> to vector<17x1xf32>
    %cst_35 = arith.constant 3.200000e+01 : f32
    %99 = vector.broadcast %cst_35 : f32 to vector<17x1xf32>
    %100 = arith.divf %98, %99 : vector<17x1xf32>
    %101 = vector.broadcast %100 : vector<17x1xf32> to vector<17x32xf32>
    %102 = arith.subf %96, %101 : vector<17x32xf32>
    %103 = arith.mulf %102, %102 : vector<17x32xf32>
    %cst_36 = arith.constant dense<0.000000e+00> : vector<17xf32>
    %104 = vector.multi_reduction <add>, %103, %cst_36 [1] : vector<17x32xf32> to vector<17xf32>
    %105 = vector.shape_cast %104 : vector<17xf32> to vector<17x1xf32>
    %cst_37 = arith.constant 3.200000e+01 : f32
    %106 = vector.broadcast %cst_37 : f32 to vector<17x1xf32>
    %107 = arith.divf %105, %106 : vector<17x1xf32>
    %108 = vector.broadcast %100 : vector<17x1xf32> to vector<17x32xf32>
    %109 = arith.subf %96, %108 : vector<17x32xf32>
    %cst_38 = arith.constant 9.99999974E-6 : f32
    %110 = vector.broadcast %cst_38 : f32 to vector<17x1xf32>
    %111 = arith.addf %107, %110 : vector<17x1xf32>
    %112 = math.rsqrt %111 : vector<17x1xf32>
    %113 = vector.broadcast %112 : vector<17x1xf32> to vector<17x32xf32>
    %114 = arith.mulf %109, %113 : vector<17x32xf32>
    %c0_39 = arith.constant 0 : index
    %c0_40 = arith.constant 0 : index
    %115 = vector.load %arg6[%c0_39, %c0_40] : memref<1x32xf32, #tpu.memory_space<vmem>>, vector<1x32xf32>
    %116 = vector.broadcast %115 : vector<1x32xf32> to vector<17x32xf32>
    %117 = arith.mulf %114, %116 : vector<17x32xf32>
    %c0_41 = arith.constant 0 : index
    %c0_42 = arith.constant 0 : index
    %118 = vector.load %arg7[%c0_41, %c0_42] : memref<1x32xf32, #tpu.memory_space<vmem>>, vector<1x32xf32>
    %119 = vector.broadcast %118 : vector<1x32xf32> to vector<17x32xf32>
    %120 = arith.addf %117, %119 : vector<17x32xf32>
    %c0_43 = arith.constant 0 : index
    %c0_44 = arith.constant 0 : index
    %121 = vector.load %arg8[%c0_43, %c0_44] : memref<32x64xf32, #tpu.memory_space<vmem>>, vector<32x64xf32>
    %cst_45 = arith.constant dense<0.000000e+00> : vector<17x64xf32>
    %122 = tpu.matmul %120, %121, %cst_45 {dimension_numbers = #tpu.dot_dimension_numbers<[1], [0], [0], [1], [0, 0, 1, 1], [], []>} : vector<17x32xf32>, vector<32x64xf32>, vector<17x64xf32> -> vector<17x64xf32>
    %c0_46 = arith.constant 0 : index
    %c0_47 = arith.constant 0 : index
    %123 = vector.load %arg9[%c0_46, %c0_47] : memref<1x64xf32, #tpu.memory_space<vmem>>, vector<1x64xf32>
    %124 = vector.broadcast %123 : vector<1x64xf32> to vector<17x64xf32>
    %125 = arith.addf %122, %124 : vector<17x64xf32>
    %cst_48 = arith.constant 0.000000e+00 : f32
    %126 = vector.broadcast %cst_48 : f32 to vector<17x64xf32>
    %127 = arith.maximumf %125, %126 : vector<17x64xf32>
    %c0_49 = arith.constant 0 : index
    %c0_50 = arith.constant 0 : index
    %128 = vector.load %arg10[%c0_49, %c0_50] : memref<64x32xf32, #tpu.memory_space<vmem>>, vector<64x32xf32>
    %cst_51 = arith.constant dense<0.000000e+00> : vector<17x32xf32>
    %129 = tpu.matmul %127, %128, %cst_51 {dimension_numbers = #tpu.dot_dimension_numbers<[1], [0], [0], [1], [0, 0, 1, 1], [], []>} : vector<17x64xf32>, vector<64x32xf32>, vector<17x32xf32> -> vector<17x32xf32>
    %c0_52 = arith.constant 0 : index
    %c0_53 = arith.constant 0 : index
    %130 = vector.load %arg11[%c0_52, %c0_53] : memref<1x32xf32, #tpu.memory_space<vmem>>, vector<1x32xf32>
    %131 = vector.broadcast %130 : vector<1x32xf32> to vector<17x32xf32>
    %132 = arith.addf %129, %131 : vector<17x32xf32>
    %133 = arith.addf %120, %132 : vector<17x32xf32>
    %cst_54 = arith.constant dense<0.000000e+00> : vector<17xf32>
    %134 = vector.multi_reduction <add>, %133, %cst_54 [1] : vector<17x32xf32> to vector<17xf32>
    %135 = vector.shape_cast %134 : vector<17xf32> to vector<17x1xf32>
    %cst_55 = arith.constant 3.200000e+01 : f32
    %136 = vector.broadcast %cst_55 : f32 to vector<17x1xf32>
    %137 = arith.divf %135, %136 : vector<17x1xf32>
    %138 = vector.broadcast %137 : vector<17x1xf32> to vector<17x32xf32>
    %139 = arith.subf %133, %138 : vector<17x32xf32>
    %140 = arith.mulf %139, %139 : vector<17x32xf32>
    %cst_56 = arith.constant dense<0.000000e+00> : vector<17xf32>
    %141 = vector.multi_reduction <add>, %140, %cst_56 [1] : vector<17x32xf32> to vector<17xf32>
    %142 = vector.shape_cast %141 : vector<17xf32> to vector<17x1xf32>
    %cst_57 = arith.constant 3.200000e+01 : f32
    %143 = vector.broadcast %cst_57 : f32 to vector<17x1xf32>
    %144 = arith.divf %142, %143 : vector<17x1xf32>
    %145 = vector.broadcast %137 : vector<17x1xf32> to vector<17x32xf32>
    %146 = arith.subf %133, %145 : vector<17x32xf32>
    %cst_58 = arith.constant 9.99999974E-6 : f32
    %147 = vector.broadcast %cst_58 : f32 to vector<17x1xf32>
    %148 = arith.addf %144, %147 : vector<17x1xf32>
    %149 = math.rsqrt %148 : vector<17x1xf32>
    %150 = vector.broadcast %149 : vector<17x1xf32> to vector<17x32xf32>
    %151 = arith.mulf %146, %150 : vector<17x32xf32>
    %c0_59 = arith.constant 0 : index
    %c0_60 = arith.constant 0 : index
    %152 = vector.load %arg12[%c0_59, %c0_60] : memref<1x32xf32, #tpu.memory_space<vmem>>, vector<1x32xf32>
    %153 = vector.broadcast %152 : vector<1x32xf32> to vector<17x32xf32>
    %154 = arith.mulf %151, %153 : vector<17x32xf32>
    %c0_61 = arith.constant 0 : index
    %c0_62 = arith.constant 0 : index
    %155 = vector.load %arg13[%c0_61, %c0_62] : memref<1x32xf32, #tpu.memory_space<vmem>>, vector<1x32xf32>
    %156 = vector.broadcast %155 : vector<1x32xf32> to vector<17x32xf32>
    %157 = arith.addf %154, %156 : vector<17x32xf32>
    %158 = vector.extract_strided_slice %157 {offsets = [0, 0], sizes = [1, 32], strides = [1, 1]} : vector<17x32xf32> to vector<1x32xf32>
    %c0_63 = arith.constant 0 : index
    %c0_64 = arith.constant 0 : index
    %159 = vector.load %arg14[%c0_63, %c0_64] : memref<32x230xf32, #tpu.memory_space<vmem>>, vector<32x230xf32>
    %cst_65 = arith.constant dense<0.000000e+00> : vector<1x230xf32>
    %160 = tpu.matmul %158, %159, %cst_65 {dimension_numbers = #tpu.dot_dimension_numbers<[1], [0], [0], [1], [0, 0, 1, 1], [], []>} : vector<1x32xf32>, vector<32x230xf32>, vector<1x230xf32> -> vector<1x230xf32>
    %c0_66 = arith.constant 0 : index
    %c0_67 = arith.constant 0 : index
    %161 = vector.load %arg15[%c0_66, %c0_67] : memref<1x230xf32, #tpu.memory_space<vmem>>, vector<1x230xf32>
    %162 = arith.addf %160, %161 : vector<1x230xf32>
    %163 = vector.extract_strided_slice %162 {offsets = [0, 0], sizes = [1, 198], strides = [1, 1]} : vector<1x230xf32> to vector<1x198xf32>
    %164 = arith.negf %163 : vector<1x198xf32>
    %165 = math.exp %164 : vector<1x198xf32>
    %cst_68 = arith.constant 1.000000e+00 : f32
    %166 = vector.broadcast %cst_68 : f32 to vector<1x198xf32>
    %167 = arith.addf %166, %165 : vector<1x198xf32>
    %168 = arith.divf %166, %167 : vector<1x198xf32>
    %169 = arith.mulf %163, %168 : vector<1x198xf32>
    %170 = vector.extract_strided_slice %162 {offsets = [0, 198], sizes = [1, 32], strides = [1, 1]} : vector<1x230xf32> to vector<1x32xf32>
    %cst_69 = arith.constant 5.000000e-01 : f32
    %171 = vector.broadcast %cst_69 : f32 to vector<1x32xf32>
    %172 = arith.mulf %171, %170 : vector<1x32xf32>
    %cst_70 = arith.constant 0.707106769 : f32
    %173 = vector.broadcast %cst_70 : f32 to vector<1x32xf32>
    %174 = arith.mulf %170, %173 : vector<1x32xf32>
    %175 = math.erf %174 : vector<1x32xf32>
    %cst_71 = arith.constant 1.000000e+00 : f32
    %176 = vector.broadcast %cst_71 : f32 to vector<1x32xf32>
    %177 = arith.addf %176, %175 : vector<1x32xf32>
    %178 = arith.mulf %172, %177 : vector<1x32xf32>
    %c0_72 = arith.constant 0 : index
    %c0_73 = arith.constant 0 : index
    %179 = vector.load %arg16[%c0_72, %c0_73] : memref<32x198xf32, #tpu.memory_space<vmem>>, vector<32x198xf32>
    %cst_74 = arith.constant dense<0.000000e+00> : vector<1x198xf32>
    %180 = tpu.matmul %158, %179, %cst_74 {dimension_numbers = #tpu.dot_dimension_numbers<[1], [0], [0], [1], [0, 0, 1, 1], [], []>} : vector<1x32xf32>, vector<32x198xf32>, vector<1x198xf32> -> vector<1x198xf32>
    %c0_75 = arith.constant 0 : index
    %c0_76 = arith.constant 0 : index
    %181 = vector.load %arg17[%c0_75, %c0_76] : memref<1x198xf32, #tpu.memory_space<vmem>>, vector<1x198xf32>
    %182 = arith.addf %180, %181 : vector<1x198xf32>
    %183 = arith.mulf %169, %182 : vector<1x198xf32>
    %c0_77 = arith.constant 0 : index
    %c0_78 = arith.constant 0 : index
    %184 = vector.load %arg18[%c0_77, %c0_78] : memref<198x6xf32, #tpu.memory_space<vmem>>, vector<198x6xf32>
    %cst_79 = arith.constant dense<0.000000e+00> : vector<1x6xf32>
    %185 = tpu.matmul %183, %184, %cst_79 {dimension_numbers = #tpu.dot_dimension_numbers<[1], [0], [0], [1], [0, 0, 1, 1], [], []>} : vector<1x198xf32>, vector<198x6xf32>, vector<1x6xf32> -> vector<1x6xf32>
    %c0_80 = arith.constant 0 : index
    %c0_81 = arith.constant 0 : index
    %186 = vector.load %arg19[%c0_80, %c0_81] : memref<32x6xf32, #tpu.memory_space<vmem>>, vector<32x6xf32>
    %cst_82 = arith.constant dense<0.000000e+00> : vector<1x6xf32>
    %187 = tpu.matmul %178, %186, %cst_82 {dimension_numbers = #tpu.dot_dimension_numbers<[1], [0], [0], [1], [0, 0, 1, 1], [], []>} : vector<1x32xf32>, vector<32x6xf32>, vector<1x6xf32> -> vector<1x6xf32>
    %c0_83 = arith.constant 0 : index
    %c0_84 = arith.constant 0 : index
    %188 = vector.load %arg20[%c0_83, %c0_84] : memref<1x6xf32, #tpu.memory_space<vmem>>, vector<1x6xf32>
    %189 = arith.addf %187, %188 : vector<1x6xf32>
    %190 = arith.addf %185, %189 : vector<1x6xf32>
    %c0_85 = arith.constant 0 : index
    %c0_86 = arith.constant 0 : index
    %c0_87 = arith.constant 0 : index
    %191 = vector.load %arg21[%c0_85, %c0_86, %c0_87] : memref<1x1x6xf32, #tpu.memory_space<vmem>>, vector<1x1x6xf32>
    %192 = vector.shape_cast %191 : vector<1x1x6xf32> to vector<1x6xf32>
    %193 = vector.shape_cast %190 : vector<1x6xf32> to vector<1x1x6xf32>
    tpu.vector_store %arg21[%c0_85, %c0_86, %c0_87], %193 {strides = array<i32>} : memref<1x1x6xf32, #tpu.memory_space<vmem>>, vector<1x1x6xf32>,
    return
  }
  func.func @transform_0(%arg0: i32) -> (i32, i32, i32) {
    %c0_i32 = arith.constant 0 : i32
    %c0_i32_0 = arith.constant 0 : i32
    %c0_i32_1 = arith.constant 0 : i32
    return %arg0, %c0_i32, %c0_i32_0 : i32, i32, i32
  }
  func.func @transform_1(%arg0: i32) -> (i32, i32) {
    %c0_i32 = arith.constant 0 : i32
    %c0_i32_0 = arith.constant 0 : i32
    %c0_i32_1 = arith.constant 0 : i32
    return %c0_i32, %c0_i32_0 : i32, i32
  }
  func.func @transform_2(%arg0: i32) -> (i32, i32) {
    %c0_i32 = arith.constant 0 : i32
    %c0_i32_0 = arith.constant 0 : i32
    %c0_i32_1 = arith.constant 0 : i32
    return %c0_i32, %c0_i32_0 : i32, i32
  }
  func.func @transform_3(%arg0: i32) -> (i32, i32) {
    %c0_i32 = arith.constant 0 : i32
    %c0_i32_0 = arith.constant 0 : i32
    %c0_i32_1 = arith.constant 0 : i32
    return %c0_i32, %c0_i32_0 : i32, i32
  }
  func.func @transform_4(%arg0: i32) -> (i32, i32) {
    %c0_i32 = arith.constant 0 : i32
    %c0_i32_0 = arith.constant 0 : i32
    %c0_i32_1 = arith.constant 0 : i32
    return %c0_i32, %c0_i32_0 : i32, i32
  }
  func.func @transform_5(%arg0: i32) -> (i32, i32) {
    %c0_i32 = arith.constant 0 : i32
    %c0_i32_0 = arith.constant 0 : i32
    %c0_i32_1 = arith.constant 0 : i32
    return %c0_i32, %c0_i32_0 : i32, i32
  }
  func.func @transform_6(%arg0: i32) -> (i32, i32) {
    %c0_i32 = arith.constant 0 : i32
    %c0_i32_0 = arith.constant 0 : i32
    %c0_i32_1 = arith.constant 0 : i32
    return %c0_i32, %c0_i32_0 : i32, i32
  }
  func.func @transform_7(%arg0: i32) -> (i32, i32) {
    %c0_i32 = arith.constant 0 : i32
    %c0_i32_0 = arith.constant 0 : i32
    %c0_i32_1 = arith.constant 0 : i32
    return %c0_i32, %c0_i32_0 : i32, i32
  }
  func.func @transform_8(%arg0: i32) -> (i32, i32) {
    %c0_i32 = arith.constant 0 : i32
    %c0_i32_0 = arith.constant 0 : i32
    %c0_i32_1 = arith.constant 0 : i32
    return %c0_i32, %c0_i32_0 : i32, i32
  }
  func.func @transform_9(%arg0: i32) -> (i32, i32) {
    %c0_i32 = arith.constant 0 : i32
    %c0_i32_0 = arith.constant 0 : i32
    %c0_i32_1 = arith.constant 0 : i32
    return %c0_i32, %c0_i32_0 : i32, i32
  }
  func.func @transform_10(%arg0: i32) -> (i32, i32) {
    %c0_i32 = arith.constant 0 : i32
    %c0_i32_0 = arith.constant 0 : i32
    %c0_i32_1 = arith.constant 0 : i32
    return %c0_i32, %c0_i32_0 : i32, i32
  }
  func.func @transform_11(%arg0: i32) -> (i32, i32) {
    %c0_i32 = arith.constant 0 : i32
    %c0_i32_0 = arith.constant 0 : i32
    %c0_i32_1 = arith.constant 0 : i32
    return %c0_i32, %c0_i32_0 : i32, i32
  }
  func.func @transform_12(%arg0: i32) -> (i32, i32) {
    %c0_i32 = arith.constant 0 : i32
    %c0_i32_0 = arith.constant 0 : i32
    %c0_i32_1 = arith.constant 0 : i32
    return %c0_i32, %c0_i32_0 : i32, i32
  }
  func.func @transform_13(%arg0: i32) -> (i32, i32) {
    %c0_i32 = arith.constant 0 : i32
    %c0_i32_0 = arith.constant 0 : i32
    %c0_i32_1 = arith.constant 0 : i32
    return %c0_i32, %c0_i32_0 : i32, i32
  }
  func.func @transform_14(%arg0: i32) -> (i32, i32) {
    %c0_i32 = arith.constant 0 : i32
    %c0_i32_0 = arith.constant 0 : i32
    %c0_i32_1 = arith.constant 0 : i32
    return %c0_i32, %c0_i32_0 : i32, i32
  }
  func.func @transform_15(%arg0: i32) -> (i32, i32) {
    %c0_i32 = arith.constant 0 : i32
    %c0_i32_0 = arith.constant 0 : i32
    %c0_i32_1 = arith.constant 0 : i32
    return %c0_i32, %c0_i32_0 : i32, i32
  }
  func.func @transform_16(%arg0: i32) -> (i32, i32) {
    %c0_i32 = arith.constant 0 : i32
    %c0_i32_0 = arith.constant 0 : i32
    %c0_i32_1 = arith.constant 0 : i32
    return %c0_i32, %c0_i32_0 : i32, i32
  }
  func.func @transform_17(%arg0: i32) -> (i32, i32) {
    %c0_i32 = arith.constant 0 : i32
    %c0_i32_0 = arith.constant 0 : i32
    %c0_i32_1 = arith.constant 0 : i32
    return %c0_i32, %c0_i32_0 : i32, i32
  }
  func.func @transform_18(%arg0: i32) -> (i32, i32) {
    %c0_i32 = arith.constant 0 : i32
    %c0_i32_0 = arith.constant 0 : i32
    %c0_i32_1 = arith.constant 0 : i32
    return %c0_i32, %c0_i32_0 : i32, i32
  }
  func.func @transform_19(%arg0: i32) -> (i32, i32) {
    %c0_i32 = arith.constant 0 : i32
    %c0_i32_0 = arith.constant 0 : i32
    %c0_i32_1 = arith.constant 0 : i32
    return %c0_i32, %c0_i32_0 : i32, i32
  }
  func.func @transform_20(%arg0: i32) -> (i32, i32, i32) {
    %c0_i32 = arith.constant 0 : i32
    %c0_i32_0 = arith.constant 0 : i32
    %c0_i32_1 = arith.constant 0 : i32
    return %arg0, %c0_i32, %c0_i32_0 : i32, i32, i32
  }
}

</mosaic_0001>

<llo_original>
// kernel: tpu_custom_call.1
$region0: #{tpu_custom_call.1}
  #allocation0 [shape = 'u32[]', space=smem, size = 0x4, offset = 0x4, fixed_abs, tag = 'smem constant byte address 0x4 - core index']
  #allocation1 [shape = 'u32[144,128]{1,0:T(1,128)}', space=vmem, size = 0x12000, scoped, tag = 'internal scratch']
  %s0 = inlined_call_operand.vmem [shape: f32[2,17,32], index: 0, kind: input, shape index: {}]
  %s1 = inlined_call_operand.vmem [shape: f32[32,96], index: 1, kind: input, shape index: {}]
  %s2 = inlined_call_operand.vmem [shape: f32[17,96], index: 2, kind: input, shape index: {}]
  %s3 = inlined_call_operand.vmem [shape: f32[32,32], index: 3, kind: input, shape index: {}]
  %s4 = inlined_call_operand.vmem [shape: f32[1,32], index: 4, kind: input, shape index: {}]
  %s5 = inlined_call_operand.vmem [shape: f32[1,32], index: 5, kind: input, shape index: {}]
  %s6 = inlined_call_operand.vmem [shape: f32[1,32], index: 6, kind: input, shape index: {}]
  %s7 = inlined_call_operand.vmem [shape: f32[32,64], index: 7, kind: input, shape index: {}]
  %s8 = inlined_call_operand.vmem [shape: f32[1,64], index: 8, kind: input, shape index: {}]
  %s9 = inlined_call_operand.vmem [shape: f32[64,32], index: 9, kind: input, shape index: {}]
  %s10 = inlined_call_operand.vmem [shape: f32[1,32], index: 10, kind: input, shape index: {}]
  %s11 = inlined_call_operand.vmem [shape: f32[1,32], index: 11, kind: input, shape index: {}]
  %s12 = inlined_call_operand.vmem [shape: f32[1,32], index: 12, kind: input, shape index: {}]
  %s13 = inlined_call_operand.vmem [shape: f32[32,230], index: 13, kind: input, shape index: {}]
  %s14 = inlined_call_operand.vmem [shape: f32[1,230], index: 14, kind: input, shape index: {}]
  %s15 = inlined_call_operand.vmem [shape: f32[32,198], index: 15, kind: input, shape index: {}]
  %s16 = inlined_call_operand.vmem [shape: f32[1,198], index: 16, kind: input, shape index: {}]
  %s17 = inlined_call_operand.vmem [shape: f32[198,6], index: 17, kind: input, shape index: {}]
  %s18 = inlined_call_operand.vmem [shape: f32[32,6], index: 18, kind: input, shape index: {}]
  %s19 = inlined_call_operand.vmem [shape: f32[1,6], index: 19, kind: input, shape index: {}]
  %s20 = inlined_call_operand.hbm [shape: f32[2,1,6], index: 20, kind: output, shape index: {}]
  %s21 = sld [smem:[#allocation0]]
  $region113: #{tpu_custom_call.1} parent=0
    _
  %s23 = ssub.s32 1, %s21
  %s24 = scalar_select 0, %s23, %s21
  $region1: #{tpu_custom_call.1} parent=0
    #allocation2 [shape = 'u8[1024]{0}', space=vmem, size = 0x400, scoped, tag = 'output window, operand 0']
    #allocation3 [shape = 's32[2]{0}', space=sflag, size = 0x8, scoped, tag = 'scoped memory for tpu_custom_call.1']
    %25 = vsyncpa [#allocation3], 0
    %s26 = scalar_lea.sflag [#allocation3], 1
    %27 = vsyncpa %s26, 0
    loop: start=0, step=1, limit=4
    $region2: #{tpu_custom_call.1} parent=1 // loop_pre_header
      _
    $region3: #{tpu_custom_call.1} parent=1 // loop_header
      %s29 = sphi 0, %s33
      %p30 = scmp.ge.s32.totalorder %s29, 4
      %s39 = sphi 0, %s41
      %s42 = sphi 0, %s39
      %s43 = sphi 0, %s42
      %s59 = sphi 0, %s43
      %s63 = sphi 0, %s63
      %s65 = sphi 0, %s63
      %s66 = sphi 0, %s65
      %s80 = sphi 0, %s66
      %s84 = sphi 0, %s84
      %s86 = sphi 0, %s84
      %s87 = sphi 0, %s86
      %s101 = sphi 0, %s87
      %s105 = sphi 0, %s105
      %s107 = sphi 0, %s105
      %s108 = sphi 0, %s107
      %s122 = sphi 0, %s108
      %s126 = sphi 0, %s126
      %s128 = sphi 0, %s126
      %s129 = sphi 0, %s128
      %s143 = sphi 0, %s129
      %s147 = sphi 0, %s147
      %s149 = sphi 0, %s147
      %s150 = sphi 0, %s149
      %s164 = sphi 0, %s150
      %s168 = sphi 0, %s168
      %s170 = sphi 0, %s168
      %s171 = sphi 0, %s170
      %s185 = sphi 0, %s171
      %s189 = sphi 0, %s189
      %s191 = sphi 0, %s189
      %s192 = sphi 0, %s191
      %s206 = sphi 0, %s192
      %s210 = sphi 0, %s210
      %s212 = sphi 0, %s210
      %s213 = sphi 0, %s212
      %s227 = sphi 0, %s213
      %s231 = sphi 0, %s231
      %s233 = sphi 0, %s231
      %s234 = sphi 0, %s233
      %s248 = sphi 0, %s234
      %s252 = sphi 0, %s252
      %s254 = sphi 0, %s252
      %s255 = sphi 0, %s254
      %s269 = sphi 0, %s255
      %s273 = sphi 0, %s273
      %s275 = sphi 0, %s273
      %s276 = sphi 0, %s275
      %s290 = sphi 0, %s276
      %s294 = sphi 0, %s294
      %s296 = sphi 0, %s294
      %s297 = sphi 0, %s296
      %s311 = sphi 0, %s297
      %s315 = sphi 0, %s315
      %s317 = sphi 0, %s315
      %s318 = sphi 0, %s317
      %s332 = sphi 0, %s318
      %s336 = sphi 0, %s336
      %s338 = sphi 0, %s336
      %s339 = sphi 0, %s338
      %s353 = sphi 0, %s339
      %s357 = sphi 0, %s357
      %s359 = sphi 0, %s357
      %s360 = sphi 0, %s359
      %s374 = sphi 0, %s360
      %s378 = sphi 0, %s378
      %s380 = sphi 0, %s378
      %s381 = sphi 0, %s380
      %s395 = sphi 0, %s381
      %s399 = sphi 0, %s399
      %s401 = sphi 0, %s399
      %s402 = sphi 0, %s401
      %s416 = sphi 0, %s402
      %s420 = sphi 0, %s420
      %s422 = sphi 0, %s420
      %s423 = sphi 0, %s422
      %s437 = sphi 0, %s423
      %s441 = sphi 0, %s441
      %s443 = sphi 0, %s441
      %s444 = sphi 0, %s443
      %s458 = sphi 0, %s444
      %s464 = sphi 0, %s466
      %s467 = sphi 0, %s464
      %s468 = sphi 0, %s467
      %s484 = sphi 0, %s468
    $region4: #{tpu_custom_call.1} parent=1 // loop_header_branch
      %32 = sbr.rel (%p30) target = $region8
    $region5: #{tpu_custom_call.1} parent=1 // loop_body
      %s34 = ssub.s32 %s29, 1
      %s35 = ssub.s32 %s29, 2
      %s36 = sadd.s32 %s29, 1
      %s37 = ssub.s32 %s29, %s36
      %p38 = scmp.eq.s32.totalorder %s37, 0
      %s40 = sadd.s32 %s39, 1
      %s41 = scalar_select %p38, %s39, %s40
      %p44 = pneg %p38
      %p45 = scmp.eq.s32.totalorder %s29, 1
      %p46 = por %p44, %p45
      %p47 = scmp.ne.s32.totalorder %s39, %s42
      %p48 = scmp.eq.s32.totalorder %s29, 0
      %p49 = por %p47, %p48
      %p50 = scmp.ne.s32.totalorder %s39, %s42
      %p51 = scmp.eq.s32.totalorder %s34, 1
      %p52 = por %p50, %p51
      %p53 = scmp.ne.s32.totalorder %s42, %s43
      %p54 = scmp.eq.s32.totalorder %s34, 0
      %p55 = por %p53, %p54
      %p56 = scmp.ne.s32.totalorder %s42, %s43
      %p57 = scmp.eq.s32.totalorder %s35, 1
      %p58 = por %p56, %p57
      %p60 = scmp.ne.s32.totalorder %s43, %s59
      %p61 = scmp.eq.s32.totalorder %s35, 0
      %p62 = por %p60, %p61
      %s64 = sadd.s32 %s63, 1
      %p67 = scmp.eq.s32.totalorder %s29, 1
      %p68 = scmp.ne.s32.totalorder %s63, %s65
      %p69 = scmp.eq.s32.totalorder %s29, 0
      %p70 = por %p68, %p69
      %p71 = scmp.ne.s32.totalorder %s63, %s65
      %p72 = scmp.eq.s32.totalorder %s34, 1
      %p73 = por %p71, %p72
      %p74 = scmp.ne.s32.totalorder %s65, %s66
      %p75 = scmp.eq.s32.totalorder %s34, 0
      %p76 = por %p74, %p75
      %p77 = scmp.ne.s32.totalorder %s65, %s66
      %p78 = scmp.eq.s32.totalorder %s35, 1
      %p79 = por %p77, %p78
      %p81 = scmp.ne.s32.totalorder %s66, %s80
      %p82 = scmp.eq.s32.totalorder %s35, 0
      %p83 = por %p81, %p82
      %s85 = sadd.s32 %s84, 1
      %p88 = scmp.eq.s32.totalorder %s29, 1
      %p89 = scmp.ne.s32.totalorder %s84, %s86
      %p90 = scmp.eq.s32.totalorder %s29, 0
      %p91 = por %p89, %p90
      %p92 = scmp.ne.s32.totalorder %s84, %s86
      %p93 = scmp.eq.s32.totalorder %s34, 1
      %p94 = por %p92, %p93
      %p95 = scmp.ne.s32.totalorder %s86, %s87
      %p96 = scmp.eq.s32.totalorder %s34, 0
      %p97 = por %p95, %p96
      %p98 = scmp.ne.s32.totalorder %s86, %s87
      %p99 = scmp.eq.s32.totalorder %s35, 1
      %p100 = por %p98, %p99
      %p102 = scmp.ne.s32.totalorder %s87, %s101
      %p103 = scmp.eq.s32.totalorder %s35, 0
      %p104 = por %p102, %p103
      %s106 = sadd.s32 %s105, 1
      %p109 = scmp.eq.s32.totalorder %s29, 1
      %p110 = scmp.ne.s32.totalorder %s105, %s107
      %p111 = scmp.eq.s32.totalorder %s29, 0
      %p112 = por %p110, %p111
      %p113 = scmp.ne.s32.totalorder %s105, %s107
      %p114 = scmp.eq.s32.totalorder %s34, 1
      %p115 = por %p113, %p114
      %p116 = scmp.ne.s32.totalorder %s107, %s108
      %p117 = scmp.eq.s32.totalorder %s34, 0
      %p118 = por %p116, %p117
      %p119 = scmp.ne.s32.totalorder %s107, %s108
      %p120 = scmp.eq.s32.totalorder %s35, 1
      %p121 = por %p119, %p120
      %p123 = scmp.ne.s32.totalorder %s108, %s122
      %p124 = scmp.eq.s32.totalorder %s35, 0
      %p125 = por %p123, %p124
      %s127 = sadd.s32 %s126, 1
      %p130 = scmp.eq.s32.totalorder %s29, 1
      %p131 = scmp.ne.s32.totalorder %s126, %s128
      %p132 = scmp.eq.s32.totalorder %s29, 0
      %p133 = por %p131, %p132
      %p134 = scmp.ne.s32.totalorder %s126, %s128
      %p135 = scmp.eq.s32.totalorder %s34, 1
      %p136 = por %p134, %p135
      %p137 = scmp.ne.s32.totalorder %s128, %s129
      %p138 = scmp.eq.s32.totalorder %s34, 0
      %p139 = por %p137, %p138
      %p140 = scmp.ne.s32.totalorder %s128, %s129
      %p141 = scmp.eq.s32.totalorder %s35, 1
      %p142 = por %p140, %p141
      %p144 = scmp.ne.s32.totalorder %s129, %s143
      %p145 = scmp.eq.s32.totalorder %s35, 0
      %p146 = por %p144, %p145
      %s148 = sadd.s32 %s147, 1
      %p151 = scmp.eq.s32.totalorder %s29, 1
      %p152 = scmp.ne.s32.totalorder %s147, %s149
      %p153 = scmp.eq.s32.totalorder %s29, 0
      %p154 = por %p152, %p153
      %p155 = scmp.ne.s32.totalorder %s147, %s149
      %p156 = scmp.eq.s32.totalorder %s34, 1
      %p157 = por %p155, %p156
      %p158 = scmp.ne.s32.totalorder %s149, %s150
      %p159 = scmp.eq.s32.totalorder %s34, 0
      %p160 = por %p158, %p159
      %p161 = scmp.ne.s32.totalorder %s149, %s150
      %p162 = scmp.eq.s32.totalorder %s35, 1
      %p163 = por %p161, %p162
      %p165 = scmp.ne.s32.totalorder %s150, %s164
      %p166 = scmp.eq.s32.totalorder %s35, 0
      %p167 = por %p165, %p166
      %s169 = sadd.s32 %s168, 1
      %p172 = scmp.eq.s32.totalorder %s29, 1
      %p173 = scmp.ne.s32.totalorder %s168, %s170
      %p174 = scmp.eq.s32.totalorder %s29, 0
      %p175 = por %p173, %p174
      %p176 = scmp.ne.s32.totalorder %s168, %s170
      %p177 = scmp.eq.s32.totalorder %s34, 1
      %p178 = por %p176, %p177
      %p179 = scmp.ne.s32.totalorder %s170, %s171
      %p180 = scmp.eq.s32.totalorder %s34, 0
      %p181 = por %p179, %p180
      %p182 = scmp.ne.s32.totalorder %s170, %s171
      %p183 = scmp.eq.s32.totalorder %s35, 1
      %p184 = por %p182, %p183
      %p186 = scmp.ne.s32.totalorder %s171, %s185
      %p187 = scmp.eq.s32.totalorder %s35, 0
      %p188 = por %p186, %p187
      %s190 = sadd.s32 %s189, 1
      %p193 = scmp.eq.s32.totalorder %s29, 1
      %p194 = scmp.ne.s32.totalorder %s189, %s191
      %p195 = scmp.eq.s32.totalorder %s29, 0
      %p196 = por %p194, %p195
      %p197 = scmp.ne.s32.totalorder %s189, %s191
      %p198 = scmp.eq.s32.totalorder %s34, 1
      %p199 = por %p197, %p198
      %p200 = scmp.ne.s32.totalorder %s191, %s192
      %p201 = scmp.eq.s32.totalorder %s34, 0
      %p202 = por %p200, %p201
      %p203 = scmp.ne.s32.totalorder %s191, %s192
      %p204 = scmp.eq.s32.totalorder %s35, 1
      %p205 = por %p203, %p204
      %p207 = scmp.ne.s32.totalorder %s192, %s206
      %p208 = scmp.eq.s32.totalorder %s35, 0
      %p209 = por %p207, %p208
      %s211 = sadd.s32 %s210, 1
      %p214 = scmp.eq.s32.totalorder %s29, 1
      %p215 = scmp.ne.s32.totalorder %s210, %s212
      %p216 = scmp.eq.s32.totalorder %s29, 0
      %p217 = por %p215, %p216
      %p218 = scmp.ne.s32.totalorder %s210, %s212
      %p219 = scmp.eq.s32.totalorder %s34, 1
      %p220 = por %p218, %p219
      %p221 = scmp.ne.s32.totalorder %s212, %s213
      %p222 = scmp.eq.s32.totalorder %s34, 0
      %p223 = por %p221, %p222
      %p224 = scmp.ne.s32.totalorder %s212, %s213
      %p225 = scmp.eq.s32.totalorder %s35, 1
      %p226 = por %p224, %p225
      %p228 = scmp.ne.s32.totalorder %s213, %s227
      %p229 = scmp.eq.s32.totalorder %s35, 0
      %p230 = por %p228, %p229
      %s232 = sadd.s32 %s231, 1
      %p235 = scmp.eq.s32.totalorder %s29, 1
      %p236 = scmp.ne.s32.totalorder %s231, %s233
      %p237 = scmp.eq.s32.totalorder %s29, 0
      %p238 = por %p236, %p237
      %p239 = scmp.ne.s32.totalorder %s231, %s233
      %p240 = scmp.eq.s32.totalorder %s34, 1
      %p241 = por %p239, %p240
      %p242 = scmp.ne.s32.totalorder %s233, %s234
      %p243 = scmp.eq.s32.totalorder %s34, 0
      %p244 = por %p242, %p243
      %p245 = scmp.ne.s32.totalorder %s233, %s234
      %p246 = scmp.eq.s32.totalorder %s35, 1
      %p247 = por %p245, %p246
      %p249 = scmp.ne.s32.totalorder %s234, %s248
      %p250 = scmp.eq.s32.totalorder %s35, 0
      %p251 = por %p249, %p250
      %s253 = sadd.s32 %s252, 1
      %p256 = scmp.eq.s32.totalorder %s29, 1
      %p257 = scmp.ne.s32.totalorder %s252, %s254
      %p258 = scmp.eq.s32.totalorder %s29, 0
      %p259 = por %p257, %p258
      %p260 = scmp.ne.s32.totalorder %s252, %s254
      %p261 = scmp.eq.s32.totalorder %s34, 1
      %p262 = por %p260, %p261
      %p263 = scmp.ne.s32.totalorder %s254, %s255
      %p264 = scmp.eq.s32.totalorder %s34, 0
      %p265 = por %p263, %p264
      %p266 = scmp.ne.s32.totalorder %s254, %s255
      %p267 = scmp.eq.s32.totalorder %s35, 1
      %p268 = por %p266, %p267
      %p270 = scmp.ne.s32.totalorder %s255, %s269
      %p271 = scmp.eq.s32.totalorder %s35, 0
      %p272 = por %p270, %p271
      %s274 = sadd.s32 %s273, 1
      %p277 = scmp.eq.s32.totalorder %s29, 1
      %p278 = scmp.ne.s32.totalorder %s273, %s275
      %p279 = scmp.eq.s32.totalorder %s29, 0
      %p280 = por %p278, %p279
      %p281 = scmp.ne.s32.totalorder %s273, %s275
      %p282 = scmp.eq.s32.totalorder %s34, 1
      %p283 = por %p281, %p282
      %p284 = scmp.ne.s32.totalorder %s275, %s276
      %p285 = scmp.eq.s32.totalorder %s34, 0
      %p286 = por %p284, %p285
      %p287 = scmp.ne.s32.totalorder %s275, %s276
      %p288 = scmp.eq.s32.totalorder %s35, 1
      %p289 = por %p287, %p288
      %p291 = scmp.ne.s32.totalorder %s276, %s290
      %p292 = scmp.eq.s32.totalorder %s35, 0
      %p293 = por %p291, %p292
      %s295 = sadd.s32 %s294, 1
      %p298 = scmp.eq.s32.totalorder %s29, 1
      %p299 = scmp.ne.s32.totalorder %s294, %s296
      %p300 = scmp.eq.s32.totalorder %s29, 0
      %p301 = por %p299, %p300
      %p302 = scmp.ne.s32.totalorder %s294, %s296
      %p303 = scmp.eq.s32.totalorder %s34, 1
      %p304 = por %p302, %p303
      %p305 = scmp.ne.s32.totalorder %s296, %s297
      %p306 = scmp.eq.s32.totalorder %s34, 0
      %p307 = por %p305, %p306
      %p308 = scmp.ne.s32.totalorder %s296, %s297
      %p309 = scmp.eq.s32.totalorder %s35, 1
      %p310 = por %p308, %p309
      %p312 = scmp.ne.s32.totalorder %s297, %s311
      %p313 = scmp.eq.s32.totalorder %s35, 0
      %p314 = por %p312, %p313
      %s316 = sadd.s32 %s315, 1
      %p319 = scmp.eq.s32.totalorder %s29, 1
      %p320 = scmp.ne.s32.totalorder %s315, %s317
      %p321 = scmp.eq.s32.totalorder %s29, 0
      %p322 = por %p320, %p321
      %p323 = scmp.ne.s32.totalorder %s315, %s317
      %p324 = scmp.eq.s32.totalorder %s34, 1
      %p325 = por %p323, %p324
      %p326 = scmp.ne.s32.totalorder %s317, %s318
      %p327 = scmp.eq.s32.totalorder %s34, 0
      %p328 = por %p326, %p327
      %p329 = scmp.ne.s32.totalorder %s317, %s318
      %p330 = scmp.eq.s32.totalorder %s35, 1
      %p331 = por %p329, %p330
      %p333 = scmp.ne.s32.totalorder %s318, %s332
      %p334 = scmp.eq.s32.totalorder %s35, 0
      %p335 = por %p333, %p334
      %s337 = sadd.s32 %s336, 1
      %p340 = scmp.eq.s32.totalorder %s29, 1
      %p341 = scmp.ne.s32.totalorder %s336, %s338
      %p342 = scmp.eq.s32.totalorder %s29, 0
      %p343 = por %p341, %p342
      %p344 = scmp.ne.s32.totalorder %s336, %s338
      %p345 = scmp.eq.s32.totalorder %s34, 1
      %p346 = por %p344, %p345
      %p347 = scmp.ne.s32.totalorder %s338, %s339
      %p348 = scmp.eq.s32.totalorder %s34, 0
      %p349 = por %p347, %p348
      %p350 = scmp.ne.s32.totalorder %s338, %s339
      %p351 = scmp.eq.s32.totalorder %s35, 1
      %p352 = por %p350, %p351
      %p354 = scmp.ne.s32.totalorder %s339, %s353
      %p355 = scmp.eq.s32.totalorder %s35, 0
      %p356 = por %p354, %p355
      %s358 = sadd.s32 %s357, 1
      %p361 = scmp.eq.s32.totalorder %s29, 1
      %p362 = scmp.ne.s32.totalorder %s357, %s359
      %p363 = scmp.eq.s32.totalorder %s29, 0
      %p364 = por %p362, %p363
      %p365 = scmp.ne.s32.totalorder %s357, %s359
      %p366 = scmp.eq.s32.totalorder %s34, 1
      %p367 = por %p365, %p366
      %p368 = scmp.ne.s32.totalorder %s359, %s360
      %p369 = scmp.eq.s32.totalorder %s34, 0
      %p370 = por %p368, %p369
      %p371 = scmp.ne.s32.totalorder %s359, %s360
      %p372 = scmp.eq.s32.totalorder %s35, 1
      %p373 = por %p371, %p372
      %p375 = scmp.ne.s32.totalorder %s360, %s374
      %p376 = scmp.eq.s32.totalorder %s35, 0
      %p377 = por %p375, %p376
      %s379 = sadd.s32 %s378, 1
      %p382 = scmp.eq.s32.totalorder %s29, 1
      %p383 = scmp.ne.s32.totalorder %s378, %s380
      %p384 = scmp.eq.s32.totalorder %s29, 0
      %p385 = por %p383, %p384
      %p386 = scmp.ne.s32.totalorder %s378, %s380
      %p387 = scmp.eq.s32.totalorder %s34, 1
      %p388 = por %p386, %p387
      %p389 = scmp.ne.s32.totalorder %s380, %s381
      %p390 = scmp.eq.s32.totalorder %s34, 0
      %p391 = por %p389, %p390
      %p392 = scmp.ne.s32.totalorder %s380, %s381
      %p393 = scmp.eq.s32.totalorder %s35, 1
      %p394 = por %p392, %p393
      %p396 = scmp.ne.s32.totalorder %s381, %s395
      %p397 = scmp.eq.s32.totalorder %s35, 0
      %p398 = por %p396, %p397
      %s400 = sadd.s32 %s399, 1
      %p403 = scmp.eq.s32.totalorder %s29, 1
      %p404 = scmp.ne.s32.totalorder %s399, %s401
      %p405 = scmp.eq.s32.totalorder %s29, 0
      %p406 = por %p404, %p405
      %p407 = scmp.ne.s32.totalorder %s399, %s401
      %p408 = scmp.eq.s32.totalorder %s34, 1
      %p409 = por %p407, %p408
      %p410 = scmp.ne.s32.totalorder %s401, %s402
      %p411 = scmp.eq.s32.totalorder %s34, 0
      %p412 = por %p410, %p411
      %p413 = scmp.ne.s32.totalorder %s401, %s402
      %p414 = scmp.eq.s32.totalorder %s35, 1
      %p415 = por %p413, %p414
      %p417 = scmp.ne.s32.totalorder %s402, %s416
      %p418 = scmp.eq.s32.totalorder %s35, 0
      %p419 = por %p417, %p418
      %s421 = sadd.s32 %s420, 1
      %p424 = scmp.eq.s32.totalorder %s29, 1
      %p425 = scmp.ne.s32.totalorder %s420, %s422
      %p426 = scmp.eq.s32.totalorder %s29, 0
      %p427 = por %p425, %p426
      %p428 = scmp.ne.s32.totalorder %s420, %s422
      %p429 = scmp.eq.s32.totalorder %s34, 1
      %p430 = por %p428, %p429
      %p431 = scmp.ne.s32.totalorder %s422, %s423
      %p432 = scmp.eq.s32.totalorder %s34, 0
      %p433 = por %p431, %p432
      %p434 = scmp.ne.s32.totalorder %s422, %s423
      %p435 = scmp.eq.s32.totalorder %s35, 1
      %p436 = por %p434, %p435
      %p438 = scmp.ne.s32.totalorder %s423, %s437
      %p439 = scmp.eq.s32.totalorder %s35, 0
      %p440 = por %p438, %p439
      %s442 = sadd.s32 %s441, 1
      %p445 = scmp.eq.s32.totalorder %s29, 1
      %p446 = scmp.ne.s32.totalorder %s441, %s443
      %p447 = scmp.eq.s32.totalorder %s29, 0
      %p448 = por %p446, %p447
      %p449 = scmp.ne.s32.totalorder %s441, %s443
      %p450 = scmp.eq.s32.totalorder %s34, 1
      %p451 = por %p449, %p450
      %p452 = scmp.ne.s32.totalorder %s443, %s444
      %p453 = scmp.eq.s32.totalorder %s34, 0
      %p454 = por %p452, %p453
      %p455 = scmp.ne.s32.totalorder %s443, %s444
      %p456 = scmp.eq.s32.totalorder %s35, 1
      %p457 = por %p455, %p456
      %p459 = scmp.ne.s32.totalorder %s444, %s458
      %p460 = scmp.eq.s32.totalorder %s35, 0
      %p461 = por %p459, %p460
      %s462 = ssub.s32 %s29, %s36
      %p463 = scmp.eq.s32.totalorder %s462, 0
      %s465 = sadd.s32 %s464, 1
      %s466 = scalar_select %p463, %s464, %s465
      %p469 = pneg %p463
      %p470 = scmp.eq.s32.totalorder %s29, 1
      %p471 = por %p469, %p470
      %p472 = scmp.ne.s32.totalorder %s464, %s467
      %p473 = scmp.eq.s32.totalorder %s29, 0
      %p474 = por %p472, %p473
      %p475 = scmp.ne.s32.totalorder %s464, %s467
      %p476 = scmp.eq.s32.totalorder %s34, 1
      %p477 = por %p475, %p476
      %p478 = scmp.ne.s32.totalorder %s467, %s468
      %p479 = scmp.eq.s32.totalorder %s34, 0
      %p480 = por %p478, %p479
      %p481 = scmp.ne.s32.totalorder %s467, %s468
      %p482 = scmp.eq.s32.totalorder %s35, 1
      %p483 = por %p481, %p482
      %p485 = scmp.ne.s32.totalorder %s468, %s484
      %p486 = scmp.eq.s32.totalorder %s35, 0
      %p487 = por %p485, %p486
      %p488 = scmp.le.s32.totalorder 1, %s29
      %p489 = scmp.lt.s32.totalorder %s29, 3
      %p490 = pnand %p488, %p489
      %p491 = pneg %p490
      // Predicated region
      $region9: #{tpu_custom_call.1} parent=5 // pred_check
        _
      $region10: #{tpu_custom_call.1} parent=5 // pred_check_branch
        %493 = sbr.rel (%p490) target = $region12
      $region11: #{tpu_custom_call.1} parent=5 // pred_region
        %s494 = ssub.s32 %s29, 1
        // Predicated region
        $region13: #{tpu_custom_call.1} parent=11 // pred_check
          %p495 = pneg %p76
        $region14: #{tpu_custom_call.1} parent=11 // pred_check_branch
          %497 = sbr.rel (%p495) target = $region16
        $region15: #{tpu_custom_call.1} parent=11 // pred_region
          _
        $region16: #{tpu_custom_call.1} parent=11 // pred_fallthru
          _
        // Predicated region
        $region17: #{tpu_custom_call.1} parent=11 // pred_check
          %p498 = pneg %p97
        $region18: #{tpu_custom_call.1} parent=11 // pred_check_branch
          %500 = sbr.rel (%p498) target = $region20
        $region19: #{tpu_custom_call.1} parent=11 // pred_region
          _
        $region20: #{tpu_custom_call.1} parent=11 // pred_fallthru
          _
        // Predicated region
        $region21: #{tpu_custom_call.1} parent=11 // pred_check
          %p501 = pneg %p118
        $region22: #{tpu_custom_call.1} parent=11 // pred_check_branch
          %503 = sbr.rel (%p501) target = $region24
        $region23: #{tpu_custom_call.1} parent=11 // pred_region
          _
        $region24: #{tpu_custom_call.1} parent=11 // pred_fallthru
          _
        // Predicated region
        $region25: #{tpu_custom_call.1} parent=11 // pred_check
          %p504 = pneg %p139
        $region26: #{tpu_custom_call.1} parent=11 // pred_check_branch
          %506 = sbr.rel (%p504) target = $region28
        $region27: #{tpu_custom_call.1} parent=11 // pred_region
          _
        $region28: #{tpu_custom_call.1} parent=11 // pred_fallthru
          _
        // Predicated region
        $region29: #{tpu_custom_call.1} parent=11 // pred_check
          %p507 = pneg %p160
        $region30: #{tpu_custom_call.1} parent=11 // pred_check_branch
          %509 = sbr.rel (%p507) target = $region32
        $region31: #{tpu_custom_call.1} parent=11 // pred_region
          _
        $region32: #{tpu_custom_call.1} parent=11 // pred_fallthru
          _
        // Predicated region
        $region33: #{tpu_custom_call.1} parent=11 // pred_check
          %p510 = pneg %p181
        $region34: #{tpu_custom_call.1} parent=11 // pred_check_branch
          %512 = sbr.rel (%p510) target = $region36
        $region35: #{tpu_custom_call.1} parent=11 // pred_region
          _
        $region36: #{tpu_custom_call.1} parent=11 // pred_fallthru
          _
        // Predicated region
        $region37: #{tpu_custom_call.1} parent=11 // pred_check
          %p513 = pneg %p202
        $region38: #{tpu_custom_call.1} parent=11 // pred_check_branch
          %515 = sbr.rel (%p513) target = $region40
        $region39: #{tpu_custom_call.1} parent=11 // pred_region
          _
        $region40: #{tpu_custom_call.1} parent=11 // pred_fallthru
          _
        // Predicated region
        $region41: #{tpu_custom_call.1} parent=11 // pred_check
          %p516 = pneg %p223
        $region42: #{tpu_custom_call.1} parent=11 // pred_check_branch
          %518 = sbr.rel (%p516) target = $region44
        $region43: #{tpu_custom_call.1} parent=11 // pred_region
          _
        $region44: #{tpu_custom_call.1} parent=11 // pred_fallthru
          _
        // Predicated region
        $region45: #{tpu_custom_call.1} parent=11 // pred_check
          %p519 = pneg %p244
        $region46: #{tpu_custom_call.1} parent=11 // pred_check_branch
          %521 = sbr.rel (%p519) target = $region48
        $region47: #{tpu_custom_call.1} parent=11 // pred_region
          _
        $region48: #{tpu_custom_call.1} parent=11 // pred_fallthru
          _
        // Predicated region
        $region49: #{tpu_custom_call.1} parent=11 // pred_check
          %p522 = pneg %p265
        $region50: #{tpu_custom_call.1} parent=11 // pred_check_branch
          %524 = sbr.rel (%p522) target = $region52
        $region51: #{tpu_custom_call.1} parent=11 // pred_region
          _
        $region52: #{tpu_custom_call.1} parent=11 // pred_fallthru
          _
        // Predicated region
        $region53: #{tpu_custom_call.1} parent=11 // pred_check
          %p525 = pneg %p286
        $region54: #{tpu_custom_call.1} parent=11 // pred_check_branch
          %527 = sbr.rel (%p525) target = $region56
        $region55: #{tpu_custom_call.1} parent=11 // pred_region
          _
        $region56: #{tpu_custom_call.1} parent=11 // pred_fallthru
          _
        // Predicated region
        $region57: #{tpu_custom_call.1} parent=11 // pred_check
          %p528 = pneg %p307
        $region58: #{tpu_custom_call.1} parent=11 // pred_check_branch
          %530 = sbr.rel (%p528) target = $region60
        $region59: #{tpu_custom_call.1} parent=11 // pred_region
          _
        $region60: #{tpu_custom_call.1} parent=11 // pred_fallthru
          _
        // Predicated region
        $region61: #{tpu_custom_call.1} parent=11 // pred_check
          %p531 = pneg %p328
        $region62: #{tpu_custom_call.1} parent=11 // pred_check_branch
          %533 = sbr.rel (%p531) target = $region64
        $region63: #{tpu_custom_call.1} parent=11 // pred_region
          _
        $region64: #{tpu_custom_call.1} parent=11 // pred_fallthru
          _
        // Predicated region
        $region65: #{tpu_custom_call.1} parent=11 // pred_check
          %p534 = pneg %p349
        $region66: #{tpu_custom_call.1} parent=11 // pred_check_branch
          %536 = sbr.rel (%p534) target = $region68
        $region67: #{tpu_custom_call.1} parent=11 // pred_region
          _
        $region68: #{tpu_custom_call.1} parent=11 // pred_fallthru
          _
        // Predicated region
        $region69: #{tpu_custom_call.1} parent=11 // pred_check
          %p537 = pneg %p370
        $region70: #{tpu_custom_call.1} parent=11 // pred_check_branch
          %539 = sbr.rel (%p537) target = $region72
        $region71: #{tpu_custom_call.1} parent=11 // pred_region
          _
        $region72: #{tpu_custom_call.1} parent=11 // pred_fallthru
          _
        // Predicated region
        $region73: #{tpu_custom_call.1} parent=11 // pred_check
          %p540 = pneg %p391
        $region74: #{tpu_custom_call.1} parent=11 // pred_check_branch
          %542 = sbr.rel (%p540) target = $region76
        $region75: #{tpu_custom_call.1} parent=11 // pred_region
          _
        $region76: #{tpu_custom_call.1} parent=11 // pred_fallthru
          _
        // Predicated region
        $region77: #{tpu_custom_call.1} parent=11 // pred_check
          %p543 = pneg %p412
        $region78: #{tpu_custom_call.1} parent=11 // pred_check_branch
          %545 = sbr.rel (%p543) target = $region80
        $region79: #{tpu_custom_call.1} parent=11 // pred_region
          _
        $region80: #{tpu_custom_call.1} parent=11 // pred_fallthru
          _
        // Predicated region
        $region81: #{tpu_custom_call.1} parent=11 // pred_check
          %p546 = pneg %p433
        $region82: #{tpu_custom_call.1} parent=11 // pred_check_branch
          %548 = sbr.rel (%p546) target = $region84
        $region83: #{tpu_custom_call.1} parent=11 // pred_region
          _
        $region84: #{tpu_custom_call.1} parent=11 // pred_fallthru
          _
        // Predicated region
        $region85: #{tpu_custom_call.1} parent=11 // pred_check
          %p549 = pneg %p454
        $region86: #{tpu_custom_call.1} parent=11 // pred_check_branch
          %551 = sbr.rel (%p549) target = $region88
        $region87: #{tpu_custom_call.1} parent=11 // pred_region
          _
        $region88: #{tpu_custom_call.1} parent=11 // pred_fallthru
          _
      $region12: #{tpu_custom_call.1} parent=5 // pred_fallthru
        _
      %p552 = scmp.lt.s32.totalorder %s29, 2
      // Predicated region
      $region89: #{tpu_custom_call.1} parent=5 // pred_check
        %p553 = pneg %p552
      $region90: #{tpu_custom_call.1} parent=5 // pred_check_branch
        %555 = sbr.rel (%p553) target = $region92
      $region91: #{tpu_custom_call.1} parent=5 // pred_region
        // Predicated region
        $region93: #{tpu_custom_call.1} parent=91 // pred_check
          %p556 = pneg %p49
        $region94: #{tpu_custom_call.1} parent=91 // pred_check_branch
          %558 = sbr.rel (%p556) target = $region96
        $region95: #{tpu_custom_call.1} parent=91 // pred_region
          %p559 = scmp.lt.s32.totalorder %s29, 1
          %s560 = scalar_select %p559, %s29, 1
          %s561 = smul.addr %s560, 3
          %s562 = smul.addr %s561, 8
          %s563 = scalar_lea.vmem %s0, %s562
        $region96: #{tpu_custom_call.1} parent=91 // pred_fallthru
          _
      $region92: #{tpu_custom_call.1} parent=5 // pred_fallthru
        _
      %p564 = scmp.le.s32.totalorder 1, %s29
      %p565 = scmp.lt.s32.totalorder %s29, 3
      %p566 = pnand %p564, %p565
      %p567 = pneg %p566
      // Predicated region
      $region97: #{tpu_custom_call.1} parent=5 // pred_check
        _
      $region98: #{tpu_custom_call.1} parent=5 // pred_check_branch
        %569 = sbr.rel (%p566) target = $region100
      $region99: #{tpu_custom_call.1} parent=5 // pred_region
        %s570 = ssub.s32 %s29, 1
        %p571 = scmp.lt.s32.totalorder %s34, 1
        %s572 = scalar_select %p571, %s34, 1
        %s573 = smul.addr %s572, 3
        %s574 = smul.addr %s573, 8
        %s575 = scalar_lea.vmem %s0, %s574
        %p576 = pneg %p55
        %p577 = pneg %p52
        %p578 = pneg %p76
        %p579 = pneg %p73
        %p580 = pneg %p97
        %p581 = pneg %p94
        %p582 = pneg %p118
        %p583 = pneg %p115
        %p584 = pneg %p139
        %p585 = pneg %p136
        %p586 = pneg %p160
        %p587 = pneg %p157
        %p588 = pneg %p181
        %p589 = pneg %p178
        %p590 = pneg %p202
        %p591 = pneg %p199
        %p592 = pneg %p223
        %p593 = pneg %p220
        %p594 = pneg %p244
        %p595 = pneg %p241
        %p596 = pneg %p265
        %p597 = pneg %p262
        %p598 = pneg %p286
        %p599 = pneg %p283
        %p600 = pneg %p307
        %p601 = pneg %p304
        %p602 = pneg %p328
        %p603 = pneg %p325
        %p604 = pneg %p349
        %p605 = pneg %p346
        %p606 = pneg %p370
        %p607 = pneg %p367
        %p608 = pneg %p391
        %p609 = pneg %p388
        %p610 = pneg %p412
        %p611 = pneg %p409
        %p612 = pneg %p433
        %p613 = pneg %p430
        %p614 = pneg %p454
        %p615 = pneg %p451
        %p616 = pneg %p480
        %p617 = pneg %p477
        %s618 = sand.u32 %s467, 1
        %s619 = scalar_lea.sflag [#allocation3], %s618
        %s620 = sand.u32 %s467, 1
        %s621 = scalar_lea.vmem [#allocation2], %s620
        %p622 = scmp.lt.s32.totalorder %s34, 1
        %s623 = scalar_select %p622, %s34, 1
        %s624 = smul.addr %s623, 3
        %s625 = smul.addr %s624, 8
        %s626 = scalar_lea.vmem %s0, %s625
        %v627 = vld [vmem:[%s626] sm:$0xff]
        %v628 = vld [vmem:[%s626 + $0x8] sm:$0xff]
        %v629 = vld [vmem:[%s626 + $0x10] sm:$0x1]
        %v630 = vld [vmem:[%s1] sm:$0xff]
        %v631 = vld [vmem:[%s1 + $0x8] sm:$0xff]
        %v632 = vld [vmem:[%s1 + $0x10] sm:$0xff]
        %v633 = vld [vmem:[%s1 + $0x18] sm:$0xff]
        %v634 = vld [vmem:[%s2] sm:$0xff]
        %v635 = vld [vmem:[%s2 + $0x8] sm:$0xff]
        %v636 = vld [vmem:[%s2 + $0x10] sm:$0x1]
        %vm637 = vcmask 261120
        %v639 = vsel %vm637, %v627, 0
        %v642 = vsel %vm637, %v628, 0
        %v645 = vsel %vm637, %v629, 0
        %647 = vmatprep.subr.mxu0 0.0
        %648 = vmatpush1.msra.mxu0 0.0
        %649 = vmatprep.subr.mxu0 0.0
        %650 = vmatpush1.msra.mxu0 0.0
        %651 = vmatprep.subr.mxu0 0.0
        %652 = vmatpush1.msra.mxu0 0.0
        %653 = vmatprep.subr.mxu0 0.0
        %654 = vmatpush1.msra.mxu0 0.0
        %655 = vmatprep.subr.mxu0 0.0
        %656 = vmatpush1.msra.mxu0 0.0
        %657 = vmatprep.subr.mxu0 0.0
        %658 = vmatpush1.msra.mxu0 0.0
        %659 = vmatprep.subr.mxu0 0.0
        %660 = vmatpush1.msra.mxu0 0.0
        %661 = vmatprep.subr.mxu0 0.0
        %662 = vmatpush1.msra.mxu0 0.0
        %663 = vmatprep.subr.mxu0 0.0
        %664 = vmatpush1.msra.mxu0 0.0
        %665 = vmatprep.subr.mxu0 0.0
        %666 = vmatpush1.msra.mxu0 0.0
        %667 = vmatprep.subr.mxu0 0.0
        %668 = vmatpush1.msra.mxu0 0.0
        %669 = vmatprep.subr.mxu0 0.0
        %670 = vmatpush1.msra.mxu0 0.0
        %671 = vmatprep.subr.mxu0 0.0
        %672 = vmatpush1.msra.mxu0 %v633
        %673 = vmatprep.subr.mxu0 0.0
        %674 = vmatpush1.msra.mxu0 %v632
        %675 = vmatprep.subr.mxu0 0.0
        %676 = vmatpush1.msra.mxu0 %v631
        %677 = vmatprep.subr.mxu0 0.0
        %678 = vmatpush1.msra.mxu0 %v630
        %679 = vmatprep.subr.mxu0 0.0
        %680 = vmatpush2.msra.mxu0 0.0
        %681 = vmatprep.subr.mxu0 0.0
        %682 = vmatpush2.msra.mxu0 0.0
        %683 = vmatprep.subr.mxu0 0.0
        %684 = vmatpush2.msra.mxu0 0.0
        %685 = vmatprep.subr.mxu0 0.0
        %686 = vmatpush2.msra.mxu0 0.0
        %687 = vmatprep.subr.mxu0 0.0
        %688 = vmatpush2.msra.mxu0 0.0
        %689 = vmatprep.subr.mxu0 0.0
        %690 = vmatpush2.msra.mxu0 0.0
        %691 = vmatprep.subr.mxu0 0.0
        %692 = vmatpush2.msra.mxu0 0.0
        %693 = vmatprep.subr.mxu0 0.0
        %694 = vmatpush2.msra.mxu0 0.0
        %695 = vmatprep.subr.mxu0 0.0
        %696 = vmatpush2.msra.mxu0 0.0
        %697 = vmatprep.subr.mxu0 0.0
        %698 = vmatpush2.msra.mxu0 0.0
        %699 = vmatprep.subr.mxu0 0.0
        %700 = vmatpush2.msra.mxu0 0.0
        %701 = vmatprep.subr.mxu0 0.0
        %702 = vmatpush2.msra.mxu0 0.0
        %703 = vmatprep.subr.mxu0 0.0
        %704 = vmatpush2.msra.mxu0 0.0
        %705 = vmatprep.subr.mxu0 0.0
        %706 = vmatpush2.msra.mxu0 0.0
        %707 = vmatprep.subr.mxu0 0.0
        %708 = vmatpush2.msra.mxu0 0.0
        %709 = vmatprep.subr.mxu0 0.0
        %710 = vmatpush2.msra.mxu0 0.0
        %711 = vmatprep.mubr.f32.mxu0 0.0
        %712 = vmatmul.mubr.f32.gmra.mxu0 %v639
        %v713 = vpop.f32.mrf.mxu0
        %v714 = vadd.f32 %v634, %v713
        %v715 = vpop.f32.mrf.mxu0
        %716 = vmatprep.mubr.f32.mxu0 0.0
        %717 = vmatmul.mubr.f32.gmra.mxu0 %v642
        %v718 = vpop.f32.mrf.mxu0
        %v719 = vadd.f32 %v635, %v718
        %v720 = vpop.f32.mrf.mxu0
        %721 = vmatprep.mubr.f32.mxu0 0.0
        %722 = vmatmul.mubr.f32.gmra.mxu0 %v645
        %v723 = vpop.f32.mrf.mxu0
        %v724 = vadd.f32 %v636, %v723
        %v725 = vpop.f32.mrf.mxu0
        %726 = vdwg.mxu0
        %v727 = vld [vmem:[%s3] sm:$0xff]
        %v728 = vld [vmem:[%s3 + $0x8] sm:$0xff]
        %v729 = vld [vmem:[%s3 + $0x10] sm:$0xff]
        %v730 = vld [vmem:[%s3 + $0x18] sm:$0xff]
        %734 = vrot.lane.b32.xlu0 %v714, 96
        %v735 = vpop.permute.xlu0 %734
        %736 = vrot.lane.b32.xlu0 %v719, 96
        %v737 = vpop.permute.xlu0 %736
        %738 = vrot.lane.b32.xlu0 %v724, 96
        %v739 = vpop.permute.xlu0 %738
        %vm740 = vcmask 64512
        %v741 = vsel %vm740, %v714, 0
        %v743 = vsel %vm740, %v719, 0
        %v745 = vsel %vm740, %v724, 0
        %v747 = vsel %vm740, %v735, 0
        %v749 = vsel %vm740, %v737, 0
        %v751 = vsel %vm740, %v739, 0
        %753 = vmatprep.subr.mxu0 0.0
        %754 = vmatpush1.xpose.msra.mxu0 0.0
        %755 = vmatprep.subr.mxu0 0.0
        %756 = vmatpush1.xpose.msra.mxu0 0.0
        %757 = vmatprep.subr.mxu0 0.0
        %758 = vmatpush1.xpose.msra.mxu0 0.0
        %759 = vmatprep.subr.mxu0 0.0
        %760 = vmatpush1.xpose.msra.mxu0 0.0
        %761 = vmatprep.subr.mxu0 0.0
        %762 = vmatpush1.xpose.msra.mxu0 0.0
        %763 = vmatprep.subr.mxu0 0.0
        %764 = vmatpush1.xpose.msra.mxu0 0.0
        %765 = vmatprep.subr.mxu0 0.0
        %766 = vmatpush1.xpose.msra.mxu0 0.0
        %767 = vmatprep.subr.mxu0 0.0
        %768 = vmatpush1.xpose.msra.mxu0 0.0
        %769 = vmatprep.subr.mxu0 0.0
        %770 = vmatpush1.xpose.msra.mxu0 0.0
        %771 = vmatprep.subr.mxu0 0.0
        %772 = vmatpush1.xpose.msra.mxu0 0.0
        %773 = vmatprep.subr.mxu0 0.0
        %774 = vmatpush1.xpose.msra.mxu0 0.0
        %775 = vmatprep.subr.mxu0 0.0
        %776 = vmatpush1.xpose.msra.mxu0 0.0
        %777 = vmatprep.subr.mxu0 0.0
        %778 = vmatpush1.xpose.msra.mxu0 0.0
        %779 = vmatprep.subr.mxu0 0.0
        %780 = vmatpush1.xpose.msra.mxu0 %v751
        %781 = vmatprep.subr.mxu0 0.0
        %782 = vmatpush1.xpose.msra.mxu0 %v749
        %783 = vmatprep.subr.mxu0 0.0
        %784 = vmatpush1.xpose.msra.mxu0 %v747
        %785 = vmatprep.subr.mxu0 0.0
        %786 = vmatpush2.xpose.msra.mxu0 0.0
        %787 = vmatprep.subr.mxu0 0.0
        %788 = vmatpush2.xpose.msra.mxu0 0.0
        %789 = vmatprep.subr.mxu0 0.0
        %790 = vmatpush2.xpose.msra.mxu0 0.0
        %791 = vmatprep.subr.mxu0 0.0
        %792 = vmatpush2.xpose.msra.mxu0 0.0
        %793 = vmatprep.subr.mxu0 0.0
        %794 = vmatpush2.xpose.msra.mxu0 0.0
        %795 = vmatprep.subr.mxu0 0.0
        %796 = vmatpush2.xpose.msra.mxu0 0.0
        %797 = vmatprep.subr.mxu0 0.0
        %798 = vmatpush2.xpose.msra.mxu0 0.0
        %799 = vmatprep.subr.mxu0 0.0
        %800 = vmatpush2.xpose.msra.mxu0 0.0
        %801 = vmatprep.subr.mxu0 0.0
        %802 = vmatpush2.xpose.msra.mxu0 0.0
        %803 = vmatprep.subr.mxu0 0.0
        %804 = vmatpush2.xpose.msra.mxu0 0.0
        %805 = vmatprep.subr.mxu0 0.0
        %806 = vmatpush2.xpose.msra.mxu0 0.0
        %807 = vmatprep.subr.mxu0 0.0
        %808 = vmatpush2.xpose.msra.mxu0 0.0
        %809 = vmatprep.subr.mxu0 0.0
        %810 = vmatpush2.xpose.msra.mxu0 0.0
        %811 = vmatprep.subr.mxu0 0.0
        %812 = vmatpush2.xpose.msra.mxu0 0.0
        %813 = vmatprep.subr.mxu0 0.0
        %814 = vmatpush2.xpose.msra.mxu0 0.0
        %815 = vmatprep.subr.mxu0 0.0
        %816 = vmatpush2.xpose.msra.mxu0 0.0
        %817 = vmatprep.mubr.f32.mxu0 0.0
        %818 = vmatmul.mubr.f32.gmra.mxu0 %v741
        %v819 = vpop.f32.mrf.mxu0
        %v820 = vadd.f32 0.0, %v819
        %v821 = vpop.f32.mrf.mxu0
        %822 = vmatprep.mubr.f32.mxu0 0.0
        %823 = vmatmul.mubr.f32.gmra.mxu0 %v743
        %v824 = vpop.f32.mrf.mxu0
        %v825 = vadd.f32 0.0, %v824
        %v826 = vpop.f32.mrf.mxu0
        %827 = vmatprep.mubr.f32.mxu0 0.0
        %828 = vmatmul.mubr.f32.gmra.mxu0 %v745
        %v829 = vpop.f32.mrf.mxu0
        %v830 = vadd.f32 0.0, %v829
        %v831 = vpop.f32.mrf.mxu0
        %832 = vdwg.mxu0
        %v833 = vmul.f32 %v820, 0.35355338
        %v834 = vmul.f32 %v825, 0.35355338
        %v835 = vmul.f32 %v830, 0.35355338
        %vm836 = vcmask 138240
        %v837 = vsel %vm836, %v833, -inf
        %838 = vmax.xlane.f32.xlu0 %v837
        %v839 = vpop.xlane.xlu0 %838
        %v840 = vsel %vm836, %v834, -inf
        %841 = vmax.xlane.f32.xlu0 %v840
        %v842 = vpop.xlane.xlu0 %841
        %vm843 = vcmask 131072
        %v844 = vsel %vm843, %v835, -inf
        %845 = vmax.xlane.f32.xlu0 %v844
        %v846 = vpop.xlane.xlu0 %845
        %v847 = vsub.f32 %v833, %v839
        %v848 = vsub.f32 %v834, %v842
        %v849 = vsub.f32 %v835, %v846
        %v850 = vmul.f32 %v847, 1.442695
        %v851 = vpow.pop %v850
        %v852 = vmul.f32 %v848, 1.442695
        %v853 = vpow.pop %v852
        %v854 = vmul.f32 %v849, 1.442695
        %v855 = vpow.pop %v854
        %v856 = vsel %vm836, %v851, 0.0
        %857 = vadd.xlane.f32.xlu0 %v856
        %v858 = vpop.xlane.xlu0 %857
        %v859 = vsel %vm836, %v853, 0.0
        %860 = vadd.xlane.f32.xlu0 %v859
        %v861 = vpop.xlane.xlu0 %860
        %v862 = vsel %vm843, %v855, 0.0
        %863 = vadd.xlane.f32.xlu0 %v862
        %v864 = vpop.xlane.xlu0 %863
        %v865 = vrcp.pop %v858
        %v866 = vrcp.pop %v861
        %v867 = vrcp.pop %v864
        %v868 = vmul.f32 %v851, %v865
        %v869 = vmul.f32 %v853, %v866
        %v870 = vmul.f32 %v855, %v867
        %871 = vrot.lane.b32.xlu0 %v714, 64
        %v872 = vpop.permute.xlu0 %871
        %873 = vrot.lane.b32.xlu0 %v719, 64
        %v874 = vpop.permute.xlu0 %873
        %875 = vrot.lane.b32.xlu0 %v724, 64
        %v876 = vpop.permute.xlu0 %875
        %v880 = vsel %vm836, %v868, 0
        %v883 = vsel %vm836, %v869, 0
        %v886 = vsel %vm836, %v870, 0
        %vm888 = vcmask 1040384
        %v889 = vsel %vm888, %v876, 0
        %891 = vmatprep.subr.mxu0 0.0
        %892 = vmatpush1.msra.mxu0 0.0
        %893 = vmatprep.subr.mxu0 0.0
        %894 = vmatpush1.msra.mxu0 0.0
        %895 = vmatprep.subr.mxu0 0.0
        %896 = vmatpush1.msra.mxu0 0.0
        %897 = vmatprep.subr.mxu0 0.0
        %898 = vmatpush1.msra.mxu0 0.0
        %899 = vmatprep.subr.mxu0 0.0
        %900 = vmatpush1.msra.mxu0 0.0
        %901 = vmatprep.subr.mxu0 0.0
        %902 = vmatpush1.msra.mxu0 0.0
        %903 = vmatprep.subr.mxu0 0.0
        %904 = vmatpush1.msra.mxu0 0.0
        %905 = vmatprep.subr.mxu0 0.0
        %906 = vmatpush1.msra.mxu0 0.0
        %907 = vmatprep.subr.mxu0 0.0
        %908 = vmatpush1.msra.mxu0 0.0
        %909 = vmatprep.subr.mxu0 0.0
        %910 = vmatpush1.msra.mxu0 0.0
        %911 = vmatprep.subr.mxu0 0.0
        %912 = vmatpush1.msra.mxu0 0.0
        %913 = vmatprep.subr.mxu0 0.0
        %914 = vmatpush1.msra.mxu0 0.0
        %915 = vmatprep.subr.mxu0 0.0
        %916 = vmatpush1.msra.mxu0 0.0
        %917 = vmatprep.subr.mxu0 0.0
        %918 = vmatpush1.msra.mxu0 %v889
        %919 = vmatprep.subr.mxu0 0.0
        %920 = vmatpush1.msra.mxu0 %v874
        %921 = vmatprep.subr.mxu0 0.0
        %922 = vmatpush1.msra.mxu0 %v872
        %923 = vmatprep.subr.mxu0 0.0
        %924 = vmatpush2.msra.mxu0 0.0
        %925 = vmatprep.subr.mxu0 0.0
        %926 = vmatpush2.msra.mxu0 0.0
        %927 = vmatprep.subr.mxu0 0.0
        %928 = vmatpush2.msra.mxu0 0.0
        %929 = vmatprep.subr.mxu0 0.0
        %930 = vmatpush2.msra.mxu0 0.0
        %931 = vmatprep.subr.mxu0 0.0
        %932 = vmatpush2.msra.mxu0 0.0
        %933 = vmatprep.subr.mxu0 0.0
        %934 = vmatpush2.msra.mxu0 0.0
        %935 = vmatprep.subr.mxu0 0.0
        %936 = vmatpush2.msra.mxu0 0.0
        %937 = vmatprep.subr.mxu0 0.0
        %938 = vmatpush2.msra.mxu0 0.0
        %939 = vmatprep.subr.mxu0 0.0
        %940 = vmatpush2.msra.mxu0 0.0
        %941 = vmatprep.subr.mxu0 0.0
        %942 = vmatpush2.msra.mxu0 0.0
        %943 = vmatprep.subr.mxu0 0.0
        %944 = vmatpush2.msra.mxu0 0.0
        %945 = vmatprep.subr.mxu0 0.0
        %946 = vmatpush2.msra.mxu0 0.0
        %947 = vmatprep.subr.mxu0 0.0
        %948 = vmatpush2.msra.mxu0 0.0
        %949 = vmatprep.subr.mxu0 0.0
        %950 = vmatpush2.msra.mxu0 0.0
        %951 = vmatprep.subr.mxu0 0.0
        %952 = vmatpush2.msra.mxu0 0.0
        %953 = vmatprep.subr.mxu0 0.0
        %954 = vmatpush2.msra.mxu0 0.0
        %955 = vmatprep.mubr.f32.mxu0 0.0
        %956 = vmatmul.mubr.f32.gmra.mxu0 %v880
        %v957 = vpop.f32.mrf.mxu0
        %v958 = vadd.f32 0.0, %v957
        %v959 = vpop.f32.mrf.mxu0
        %960 = vmatprep.mubr.f32.mxu0 0.0
        %961 = vmatmul.mubr.f32.gmra.mxu0 %v883
        %v962 = vpop.f32.mrf.mxu0
        %v963 = vadd.f32 0.0, %v962
        %v964 = vpop.f32.mrf.mxu0
        %965 = vmatprep.mubr.f32.mxu0 0.0
        %966 = vmatmul.mubr.f32.gmra.mxu0 %v886
        %v967 = vpop.f32.mrf.mxu0
        %v968 = vadd.f32 0.0, %v967
        %v969 = vpop.f32.mrf.mxu0
        %970 = vdwg.mxu0
        %971 = vrot.lane.b32.xlu0 %v714, 120
        %v972 = vpop.permute.xlu0 %971
        %973 = vrot.lane.b32.xlu0 %v719, 120
        %v974 = vpop.permute.xlu0 %973
        %975 = vrot.lane.b32.xlu0 %v724, 120
        %v976 = vpop.permute.xlu0 %975
        %977 = vrot.lane.b32.xlu0 %v714, 88
        %v978 = vpop.permute.xlu0 %977
        %979 = vrot.lane.b32.xlu0 %v719, 88
        %v980 = vpop.permute.xlu0 %979
        %981 = vrot.lane.b32.xlu0 %v724, 88
        %v982 = vpop.permute.xlu0 %981
        %v983 = vsel %vm740, %v972, 0
        %v985 = vsel %vm740, %v974, 0
        %v987 = vsel %vm740, %v976, 0
        %v989 = vsel %vm740, %v978, 0
        %v991 = vsel %vm740, %v980, 0
        %v993 = vsel %vm740, %v982, 0
        %995 = vmatprep.subr.mxu0 0.0
        %996 = vmatpush1.xpose.msra.mxu0 0.0
        %997 = vmatprep.subr.mxu0 0.0
        %998 = vmatpush1.xpose.msra.mxu0 0.0
        %999 = vmatprep.subr.mxu0 0.0
        %1000 = vmatpush1.xpose.msra.mxu0 0.0
        %1001 = vmatprep.subr.mxu0 0.0
        %1002 = vmatpush1.xpose.msra.mxu0 0.0
        %1003 = vmatprep.subr.mxu0 0.0
        %1004 = vmatpush1.xpose.msra.mxu0 0.0
        %1005 = vmatprep.subr.mxu0 0.0
        %1006 = vmatpush1.xpose.msra.mxu0 0.0
        %1007 = vmatprep.subr.mxu0 0.0
        %1008 = vmatpush1.xpose.msra.mxu0 0.0
        %1009 = vmatprep.subr.mxu0 0.0
        %1010 = vmatpush1.xpose.msra.mxu0 0.0
        %1011 = vmatprep.subr.mxu0 0.0
        %1012 = vmatpush1.xpose.msra.mxu0 0.0
        %1013 = vmatprep.subr.mxu0 0.0
        %1014 = vmatpush1.xpose.msra.mxu0 0.0
        %1015 = vmatprep.subr.mxu0 0.0
        %1016 = vmatpush1.xpose.msra.mxu0 0.0
        %1017 = vmatprep.subr.mxu0 0.0
        %1018 = vmatpush1.xpose.msra.mxu0 0.0
        %1019 = vmatprep.subr.mxu0 0.0
        %1020 = vmatpush1.xpose.msra.mxu0 0.0
        %1021 = vmatprep.subr.mxu0 0.0
        %1022 = vmatpush1.xpose.msra.mxu0 %v993
        %1023 = vmatprep.subr.mxu0 0.0
        %1024 = vmatpush1.xpose.msra.mxu0 %v991
        %1025 = vmatprep.subr.mxu0 0.0
        %1026 = vmatpush1.xpose.msra.mxu0 %v989
        %1027 = vmatprep.subr.mxu0 0.0
        %1028 = vmatpush2.xpose.msra.mxu0 0.0
        %1029 = vmatprep.subr.mxu0 0.0
        %1030 = vmatpush2.xpose.msra.mxu0 0.0
        %1031 = vmatprep.subr.mxu0 0.0
        %1032 = vmatpush2.xpose.msra.mxu0 0.0
        %1033 = vmatprep.subr.mxu0 0.0
        %1034 = vmatpush2.xpose.msra.mxu0 0.0
        %1035 = vmatprep.subr.mxu0 0.0
        %1036 = vmatpush2.xpose.msra.mxu0 0.0
        %1037 = vmatprep.subr.mxu0 0.0
        %1038 = vmatpush2.xpose.msra.mxu0 0.0
        %1039 = vmatprep.subr.mxu0 0.0
        %1040 = vmatpush2.xpose.msra.mxu0 0.0
        %1041 = vmatprep.subr.mxu0 0.0
        %1042 = vmatpush2.xpose.msra.mxu0 0.0
        %1043 = vmatprep.subr.mxu0 0.0
        %1044 = vmatpush2.xpose.msra.mxu0 0.0
        %1045 = vmatprep.subr.mxu0 0.0
        %1046 = vmatpush2.xpose.msra.mxu0 0.0
        %1047 = vmatprep.subr.mxu0 0.0
        %1048 = vmatpush2.xpose.msra.mxu0 0.0
        %1049 = vmatprep.subr.mxu0 0.0
        %1050 = vmatpush2.xpose.msra.mxu0 0.0
        %1051 = vmatprep.subr.mxu0 0.0
        %1052 = vmatpush2.xpose.msra.mxu0 0.0
        %1053 = vmatprep.subr.mxu0 0.0
        %1054 = vmatpush2.xpose.msra.mxu0 0.0
        %1055 = vmatprep.subr.mxu0 0.0
        %1056 = vmatpush2.xpose.msra.mxu0 0.0
        %1057 = vmatprep.subr.mxu0 0.0
        %1058 = vmatpush2.xpose.msra.mxu0 0.0
        %1059 = vmatprep.mubr.f32.mxu0 0.0
        %1060 = vmatmul.mubr.f32.gmra.mxu0 %v983
        %v1061 = vpop.f32.mrf.mxu0
        %v1062 = vadd.f32 0.0, %v1061
        %v1063 = vpop.f32.mrf.mxu0
        %1064 = vmatprep.mubr.f32.mxu0 0.0
        %1065 = vmatmul.mubr.f32.gmra.mxu0 %v985
        %v1066 = vpop.f32.mrf.mxu0
        %v1067 = vadd.f32 0.0, %v1066
        %v1068 = vpop.f32.mrf.mxu0
        %1069 = vmatprep.mubr.f32.mxu0 0.0
        %1070 = vmatmul.mubr.f32.gmra.mxu0 %v987
        %v1071 = vpop.f32.mrf.mxu0
        %v1072 = vadd.f32 0.0, %v1071
        %v1073 = vpop.f32.mrf.mxu0
        %1074 = vdwg.mxu0
        %v1075 = vmul.f32 %v1062, 0.35355338
        %v1076 = vmul.f32 %v1067, 0.35355338
        %v1077 = vmul.f32 %v1072, 0.35355338
        %v1078 = vsel %vm836, %v1075, -inf
        %1079 = vmax.xlane.f32.xlu0 %v1078
        %v1080 = vpop.xlane.xlu0 %1079
        %v1081 = vsel %vm836, %v1076, -inf
        %1082 = vmax.xlane.f32.xlu0 %v1081
        %v1083 = vpop.xlane.xlu0 %1082
        %v1084 = vsel %vm843, %v1077, -inf
        %1085 = vmax.xlane.f32.xlu0 %v1084
        %v1086 = vpop.xlane.xlu0 %1085
        %v1087 = vsub.f32 %v1075, %v1080
        %v1088 = vsub.f32 %v1076, %v1083
        %v1089 = vsub.f32 %v1077, %v1086
        %v1090 = vmul.f32 %v1087, 1.442695
        %v1091 = vpow.pop %v1090
        %v1092 = vmul.f32 %v1088, 1.442695
        %v1093 = vpow.pop %v1092
        %v1094 = vmul.f32 %v1089, 1.442695
        %v1095 = vpow.pop %v1094
        %v1096 = vsel %vm836, %v1091, 0.0
        %1097 = vadd.xlane.f32.xlu0 %v1096
        %v1098 = vpop.xlane.xlu0 %1097
        %v1099 = vsel %vm836, %v1093, 0.0
        %1100 = vadd.xlane.f32.xlu0 %v1099
        %v1101 = vpop.xlane.xlu0 %1100
        %v1102 = vsel %vm843, %v1095, 0.0
        %1103 = vadd.xlane.f32.xlu0 %v1102
        %v1104 = vpop.xlane.xlu0 %1103
        %v1105 = vrcp.pop %v1098
        %v1106 = vrcp.pop %v1101
        %v1107 = vrcp.pop %v1104
        %v1108 = vmul.f32 %v1091, %v1105
        %v1109 = vmul.f32 %v1093, %v1106
        %v1110 = vmul.f32 %v1095, %v1107
        %1111 = vrot.lane.b32.xlu0 %v714, 56
        %v1112 = vpop.permute.xlu0 %1111
        %1113 = vrot.lane.b32.xlu0 %v719, 56
        %v1114 = vpop.permute.xlu0 %1113
        %1115 = vrot.lane.b32.xlu0 %v724, 56
        %v1116 = vpop.permute.xlu0 %1115
        %v1120 = vsel %vm836, %v1108, 0
        %v1123 = vsel %vm836, %v1109, 0
        %v1126 = vsel %vm836, %v1110, 0
        %v1128 = vsel %vm888, %v1116, 0
        %1130 = vmatprep.subr.mxu0 0.0
        %1131 = vmatpush1.msra.mxu0 0.0
        %1132 = vmatprep.subr.mxu0 0.0
        %1133 = vmatpush1.msra.mxu0 0.0
        %1134 = vmatprep.subr.mxu0 0.0
        %1135 = vmatpush1.msra.mxu0 0.0
        %1136 = vmatprep.subr.mxu0 0.0
        %1137 = vmatpush1.msra.mxu0 0.0
        %1138 = vmatprep.subr.mxu0 0.0
        %1139 = vmatpush1.msra.mxu0 0.0
        %1140 = vmatprep.subr.mxu0 0.0
        %1141 = vmatpush1.msra.mxu0 0.0
        %1142 = vmatprep.subr.mxu0 0.0
        %1143 = vmatpush1.msra.mxu0 0.0
        %1144 = vmatprep.subr.mxu0 0.0
        %1145 = vmatpush1.msra.mxu0 0.0
        %1146 = vmatprep.subr.mxu0 0.0
        %1147 = vmatpush1.msra.mxu0 0.0
        %1148 = vmatprep.subr.mxu0 0.0
        %1149 = vmatpush1.msra.mxu0 0.0
        %1150 = vmatprep.subr.mxu0 0.0
        %1151 = vmatpush1.msra.mxu0 0.0
        %1152 = vmatprep.subr.mxu0 0.0
        %1153 = vmatpush1.msra.mxu0 0.0
        %1154 = vmatprep.subr.mxu0 0.0
        %1155 = vmatpush1.msra.mxu0 0.0
        %1156 = vmatprep.subr.mxu0 0.0
        %1157 = vmatpush1.msra.mxu0 %v1128
        %1158 = vmatprep.subr.mxu0 0.0
        %1159 = vmatpush1.msra.mxu0 %v1114
        %1160 = vmatprep.subr.mxu0 0.0
        %1161 = vmatpush1.msra.mxu0 %v1112
        %1162 = vmatprep.subr.mxu0 0.0
        %1163 = vmatpush2.msra.mxu0 0.0
        %1164 = vmatprep.subr.mxu0 0.0
        %1165 = vmatpush2.msra.mxu0 0.0
        %1166 = vmatprep.subr.mxu0 0.0
        %1167 = vmatpush2.msra.mxu0 0.0
        %1168 = vmatprep.subr.mxu0 0.0
        %1169 = vmatpush2.msra.mxu0 0.0
        %1170 = vmatprep.subr.mxu0 0.0
        %1171 = vmatpush2.msra.mxu0 0.0
        %1172 = vmatprep.subr.mxu0 0.0
        %1173 = vmatpush2.msra.mxu0 0.0
        %1174 = vmatprep.subr.mxu0 0.0
        %1175 = vmatpush2.msra.mxu0 0.0
        %1176 = vmatprep.subr.mxu0 0.0
        %1177 = vmatpush2.msra.mxu0 0.0
        %1178 = vmatprep.subr.mxu0 0.0
        %1179 = vmatpush2.msra.mxu0 0.0
        %1180 = vmatprep.subr.mxu0 0.0
        %1181 = vmatpush2.msra.mxu0 0.0
        %1182 = vmatprep.subr.mxu0 0.0
        %1183 = vmatpush2.msra.mxu0 0.0
        %1184 = vmatprep.subr.mxu0 0.0
        %1185 = vmatpush2.msra.mxu0 0.0
        %1186 = vmatprep.subr.mxu0 0.0
        %1187 = vmatpush2.msra.mxu0 0.0
        %1188 = vmatprep.subr.mxu0 0.0
        %1189 = vmatpush2.msra.mxu0 0.0
        %1190 = vmatprep.subr.mxu0 0.0
        %1191 = vmatpush2.msra.mxu0 0.0
        %1192 = vmatprep.subr.mxu0 0.0
        %1193 = vmatpush2.msra.mxu0 0.0
        %1194 = vmatprep.mubr.f32.mxu0 0.0
        %1195 = vmatmul.mubr.f32.gmra.mxu0 %v1120
        %v1196 = vpop.f32.mrf.mxu0
        %v1197 = vadd.f32 0.0, %v1196
        %v1198 = vpop.f32.mrf.mxu0
        %1199 = vmatprep.mubr.f32.mxu0 0.0
        %1200 = vmatmul.mubr.f32.gmra.mxu0 %v1123
        %v1201 = vpop.f32.mrf.mxu0
        %v1202 = vadd.f32 0.0, %v1201
        %v1203 = vpop.f32.mrf.mxu0
        %1204 = vmatprep.mubr.f32.mxu0 0.0
        %1205 = vmatmul.mubr.f32.gmra.mxu0 %v1126
        %v1206 = vpop.f32.mrf.mxu0
        %v1207 = vadd.f32 0.0, %v1206
        %v1208 = vpop.f32.mrf.mxu0
        %1209 = vdwg.mxu0
        %v1211 = vsel %vm740, %v1197, 0
        %v1214 = vsel %vm740, %v1202, 0
        %v1217 = vsel %vm740, %v1207, 0
        %1219 = vmatprep.subr.mxu0 0.0
        %1220 = vmatpush1.msra.mxu0 0.0
        %1221 = vmatprep.subr.mxu0 0.0
        %1222 = vmatpush1.msra.mxu0 0.0
        %1223 = vmatprep.subr.mxu0 0.0
        %1224 = vmatpush1.msra.mxu0 0.0
        %1225 = vmatprep.subr.mxu0 0.0
        %1226 = vmatpush1.msra.mxu0 0.0
        %1227 = vmatprep.subr.mxu0 0.0
        %1228 = vmatpush1.msra.mxu0 0.0
        %1229 = vmatprep.subr.mxu0 0.0
        %1230 = vmatpush1.msra.mxu0 0.0
        %1231 = vmatprep.subr.mxu0 0.0
        %1232 = vmatpush1.msra.mxu0 0.0
        %1233 = vmatprep.subr.mxu0 0.0
        %1234 = vmatpush1.msra.mxu0 0.0
        %1235 = vmatprep.subr.mxu0 0.0
        %1236 = vmatpush1.msra.mxu0 0.0
        %1237 = vmatprep.subr.mxu0 0.0
        %1238 = vmatpush1.msra.mxu0 0.0
        %1239 = vmatprep.subr.mxu0 0.0
        %1240 = vmatpush1.msra.mxu0 0.0
        %1241 = vmatprep.subr.mxu0 0.0
        %1242 = vmatpush1.msra.mxu0 0.0
        %1243 = vmatprep.subr.mxu0 0.0
        %1244 = vmatpush1.msra.mxu0 0.0
        %1245 = vmatprep.subr.mxu0 0.0
        %1246 = vmatpush1.msra.mxu0 0.0
        %1247 = vmatprep.subr.mxu0 0.0
        %1248 = vmatpush1.msra.mxu0 0.0
        %1249 = vmatprep.subr.mxu0 0.0
        %1250 = vmatpush1.msra.mxu0 %v728
        %1251 = vmatprep.subr.mxu0 0.0
        %1252 = vmatpush2.msra.mxu0 0.0
        %1253 = vmatprep.subr.mxu0 0.0
        %1254 = vmatpush2.msra.mxu0 0.0
        %1255 = vmatprep.subr.mxu0 0.0
        %1256 = vmatpush2.msra.mxu0 0.0
        %1257 = vmatprep.subr.mxu0 0.0
        %1258 = vmatpush2.msra.mxu0 0.0
        %1259 = vmatprep.subr.mxu0 0.0
        %1260 = vmatpush2.msra.mxu0 0.0
        %1261 = vmatprep.subr.mxu0 0.0
        %1262 = vmatpush2.msra.mxu0 0.0
        %1263 = vmatprep.subr.mxu0 0.0
        %1264 = vmatpush2.msra.mxu0 0.0
        %1265 = vmatprep.subr.mxu0 0.0
        %1266 = vmatpush2.msra.mxu0 0.0
        %1267 = vmatprep.subr.mxu0 0.0
        %1268 = vmatpush2.msra.mxu0 0.0
        %1269 = vmatprep.subr.mxu0 0.0
        %1270 = vmatpush2.msra.mxu0 0.0
        %1271 = vmatprep.subr.mxu0 0.0
        %1272 = vmatpush2.msra.mxu0 0.0
        %1273 = vmatprep.subr.mxu0 0.0
        %1274 = vmatpush2.msra.mxu0 0.0
        %1275 = vmatprep.subr.mxu0 0.0
        %1276 = vmatpush2.msra.mxu0 0.0
        %1277 = vmatprep.subr.mxu0 0.0
        %1278 = vmatpush2.msra.mxu0 0.0
        %1279 = vmatprep.subr.mxu0 0.0
        %1280 = vmatpush2.msra.mxu0 0.0
        %1281 = vmatprep.subr.mxu0 0.0
        %1282 = vmatpush2.msra.mxu0 0.0
        %1283 = vmatprep.mubr.f32.mxu0 0.0
        %1284 = vmatmul.mubr.f32.gmra.mxu0 %v1211
        %v1285 = vpop.f32.mrf.mxu0
        %v1286 = vadd.f32 0.0, %v1285
        %v1287 = vpop.f32.mrf.mxu0
        %1288 = vmatprep.mubr.f32.mxu0 0.0
        %1289 = vmatmul.mubr.f32.gmra.mxu0 %v1214
        %v1290 = vpop.f32.mrf.mxu0
        %v1291 = vadd.f32 0.0, %v1290
        %v1292 = vpop.f32.mrf.mxu0
        %1293 = vmatprep.mubr.f32.mxu0 0.0
        %1294 = vmatmul.mubr.f32.gmra.mxu0 %v1217
        %v1295 = vpop.f32.mrf.mxu0
        %v1296 = vadd.f32 0.0, %v1295
        %v1297 = vpop.f32.mrf.mxu0
        %1298 = vdwg.mxu0
        %v1300 = vsel %vm740, %v958, 0
        %v1303 = vsel %vm740, %v963, 0
        %v1306 = vsel %vm740, %v968, 0
        %1308 = vmatprep.subr.mxu0 0.0
        %1309 = vmatpush1.msra.mxu0 0.0
        %1310 = vmatprep.subr.mxu0 0.0
        %1311 = vmatpush1.msra.mxu0 0.0
        %1312 = vmatprep.subr.mxu0 0.0
        %1313 = vmatpush1.msra.mxu0 0.0
        %1314 = vmatprep.subr.mxu0 0.0
        %1315 = vmatpush1.msra.mxu0 0.0
        %1316 = vmatprep.subr.mxu0 0.0
        %1317 = vmatpush1.msra.mxu0 0.0
        %1318 = vmatprep.subr.mxu0 0.0
        %1319 = vmatpush1.msra.mxu0 0.0
        %1320 = vmatprep.subr.mxu0 0.0
        %1321 = vmatpush1.msra.mxu0 0.0
        %1322 = vmatprep.subr.mxu0 0.0
        %1323 = vmatpush1.msra.mxu0 0.0
        %1324 = vmatprep.subr.mxu0 0.0
        %1325 = vmatpush1.msra.mxu0 0.0
        %1326 = vmatprep.subr.mxu0 0.0
        %1327 = vmatpush1.msra.mxu0 0.0
        %1328 = vmatprep.subr.mxu0 0.0
        %1329 = vmatpush1.msra.mxu0 0.0
        %1330 = vmatprep.subr.mxu0 0.0
        %1331 = vmatpush1.msra.mxu0 0.0
        %1332 = vmatprep.subr.mxu0 0.0
        %1333 = vmatpush1.msra.mxu0 0.0
        %1334 = vmatprep.subr.mxu0 0.0
        %1335 = vmatpush1.msra.mxu0 0.0
        %1336 = vmatprep.subr.mxu0 0.0
        %1337 = vmatpush1.msra.mxu0 0.0
        %1338 = vmatprep.subr.mxu0 0.0
        %1339 = vmatpush1.msra.mxu0 %v727
        %1340 = vmatprep.subr.mxu0 0.0
        %1341 = vmatpush2.msra.mxu0 0.0
        %1342 = vmatprep.subr.mxu0 0.0
        %1343 = vmatpush2.msra.mxu0 0.0
        %1344 = vmatprep.subr.mxu0 0.0
        %1345 = vmatpush2.msra.mxu0 0.0
        %1346 = vmatprep.subr.mxu0 0.0
        %1347 = vmatpush2.msra.mxu0 0.0
        %1348 = vmatprep.subr.mxu0 0.0
        %1349 = vmatpush2.msra.mxu0 0.0
        %1350 = vmatprep.subr.mxu0 0.0
        %1351 = vmatpush2.msra.mxu0 0.0
        %1352 = vmatprep.subr.mxu0 0.0
        %1353 = vmatpush2.msra.mxu0 0.0
        %1354 = vmatprep.subr.mxu0 0.0
        %1355 = vmatpush2.msra.mxu0 0.0
        %1356 = vmatprep.subr.mxu0 0.0
        %1357 = vmatpush2.msra.mxu0 0.0
        %1358 = vmatprep.subr.mxu0 0.0
        %1359 = vmatpush2.msra.mxu0 0.0
        %1360 = vmatprep.subr.mxu0 0.0
        %1361 = vmatpush2.msra.mxu0 0.0
        %1362 = vmatprep.subr.mxu0 0.0
        %1363 = vmatpush2.msra.mxu0 0.0
        %1364 = vmatprep.subr.mxu0 0.0
        %1365 = vmatpush2.msra.mxu0 0.0
        %1366 = vmatprep.subr.mxu0 0.0
        %1367 = vmatpush2.msra.mxu0 0.0
        %1368 = vmatprep.subr.mxu0 0.0
        %1369 = vmatpush2.msra.mxu0 0.0
        %1370 = vmatprep.subr.mxu0 0.0
        %1371 = vmatpush2.msra.mxu0 0.0
        %1372 = vmatprep.mubr.f32.mxu0 0.0
        %1373 = vmatmul.mubr.f32.gmra.mxu0 %v1300
        %v1374 = vpop.f32.mrf.mxu0
        %v1375 = vadd.f32 %v1286, %v1374
        %v1376 = vpop.f32.mrf.mxu0
        %1377 = vmatprep.mubr.f32.mxu0 0.0
        %1378 = vmatmul.mubr.f32.gmra.mxu0 %v1303
        %v1379 = vpop.f32.mrf.mxu0
        %v1380 = vadd.f32 %v1291, %v1379
        %v1381 = vpop.f32.mrf.mxu0
        %1382 = vmatprep.mubr.f32.mxu0 0.0
        %1383 = vmatmul.mubr.f32.gmra.mxu0 %v1306
        %v1384 = vpop.f32.mrf.mxu0
        %v1385 = vadd.f32 %v1296, %v1384
        %v1386 = vpop.f32.mrf.mxu0
        %1387 = vdwg.mxu0
        %1388 = vrot.lane.b32.xlu0 %v714, 112
        %v1389 = vpop.permute.xlu0 %1388
        %1390 = vrot.lane.b32.xlu0 %v719, 112
        %v1391 = vpop.permute.xlu0 %1390
        %1392 = vrot.lane.b32.xlu0 %v724, 112
        %v1393 = vpop.permute.xlu0 %1392
        %1394 = vrot.lane.b32.xlu0 %v714, 80
        %v1395 = vpop.permute.xlu0 %1394
        %1396 = vrot.lane.b32.xlu0 %v719, 80
        %v1397 = vpop.permute.xlu0 %1396
        %1398 = vrot.lane.b32.xlu0 %v724, 80
        %v1399 = vpop.permute.xlu0 %1398
        %v1400 = vsel %vm740, %v1389, 0
        %v1402 = vsel %vm740, %v1391, 0
        %v1404 = vsel %vm740, %v1393, 0
        %v1406 = vsel %vm740, %v1395, 0
        %v1408 = vsel %vm740, %v1397, 0
        %v1410 = vsel %vm740, %v1399, 0
        %1412 = vmatprep.subr.mxu0 0.0
        %1413 = vmatpush1.xpose.msra.mxu0 0.0
        %1414 = vmatprep.subr.mxu0 0.0
        %1415 = vmatpush1.xpose.msra.mxu0 0.0
        %1416 = vmatprep.subr.mxu0 0.0
        %1417 = vmatpush1.xpose.msra.mxu0 0.0
        %1418 = vmatprep.subr.mxu0 0.0
        %1419 = vmatpush1.xpose.msra.mxu0 0.0
        %1420 = vmatprep.subr.mxu0 0.0
        %1421 = vmatpush1.xpose.msra.mxu0 0.0
        %1422 = vmatprep.subr.mxu0 0.0
        %1423 = vmatpush1.xpose.msra.mxu0 0.0
        %1424 = vmatprep.subr.mxu0 0.0
        %1425 = vmatpush1.xpose.msra.mxu0 0.0
        %1426 = vmatprep.subr.mxu0 0.0
        %1427 = vmatpush1.xpose.msra.mxu0 0.0
        %1428 = vmatprep.subr.mxu0 0.0
        %1429 = vmatpush1.xpose.msra.mxu0 0.0
        %1430 = vmatprep.subr.mxu0 0.0
        %1431 = vmatpush1.xpose.msra.mxu0 0.0
        %1432 = vmatprep.subr.mxu0 0.0
        %1433 = vmatpush1.xpose.msra.mxu0 0.0
        %1434 = vmatprep.subr.mxu0 0.0
        %1435 = vmatpush1.xpose.msra.mxu0 0.0
        %1436 = vmatprep.subr.mxu0 0.0
        %1437 = vmatpush1.xpose.msra.mxu0 0.0
        %1438 = vmatprep.subr.mxu0 0.0
        %1439 = vmatpush1.xpose.msra.mxu0 %v1410
        %1440 = vmatprep.subr.mxu0 0.0
        %1441 = vmatpush1.xpose.msra.mxu0 %v1408
        %1442 = vmatprep.subr.mxu0 0.0
        %1443 = vmatpush1.xpose.msra.mxu0 %v1406
        %1444 = vmatprep.subr.mxu0 0.0
        %1445 = vmatpush2.xpose.msra.mxu0 0.0
        %1446 = vmatprep.subr.mxu0 0.0
        %1447 = vmatpush2.xpose.msra.mxu0 0.0
        %1448 = vmatprep.subr.mxu0 0.0
        %1449 = vmatpush2.xpose.msra.mxu0 0.0
        %1450 = vmatprep.subr.mxu0 0.0
        %1451 = vmatpush2.xpose.msra.mxu0 0.0
        %1452 = vmatprep.subr.mxu0 0.0
        %1453 = vmatpush2.xpose.msra.mxu0 0.0
        %1454 = vmatprep.subr.mxu0 0.0
        %1455 = vmatpush2.xpose.msra.mxu0 0.0
        %1456 = vmatprep.subr.mxu0 0.0
        %1457 = vmatpush2.xpose.msra.mxu0 0.0
        %1458 = vmatprep.subr.mxu0 0.0
        %1459 = vmatpush2.xpose.msra.mxu0 0.0
        %1460 = vmatprep.subr.mxu0 0.0
        %1461 = vmatpush2.xpose.msra.mxu0 0.0
        %1462 = vmatprep.subr.mxu0 0.0
        %1463 = vmatpush2.xpose.msra.mxu0 0.0
        %1464 = vmatprep.subr.mxu0 0.0
        %1465 = vmatpush2.xpose.msra.mxu0 0.0
        %1466 = vmatprep.subr.mxu0 0.0
        %1467 = vmatpush2.xpose.msra.mxu0 0.0
        %1468 = vmatprep.subr.mxu0 0.0
        %1469 = vmatpush2.xpose.msra.mxu0 0.0
        %1470 = vmatprep.subr.mxu0 0.0
        %1471 = vmatpush2.xpose.msra.mxu0 0.0
        %1472 = vmatprep.subr.mxu0 0.0
        %1473 = vmatpush2.xpose.msra.mxu0 0.0
        %1474 = vmatprep.subr.mxu0 0.0
        %1475 = vmatpush2.xpose.msra.mxu0 0.0
        %1476 = vmatprep.mubr.f32.mxu0 0.0
        %1477 = vmatmul.mubr.f32.gmra.mxu0 %v1400
        %v1478 = vpop.f32.mrf.mxu0
        %v1479 = vadd.f32 0.0, %v1478
        %v1480 = vpop.f32.mrf.mxu0
        %1481 = vmatprep.mubr.f32.mxu0 0.0
        %1482 = vmatmul.mubr.f32.gmra.mxu0 %v1402
        %v1483 = vpop.f32.mrf.mxu0
        %v1484 = vadd.f32 0.0, %v1483
        %v1485 = vpop.f32.mrf.mxu0
        %1486 = vmatprep.mubr.f32.mxu0 0.0
        %1487 = vmatmul.mubr.f32.gmra.mxu0 %v1404
        %v1488 = vpop.f32.mrf.mxu0
        %v1489 = vadd.f32 0.0, %v1488
        %v1490 = vpop.f32.mrf.mxu0
        %1491 = vdwg.mxu0
        %v1492 = vmul.f32 %v1479, 0.35355338
        %v1493 = vmul.f32 %v1484, 0.35355338
        %v1494 = vmul.f32 %v1489, 0.35355338
        %v1495 = vsel %vm836, %v1492, -inf
        %1496 = vmax.xlane.f32.xlu0 %v1495
        %v1497 = vpop.xlane.xlu0 %1496
        %v1498 = vsel %vm836, %v1493, -inf
        %1499 = vmax.xlane.f32.xlu0 %v1498
        %v1500 = vpop.xlane.xlu0 %1499
        %v1501 = vsel %vm843, %v1494, -inf
        %1502 = vmax.xlane.f32.xlu0 %v1501
        %v1503 = vpop.xlane.xlu0 %1502
        %v1504 = vsub.f32 %v1492, %v1497
        %v1505 = vsub.f32 %v1493, %v1500
        %v1506 = vsub.f32 %v1494, %v1503
        %v1507 = vmul.f32 %v1504, 1.442695
        %v1508 = vpow.pop %v1507
        %v1509 = vmul.f32 %v1505, 1.442695
        %v1510 = vpow.pop %v1509
        %v1511 = vmul.f32 %v1506, 1.442695
        %v1512 = vpow.pop %v1511
        %v1513 = vsel %vm836, %v1508, 0.0
        %1514 = vadd.xlane.f32.xlu0 %v1513
        %v1515 = vpop.xlane.xlu0 %1514
        %v1516 = vsel %vm836, %v1510, 0.0
        %1517 = vadd.xlane.f32.xlu0 %v1516
        %v1518 = vpop.xlane.xlu0 %1517
        %v1519 = vsel %vm843, %v1512, 0.0
        %1520 = vadd.xlane.f32.xlu0 %v1519
        %v1521 = vpop.xlane.xlu0 %1520
        %v1522 = vrcp.pop %v1515
        %v1523 = vrcp.pop %v1518
        %v1524 = vrcp.pop %v1521
        %v1525 = vmul.f32 %v1508, %v1522
        %v1526 = vmul.f32 %v1510, %v1523
        %v1527 = vmul.f32 %v1512, %v1524
        %1528 = vrot.lane.b32.xlu0 %v714, 48
        %v1529 = vpop.permute.xlu0 %1528
        %1530 = vrot.lane.b32.xlu0 %v719, 48
        %v1531 = vpop.permute.xlu0 %1530
        %1532 = vrot.lane.b32.xlu0 %v724, 48
        %v1533 = vpop.permute.xlu0 %1532
        %v1537 = vsel %vm836, %v1525, 0
        %v1540 = vsel %vm836, %v1526, 0
        %v1543 = vsel %vm836, %v1527, 0
        %v1545 = vsel %vm888, %v1533, 0
        %1547 = vmatprep.subr.mxu0 0.0
        %1548 = vmatpush1.msra.mxu0 0.0
        %1549 = vmatprep.subr.mxu0 0.0
        %1550 = vmatpush1.msra.mxu0 0.0
        %1551 = vmatprep.subr.mxu0 0.0
        %1552 = vmatpush1.msra.mxu0 0.0
        %1553 = vmatprep.subr.mxu0 0.0
        %1554 = vmatpush1.msra.mxu0 0.0
        %1555 = vmatprep.subr.mxu0 0.0
        %1556 = vmatpush1.msra.mxu0 0.0
        %1557 = vmatprep.subr.mxu0 0.0
        %1558 = vmatpush1.msra.mxu0 0.0
        %1559 = vmatprep.subr.mxu0 0.0
        %1560 = vmatpush1.msra.mxu0 0.0
        %1561 = vmatprep.subr.mxu0 0.0
        %1562 = vmatpush1.msra.mxu0 0.0
        %1563 = vmatprep.subr.mxu0 0.0
        %1564 = vmatpush1.msra.mxu0 0.0
        %1565 = vmatprep.subr.mxu0 0.0
        %1566 = vmatpush1.msra.mxu0 0.0
        %1567 = vmatprep.subr.mxu0 0.0
        %1568 = vmatpush1.msra.mxu0 0.0
        %1569 = vmatprep.subr.mxu0 0.0
        %1570 = vmatpush1.msra.mxu0 0.0
        %1571 = vmatprep.subr.mxu0 0.0
        %1572 = vmatpush1.msra.mxu0 0.0
        %1573 = vmatprep.subr.mxu0 0.0
        %1574 = vmatpush1.msra.mxu0 %v1545
        %1575 = vmatprep.subr.mxu0 0.0
        %1576 = vmatpush1.msra.mxu0 %v1531
        %1577 = vmatprep.subr.mxu0 0.0
        %1578 = vmatpush1.msra.mxu0 %v1529
        %1579 = vmatprep.subr.mxu0 0.0
        %1580 = vmatpush2.msra.mxu0 0.0
        %1581 = vmatprep.subr.mxu0 0.0
        %1582 = vmatpush2.msra.mxu0 0.0
        %1583 = vmatprep.subr.mxu0 0.0
        %1584 = vmatpush2.msra.mxu0 0.0
        %1585 = vmatprep.subr.mxu0 0.0
        %1586 = vmatpush2.msra.mxu0 0.0
        %1587 = vmatprep.subr.mxu0 0.0
        %1588 = vmatpush2.msra.mxu0 0.0
        %1589 = vmatprep.subr.mxu0 0.0
        %1590 = vmatpush2.msra.mxu0 0.0
        %1591 = vmatprep.subr.mxu0 0.0
        %1592 = vmatpush2.msra.mxu0 0.0
        %1593 = vmatprep.subr.mxu0 0.0
        %1594 = vmatpush2.msra.mxu0 0.0
        %1595 = vmatprep.subr.mxu0 0.0
        %1596 = vmatpush2.msra.mxu0 0.0
        %1597 = vmatprep.subr.mxu0 0.0
        %1598 = vmatpush2.msra.mxu0 0.0
        %1599 = vmatprep.subr.mxu0 0.0
        %1600 = vmatpush2.msra.mxu0 0.0
        %1601 = vmatprep.subr.mxu0 0.0
        %1602 = vmatpush2.msra.mxu0 0.0
        %1603 = vmatprep.subr.mxu0 0.0
        %1604 = vmatpush2.msra.mxu0 0.0
        %1605 = vmatprep.subr.mxu0 0.0
        %1606 = vmatpush2.msra.mxu0 0.0
        %1607 = vmatprep.subr.mxu0 0.0
        %1608 = vmatpush2.msra.mxu0 0.0
        %1609 = vmatprep.subr.mxu0 0.0
        %1610 = vmatpush2.msra.mxu0 0.0
        %1611 = vmatprep.mubr.f32.mxu0 0.0
        %1612 = vmatmul.mubr.f32.gmra.mxu0 %v1537
        %v1613 = vpop.f32.mrf.mxu0
        %v1614 = vadd.f32 0.0, %v1613
        %v1615 = vpop.f32.mrf.mxu0
        %1616 = vmatprep.mubr.f32.mxu0 0.0
        %1617 = vmatmul.mubr.f32.gmra.mxu0 %v1540
        %v1618 = vpop.f32.mrf.mxu0
        %v1619 = vadd.f32 0.0, %v1618
        %v1620 = vpop.f32.mrf.mxu0
        %1621 = vmatprep.mubr.f32.mxu0 0.0
        %1622 = vmatmul.mubr.f32.gmra.mxu0 %v1543
        %v1623 = vpop.f32.mrf.mxu0
        %v1624 = vadd.f32 0.0, %v1623
        %v1625 = vpop.f32.mrf.mxu0
        %1626 = vdwg.mxu0
        %v1628 = vsel %vm740, %v1614, 0
        %v1631 = vsel %vm740, %v1619, 0
        %v1634 = vsel %vm740, %v1624, 0
        %1636 = vmatprep.subr.mxu0 0.0
        %1637 = vmatpush1.msra.mxu0 0.0
        %1638 = vmatprep.subr.mxu0 0.0
        %1639 = vmatpush1.msra.mxu0 0.0
        %1640 = vmatprep.subr.mxu0 0.0
        %1641 = vmatpush1.msra.mxu0 0.0
        %1642 = vmatprep.subr.mxu0 0.0
        %1643 = vmatpush1.msra.mxu0 0.0
        %1644 = vmatprep.subr.mxu0 0.0
        %1645 = vmatpush1.msra.mxu0 0.0
        %1646 = vmatprep.subr.mxu0 0.0
        %1647 = vmatpush1.msra.mxu0 0.0
        %1648 = vmatprep.subr.mxu0 0.0
        %1649 = vmatpush1.msra.mxu0 0.0
        %1650 = vmatprep.subr.mxu0 0.0
        %1651 = vmatpush1.msra.mxu0 0.0
        %1652 = vmatprep.subr.mxu0 0.0
        %1653 = vmatpush1.msra.mxu0 0.0
        %1654 = vmatprep.subr.mxu0 0.0
        %1655 = vmatpush1.msra.mxu0 0.0
        %1656 = vmatprep.subr.mxu0 0.0
        %1657 = vmatpush1.msra.mxu0 0.0
        %1658 = vmatprep.subr.mxu0 0.0
        %1659 = vmatpush1.msra.mxu0 0.0
        %1660 = vmatprep.subr.mxu0 0.0
        %1661 = vmatpush1.msra.mxu0 0.0
        %1662 = vmatprep.subr.mxu0 0.0
        %1663 = vmatpush1.msra.mxu0 0.0
        %1664 = vmatprep.subr.mxu0 0.0
        %1665 = vmatpush1.msra.mxu0 0.0
        %1666 = vmatprep.subr.mxu0 0.0
        %1667 = vmatpush1.msra.mxu0 %v729
        %1668 = vmatprep.subr.mxu0 0.0
        %1669 = vmatpush2.msra.mxu0 0.0
        %1670 = vmatprep.subr.mxu0 0.0
        %1671 = vmatpush2.msra.mxu0 0.0
        %1672 = vmatprep.subr.mxu0 0.0
        %1673 = vmatpush2.msra.mxu0 0.0
        %1674 = vmatprep.subr.mxu0 0.0
        %1675 = vmatpush2.msra.mxu0 0.0
        %1676 = vmatprep.subr.mxu0 0.0
        %1677 = vmatpush2.msra.mxu0 0.0
        %1678 = vmatprep.subr.mxu0 0.0
        %1679 = vmatpush2.msra.mxu0 0.0
        %1680 = vmatprep.subr.mxu0 0.0
        %1681 = vmatpush2.msra.mxu0 0.0
        %1682 = vmatprep.subr.mxu0 0.0
        %1683 = vmatpush2.msra.mxu0 0.0
        %1684 = vmatprep.subr.mxu0 0.0
        %1685 = vmatpush2.msra.mxu0 0.0
        %1686 = vmatprep.subr.mxu0 0.0
        %1687 = vmatpush2.msra.mxu0 0.0
        %1688 = vmatprep.subr.mxu0 0.0
        %1689 = vmatpush2.msra.mxu0 0.0
        %1690 = vmatprep.subr.mxu0 0.0
        %1691 = vmatpush2.msra.mxu0 0.0
        %1692 = vmatprep.subr.mxu0 0.0
        %1693 = vmatpush2.msra.mxu0 0.0
        %1694 = vmatprep.subr.mxu0 0.0
        %1695 = vmatpush2.msra.mxu0 0.0
        %1696 = vmatprep.subr.mxu0 0.0
        %1697 = vmatpush2.msra.mxu0 0.0
        %1698 = vmatprep.subr.mxu0 0.0
        %1699 = vmatpush2.msra.mxu0 0.0
        %1700 = vmatprep.mubr.f32.mxu0 0.0
        %1701 = vmatmul.mubr.f32.gmra.mxu0 %v1628
        %v1702 = vpop.f32.mrf.mxu0
        %v1703 = vadd.f32 0.0, %v1702
        %v1704 = vpop.f32.mrf.mxu0
        %1705 = vmatprep.mubr.f32.mxu0 0.0
        %1706 = vmatmul.mubr.f32.gmra.mxu0 %v1631
        %v1707 = vpop.f32.mrf.mxu0
        %v1708 = vadd.f32 0.0, %v1707
        %v1709 = vpop.f32.mrf.mxu0
        %1710 = vmatprep.mubr.f32.mxu0 0.0
        %1711 = vmatmul.mubr.f32.gmra.mxu0 %v1634
        %v1712 = vpop.f32.mrf.mxu0
        %v1713 = vadd.f32 0.0, %v1712
        %v1714 = vpop.f32.mrf.mxu0
        %1715 = vdwg.mxu0
        %v1716 = vadd.f32 %v1375, %v1703
        %v1717 = vadd.f32 %v1380, %v1708
        %v1718 = vadd.f32 %v1385, %v1713
        %1719 = vrot.lane.b32.xlu0 %v714, 104
        %v1720 = vpop.permute.xlu0 %1719
        %1721 = vrot.lane.b32.xlu0 %v719, 104
        %v1722 = vpop.permute.xlu0 %1721
        %1723 = vrot.lane.b32.xlu0 %v724, 104
        %v1724 = vpop.permute.xlu0 %1723
        %1725 = vrot.lane.b32.xlu0 %v714, 72
        %v1726 = vpop.permute.xlu0 %1725
        %1727 = vrot.lane.b32.xlu0 %v719, 72
        %v1728 = vpop.permute.xlu0 %1727
        %1729 = vrot.lane.b32.xlu0 %v724, 72
        %v1730 = vpop.permute.xlu0 %1729
        %v1731 = vsel %vm740, %v1720, 0
        %v1733 = vsel %vm740, %v1722, 0
        %v1735 = vsel %vm740, %v1724, 0
        %v1737 = vsel %vm740, %v1726, 0
        %v1739 = vsel %vm740, %v1728, 0
        %v1741 = vsel %vm740, %v1730, 0
        %1743 = vmatprep.subr.mxu0 0.0
        %1744 = vmatpush1.xpose.msra.mxu0 0.0
        %1745 = vmatprep.subr.mxu0 0.0
        %1746 = vmatpush1.xpose.msra.mxu0 0.0
        %1747 = vmatprep.subr.mxu0 0.0
        %1748 = vmatpush1.xpose.msra.mxu0 0.0
        %1749 = vmatprep.subr.mxu0 0.0
        %1750 = vmatpush1.xpose.msra.mxu0 0.0
        %1751 = vmatprep.subr.mxu0 0.0
        %1752 = vmatpush1.xpose.msra.mxu0 0.0
        %1753 = vmatprep.subr.mxu0 0.0
        %1754 = vmatpush1.xpose.msra.mxu0 0.0
        %1755 = vmatprep.subr.mxu0 0.0
        %1756 = vmatpush1.xpose.msra.mxu0 0.0
        %1757 = vmatprep.subr.mxu0 0.0
        %1758 = vmatpush1.xpose.msra.mxu0 0.0
        %1759 = vmatprep.subr.mxu0 0.0
        %1760 = vmatpush1.xpose.msra.mxu0 0.0
        %1761 = vmatprep.subr.mxu0 0.0
        %1762 = vmatpush1.xpose.msra.mxu0 0.0
        %1763 = vmatprep.subr.mxu0 0.0
        %1764 = vmatpush1.xpose.msra.mxu0 0.0
        %1765 = vmatprep.subr.mxu0 0.0
        %1766 = vmatpush1.xpose.msra.mxu0 0.0
        %1767 = vmatprep.subr.mxu0 0.0
        %1768 = vmatpush1.xpose.msra.mxu0 0.0
        %1769 = vmatprep.subr.mxu0 0.0
        %1770 = vmatpush1.xpose.msra.mxu0 %v1741
        %1771 = vmatprep.subr.mxu0 0.0
        %1772 = vmatpush1.xpose.msra.mxu0 %v1739
        %1773 = vmatprep.subr.mxu0 0.0
        %1774 = vmatpush1.xpose.msra.mxu0 %v1737
        %1775 = vmatprep.subr.mxu0 0.0
        %1776 = vmatpush2.xpose.msra.mxu0 0.0
        %1777 = vmatprep.subr.mxu0 0.0
        %1778 = vmatpush2.xpose.msra.mxu0 0.0
        %1779 = vmatprep.subr.mxu0 0.0
        %1780 = vmatpush2.xpose.msra.mxu0 0.0
        %1781 = vmatprep.subr.mxu0 0.0
        %1782 = vmatpush2.xpose.msra.mxu0 0.0
        %1783 = vmatprep.subr.mxu0 0.0
        %1784 = vmatpush2.xpose.msra.mxu0 0.0
        %1785 = vmatprep.subr.mxu0 0.0
        %1786 = vmatpush2.xpose.msra.mxu0 0.0
        %1787 = vmatprep.subr.mxu0 0.0
        %1788 = vmatpush2.xpose.msra.mxu0 0.0
        %1789 = vmatprep.subr.mxu0 0.0
        %1790 = vmatpush2.xpose.msra.mxu0 0.0
        %1791 = vmatprep.subr.mxu0 0.0
        %1792 = vmatpush2.xpose.msra.mxu0 0.0
        %1793 = vmatprep.subr.mxu0 0.0
        %1794 = vmatpush2.xpose.msra.mxu0 0.0
        %1795 = vmatprep.subr.mxu0 0.0
        %1796 = vmatpush2.xpose.msra.mxu0 0.0
        %1797 = vmatprep.subr.mxu0 0.0
        %1798 = vmatpush2.xpose.msra.mxu0 0.0
        %1799 = vmatprep.subr.mxu0 0.0
        %1800 = vmatpush2.xpose.msra.mxu0 0.0
        %1801 = vmatprep.subr.mxu0 0.0
        %1802 = vmatpush2.xpose.msra.mxu0 0.0
        %1803 = vmatprep.subr.mxu0 0.0
        %1804 = vmatpush2.xpose.msra.mxu0 0.0
        %1805 = vmatprep.subr.mxu0 0.0
        %1806 = vmatpush2.xpose.msra.mxu0 0.0
        %1807 = vmatprep.mubr.f32.mxu0 0.0
        %1808 = vmatmul.mubr.f32.gmra.mxu0 %v1731
        %v1809 = vpop.f32.mrf.mxu0
        %v1810 = vadd.f32 0.0, %v1809
        %v1811 = vpop.f32.mrf.mxu0
        %1812 = vmatprep.mubr.f32.mxu0 0.0
        %1813 = vmatmul.mubr.f32.gmra.mxu0 %v1733
        %v1814 = vpop.f32.mrf.mxu0
        %v1815 = vadd.f32 0.0, %v1814
        %v1816 = vpop.f32.mrf.mxu0
        %1817 = vmatprep.mubr.f32.mxu0 0.0
        %1818 = vmatmul.mubr.f32.gmra.mxu0 %v1735
        %v1819 = vpop.f32.mrf.mxu0
        %v1820 = vadd.f32 0.0, %v1819
        %v1821 = vpop.f32.mrf.mxu0
        %1822 = vdwg.mxu0
        %v1823 = vmul.f32 %v1810, 0.35355338
        %v1824 = vmul.f32 %v1815, 0.35355338
        %v1825 = vmul.f32 %v1820, 0.35355338
        %v1826 = vsel %vm836, %v1823, -inf
        %1827 = vmax.xlane.f32.xlu0 %v1826
        %v1828 = vpop.xlane.xlu0 %1827
        %v1829 = vsel %vm836, %v1824, -inf
        %1830 = vmax.xlane.f32.xlu0 %v1829
        %v1831 = vpop.xlane.xlu0 %1830
        %v1832 = vsel %vm843, %v1825, -inf
        %1833 = vmax.xlane.f32.xlu0 %v1832
        %v1834 = vpop.xlane.xlu0 %1833
        %v1835 = vsub.f32 %v1823, %v1828
        %v1836 = vsub.f32 %v1824, %v1831
        %v1837 = vsub.f32 %v1825, %v1834
        %v1838 = vmul.f32 %v1835, 1.442695
        %v1839 = vpow.pop %v1838
        %v1840 = vmul.f32 %v1836, 1.442695
        %v1841 = vpow.pop %v1840
        %v1842 = vmul.f32 %v1837, 1.442695
        %v1843 = vpow.pop %v1842
        %v1844 = vsel %vm836, %v1839, 0.0
        %1845 = vadd.xlane.f32.xlu0 %v1844
        %v1846 = vpop.xlane.xlu0 %1845
        %v1847 = vsel %vm836, %v1841, 0.0
        %1848 = vadd.xlane.f32.xlu0 %v1847
        %v1849 = vpop.xlane.xlu0 %1848
        %v1850 = vsel %vm843, %v1843, 0.0
        %1851 = vadd.xlane.f32.xlu0 %v1850
        %v1852 = vpop.xlane.xlu0 %1851
        %v1853 = vrcp.pop %v1846
        %v1854 = vrcp.pop %v1849
        %v1855 = vrcp.pop %v1852
        %v1856 = vmul.f32 %v1839, %v1853
        %v1857 = vmul.f32 %v1841, %v1854
        %v1858 = vmul.f32 %v1843, %v1855
        %1859 = vrot.lane.b32.xlu0 %v714, 40
        %v1860 = vpop.permute.xlu0 %1859
        %1861 = vrot.lane.b32.xlu0 %v719, 40
        %v1862 = vpop.permute.xlu0 %1861
        %1863 = vrot.lane.b32.xlu0 %v724, 40
        %v1864 = vpop.permute.xlu0 %1863
        %v1868 = vsel %vm836, %v1856, 0
        %v1871 = vsel %vm836, %v1857, 0
        %v1874 = vsel %vm836, %v1858, 0
        %v1876 = vsel %vm888, %v1864, 0
        %1878 = vmatprep.subr.mxu0 0.0
        %1879 = vmatpush1.msra.mxu0 0.0
        %1880 = vmatprep.subr.mxu0 0.0
        %1881 = vmatpush1.msra.mxu0 0.0
        %1882 = vmatprep.subr.mxu0 0.0
        %1883 = vmatpush1.msra.mxu0 0.0
        %1884 = vmatprep.subr.mxu0 0.0
        %1885 = vmatpush1.msra.mxu0 0.0
        %1886 = vmatprep.subr.mxu0 0.0
        %1887 = vmatpush1.msra.mxu0 0.0
        %1888 = vmatprep.subr.mxu0 0.0
        %1889 = vmatpush1.msra.mxu0 0.0
        %1890 = vmatprep.subr.mxu0 0.0
        %1891 = vmatpush1.msra.mxu0 0.0
        %1892 = vmatprep.subr.mxu0 0.0
        %1893 = vmatpush1.msra.mxu0 0.0
        %1894 = vmatprep.subr.mxu0 0.0
        %1895 = vmatpush1.msra.mxu0 0.0
        %1896 = vmatprep.subr.mxu0 0.0
        %1897 = vmatpush1.msra.mxu0 0.0
        %1898 = vmatprep.subr.mxu0 0.0
        %1899 = vmatpush1.msra.mxu0 0.0
        %1900 = vmatprep.subr.mxu0 0.0
        %1901 = vmatpush1.msra.mxu0 0.0
        %1902 = vmatprep.subr.mxu0 0.0
        %1903 = vmatpush1.msra.mxu0 0.0
        %1904 = vmatprep.subr.mxu0 0.0
        %1905 = vmatpush1.msra.mxu0 %v1876
        %1906 = vmatprep.subr.mxu0 0.0
        %1907 = vmatpush1.msra.mxu0 %v1862
        %1908 = vmatprep.subr.mxu0 0.0
        %1909 = vmatpush1.msra.mxu0 %v1860
        %1910 = vmatprep.subr.mxu0 0.0
        %1911 = vmatpush2.msra.mxu0 0.0
        %1912 = vmatprep.subr.mxu0 0.0
        %1913 = vmatpush2.msra.mxu0 0.0
        %1914 = vmatprep.subr.mxu0 0.0
        %1915 = vmatpush2.msra.mxu0 0.0
        %1916 = vmatprep.subr.mxu0 0.0
        %1917 = vmatpush2.msra.mxu0 0.0
        %1918 = vmatprep.subr.mxu0 0.0
        %1919 = vmatpush2.msra.mxu0 0.0
        %1920 = vmatprep.subr.mxu0 0.0
        %1921 = vmatpush2.msra.mxu0 0.0
        %1922 = vmatprep.subr.mxu0 0.0
        %1923 = vmatpush2.msra.mxu0 0.0
        %1924 = vmatprep.subr.mxu0 0.0
        %1925 = vmatpush2.msra.mxu0 0.0
        %1926 = vmatprep.subr.mxu0 0.0
        %1927 = vmatpush2.msra.mxu0 0.0
        %1928 = vmatprep.subr.mxu0 0.0
        %1929 = vmatpush2.msra.mxu0 0.0
        %1930 = vmatprep.subr.mxu0 0.0
        %1931 = vmatpush2.msra.mxu0 0.0
        %1932 = vmatprep.subr.mxu0 0.0
        %1933 = vmatpush2.msra.mxu0 0.0
        %1934 = vmatprep.subr.mxu0 0.0
        %1935 = vmatpush2.msra.mxu0 0.0
        %1936 = vmatprep.subr.mxu0 0.0
        %1937 = vmatpush2.msra.mxu0 0.0
        %1938 = vmatprep.subr.mxu0 0.0
        %1939 = vmatpush2.msra.mxu0 0.0
        %1940 = vmatprep.subr.mxu0 0.0
        %1941 = vmatpush2.msra.mxu0 0.0
        %1942 = vmatprep.mubr.f32.mxu0 0.0
        %1943 = vmatmul.mubr.f32.gmra.mxu0 %v1868
        %v1944 = vpop.f32.mrf.mxu0
        %v1945 = vadd.f32 0.0, %v1944
        %v1946 = vpop.f32.mrf.mxu0
        %1947 = vmatprep.mubr.f32.mxu0 0.0
        %1948 = vmatmul.mubr.f32.gmra.mxu0 %v1871
        %v1949 = vpop.f32.mrf.mxu0
        %v1950 = vadd.f32 0.0, %v1949
        %v1951 = vpop.f32.mrf.mxu0
        %1952 = vmatprep.mubr.f32.mxu0 0.0
        %1953 = vmatmul.mubr.f32.gmra.mxu0 %v1874
        %v1954 = vpop.f32.mrf.mxu0
        %v1955 = vadd.f32 0.0, %v1954
        %v1956 = vpop.f32.mrf.mxu0
        %1957 = vdwg.mxu0
        %v1959 = vsel %vm740, %v1945, 0
        %v1962 = vsel %vm740, %v1950, 0
        %v1965 = vsel %vm740, %v1955, 0
        %1967 = vmatprep.subr.mxu0 0.0
        %1968 = vmatpush1.msra.mxu0 0.0
        %1969 = vmatprep.subr.mxu0 0.0
        %1970 = vmatpush1.msra.mxu0 0.0
        %1971 = vmatprep.subr.mxu0 0.0
        %1972 = vmatpush1.msra.mxu0 0.0
        %1973 = vmatprep.subr.mxu0 0.0
        %1974 = vmatpush1.msra.mxu0 0.0
        %1975 = vmatprep.subr.mxu0 0.0
        %1976 = vmatpush1.msra.mxu0 0.0
        %1977 = vmatprep.subr.mxu0 0.0
        %1978 = vmatpush1.msra.mxu0 0.0
        %1979 = vmatprep.subr.mxu0 0.0
        %1980 = vmatpush1.msra.mxu0 0.0
        %1981 = vmatprep.subr.mxu0 0.0
        %1982 = vmatpush1.msra.mxu0 0.0
        %1983 = vmatprep.subr.mxu0 0.0
        %1984 = vmatpush1.msra.mxu0 0.0
        %1985 = vmatprep.subr.mxu0 0.0
        %1986 = vmatpush1.msra.mxu0 0.0
        %1987 = vmatprep.subr.mxu0 0.0
        %1988 = vmatpush1.msra.mxu0 0.0
        %1989 = vmatprep.subr.mxu0 0.0
        %1990 = vmatpush1.msra.mxu0 0.0
        %1991 = vmatprep.subr.mxu0 0.0
        %1992 = vmatpush1.msra.mxu0 0.0
        %1993 = vmatprep.subr.mxu0 0.0
        %1994 = vmatpush1.msra.mxu0 0.0
        %1995 = vmatprep.subr.mxu0 0.0
        %1996 = vmatpush1.msra.mxu0 0.0
        %1997 = vmatprep.subr.mxu0 0.0
        %1998 = vmatpush1.msra.mxu0 %v730
        %1999 = vmatprep.subr.mxu0 0.0
        %2000 = vmatpush2.msra.mxu0 0.0
        %2001 = vmatprep.subr.mxu0 0.0
        %2002 = vmatpush2.msra.mxu0 0.0
        %2003 = vmatprep.subr.mxu0 0.0
        %2004 = vmatpush2.msra.mxu0 0.0
        %2005 = vmatprep.subr.mxu0 0.0
        %2006 = vmatpush2.msra.mxu0 0.0
        %2007 = vmatprep.subr.mxu0 0.0
        %2008 = vmatpush2.msra.mxu0 0.0
        %2009 = vmatprep.subr.mxu0 0.0
        %2010 = vmatpush2.msra.mxu0 0.0
        %2011 = vmatprep.subr.mxu0 0.0
        %2012 = vmatpush2.msra.mxu0 0.0
        %2013 = vmatprep.subr.mxu0 0.0
        %2014 = vmatpush2.msra.mxu0 0.0
        %2015 = vmatprep.subr.mxu0 0.0
        %2016 = vmatpush2.msra.mxu0 0.0
        %2017 = vmatprep.subr.mxu0 0.0
        %2018 = vmatpush2.msra.mxu0 0.0
        %2019 = vmatprep.subr.mxu0 0.0
        %2020 = vmatpush2.msra.mxu0 0.0
        %2021 = vmatprep.subr.mxu0 0.0
        %2022 = vmatpush2.msra.mxu0 0.0
        %2023 = vmatprep.subr.mxu0 0.0
        %2024 = vmatpush2.msra.mxu0 0.0
        %2025 = vmatprep.subr.mxu0 0.0
        %2026 = vmatpush2.msra.mxu0 0.0
        %2027 = vmatprep.subr.mxu0 0.0
        %2028 = vmatpush2.msra.mxu0 0.0
        %2029 = vmatprep.subr.mxu0 0.0
        %2030 = vmatpush2.msra.mxu0 0.0
        %2031 = vmatprep.mubr.f32.mxu0 0.0
        %2032 = vmatmul.mubr.f32.gmra.mxu0 %v1959
        %v2033 = vpop.f32.mrf.mxu0
        %v2034 = vadd.f32 0.0, %v2033
        %v2035 = vpop.f32.mrf.mxu0
        %2036 = vmatprep.mubr.f32.mxu0 0.0
        %2037 = vmatmul.mubr.f32.gmra.mxu0 %v1962
        %v2038 = vpop.f32.mrf.mxu0
        %v2039 = vadd.f32 0.0, %v2038
        %v2040 = vpop.f32.mrf.mxu0
        %2041 = vmatprep.mubr.f32.mxu0 0.0
        %2042 = vmatmul.mubr.f32.gmra.mxu0 %v1965
        %v2043 = vpop.f32.mrf.mxu0
        %v2044 = vadd.f32 0.0, %v2043
        %v2045 = vpop.f32.mrf.mxu0
        %2046 = vdwg.mxu0
        %v2047 = vadd.f32 %v1716, %v2034
        %v2048 = vadd.f32 %v1717, %v2039
        %v2049 = vadd.f32 %v1718, %v2044
        %v2050 = vld [vmem:[%s4] sm:$0x1]
        %v2052 = vlaneseq
        %v2053 = vshrl.u32 %v2052, 7
        %v2054 = vsub.s32 0, %v2053
        %v2055 = vrot.slane %v2050, %v2054
        %v2057 = vadd.f32 %v2047, %v2055
        %v2058 = vadd.f32 %v2048, %v2055
        %v2059 = vadd.f32 %v2049, %v2055
        %v2060 = vadd.f32 %v627, %v2057
        %v2061 = vadd.f32 %v628, %v2058
        %v2062 = vadd.f32 %v629, %v2059
        %v2063 = vsel %vm637, %v2060, 0.0
        %2064 = vadd.xlane.f32.xlu0 %v2063
        %v2065 = vpop.xlane.xlu0 %2064
        %v2066 = vsel %vm637, %v2061, 0.0
        %2067 = vadd.xlane.f32.xlu0 %v2066
        %v2068 = vpop.xlane.xlu0 %2067
        %vm2069 = vcmask 253952
        %v2070 = vsel %vm2069, %v2062, 0.0
        %2071 = vadd.xlane.f32.xlu0 %v2070
        %v2072 = vpop.xlane.xlu0 %2071
        %v2073 = vrcp.pop 32.0
        %v2074 = vmul.f32 %v2065, %v2073
        %v2075 = vmul.f32 %v2068, %v2073
        %v2076 = vmul.f32 %v2072, %v2073
        %v2077 = vsub.f32 %v2060, %v2074
        %v2078 = vsub.f32 %v2061, %v2075
        %v2079 = vsub.f32 %v2062, %v2076
        %v2080 = vmul.f32 %v2077, %v2077
        %v2081 = vmul.f32 %v2078, %v2078
        %v2082 = vmul.f32 %v2079, %v2079
        %v2083 = vsel %vm637, %v2080, 0.0
        %2084 = vadd.xlane.f32.xlu0 %v2083
        %v2085 = vpop.xlane.xlu0 %2084
        %v2086 = vsel %vm637, %v2081, 0.0
        %2087 = vadd.xlane.f32.xlu0 %v2086
        %v2088 = vpop.xlane.xlu0 %2087
        %v2089 = vsel %vm2069, %v2082, 0.0
        %2090 = vadd.xlane.f32.xlu0 %v2089
        %v2091 = vpop.xlane.xlu0 %2090
        %v2092 = vmul.f32 %v2085, %v2073
        %v2093 = vmul.f32 %v2088, %v2073
        %v2094 = vmul.f32 %v2091, %v2073
        %v2095 = vadd.f32 %v2092, 1e-05
        %v2096 = vadd.f32 %v2093, 1e-05
        %v2097 = vadd.f32 %v2094, 1e-05
        %v2098 = vrsqrt.pop %v2095
        %v2099 = vrsqrt.pop %v2096
        %v2100 = vrsqrt.pop %v2097
        %v2101 = vmul.f32 %v2077, %v2098
        %v2102 = vmul.f32 %v2078, %v2099
        %v2103 = vmul.f32 %v2079, %v2100
        %v2104 = vld [vmem:[%s5] sm:$0x1]
        %v2106 = vlaneseq
        %v2107 = vshrl.u32 %v2106, 7
        %v2108 = vsub.s32 0, %v2107
        %v2109 = vrot.slane %v2104, %v2108
        %v2111 = vmul.f32 %v2101, %v2109
        %v2112 = vmul.f32 %v2102, %v2109
        %v2113 = vmul.f32 %v2103, %v2109
        %v2114 = vld [vmem:[%s6] sm:$0x1]
        %v2116 = vlaneseq
        %v2117 = vshrl.u32 %v2116, 7
        %v2118 = vsub.s32 0, %v2117
        %v2119 = vrot.slane %v2114, %v2118
        %v2121 = vadd.f32 %v2111, %v2119
        %v2122 = vadd.f32 %v2112, %v2119
        %v2123 = vadd.f32 %v2113, %v2119
        %v2124 = vld [vmem:[%s7] sm:$0xff]
        %v2125 = vld [vmem:[%s7 + $0x8] sm:$0xff]
        %v2126 = vld [vmem:[%s7 + $0x10] sm:$0xff]
        %v2127 = vld [vmem:[%s7 + $0x18] sm:$0xff]
        %v2128 = vld [vmem:[%s8] sm:$0x1]
        %v2130 = vlaneseq
        %v2131 = vshrl.u32 %v2130, 7
        %v2132 = vsub.s32 0, %v2131
        %v2133 = vrot.slane %v2128, %v2132
        %v2136 = vsel %vm637, %v2121, 0
        %v2139 = vsel %vm637, %v2122, 0
        %v2142 = vsel %vm637, %v2123, 0
        %2144 = vmatprep.subr.mxu0 0.0
        %2145 = vmatpush1.msra.mxu0 0.0
        %2146 = vmatprep.subr.mxu0 0.0
        %2147 = vmatpush1.msra.mxu0 0.0
        %2148 = vmatprep.subr.mxu0 0.0
        %2149 = vmatpush1.msra.mxu0 0.0
        %2150 = vmatprep.subr.mxu0 0.0
        %2151 = vmatpush1.msra.mxu0 0.0
        %2152 = vmatprep.subr.mxu0 0.0
        %2153 = vmatpush1.msra.mxu0 0.0
        %2154 = vmatprep.subr.mxu0 0.0
        %2155 = vmatpush1.msra.mxu0 0.0
        %2156 = vmatprep.subr.mxu0 0.0
        %2157 = vmatpush1.msra.mxu0 0.0
        %2158 = vmatprep.subr.mxu0 0.0
        %2159 = vmatpush1.msra.mxu0 0.0
        %2160 = vmatprep.subr.mxu0 0.0
        %2161 = vmatpush1.msra.mxu0 0.0
        %2162 = vmatprep.subr.mxu0 0.0
        %2163 = vmatpush1.msra.mxu0 0.0
        %2164 = vmatprep.subr.mxu0 0.0
        %2165 = vmatpush1.msra.mxu0 0.0
        %2166 = vmatprep.subr.mxu0 0.0
        %2167 = vmatpush1.msra.mxu0 0.0
        %2168 = vmatprep.subr.mxu0 0.0
        %2169 = vmatpush1.msra.mxu0 %v2127
        %2170 = vmatprep.subr.mxu0 0.0
        %2171 = vmatpush1.msra.mxu0 %v2126
        %2172 = vmatprep.subr.mxu0 0.0
        %2173 = vmatpush1.msra.mxu0 %v2125
        %2174 = vmatprep.subr.mxu0 0.0
        %2175 = vmatpush1.msra.mxu0 %v2124
        %2176 = vmatprep.subr.mxu0 0.0
        %2177 = vmatpush2.msra.mxu0 0.0
        %2178 = vmatprep.subr.mxu0 0.0
        %2179 = vmatpush2.msra.mxu0 0.0
        %2180 = vmatprep.subr.mxu0 0.0
        %2181 = vmatpush2.msra.mxu0 0.0
        %2182 = vmatprep.subr.mxu0 0.0
        %2183 = vmatpush2.msra.mxu0 0.0
        %2184 = vmatprep.subr.mxu0 0.0
        %2185 = vmatpush2.msra.mxu0 0.0
        %2186 = vmatprep.subr.mxu0 0.0
        %2187 = vmatpush2.msra.mxu0 0.0
        %2188 = vmatprep.subr.mxu0 0.0
        %2189 = vmatpush2.msra.mxu0 0.0
        %2190 = vmatprep.subr.mxu0 0.0
        %2191 = vmatpush2.msra.mxu0 0.0
        %2192 = vmatprep.subr.mxu0 0.0
        %2193 = vmatpush2.msra.mxu0 0.0
        %2194 = vmatprep.subr.mxu0 0.0
        %2195 = vmatpush2.msra.mxu0 0.0
        %2196 = vmatprep.subr.mxu0 0.0
        %2197 = vmatpush2.msra.mxu0 0.0
        %2198 = vmatprep.subr.mxu0 0.0
        %2199 = vmatpush2.msra.mxu0 0.0
        %2200 = vmatprep.subr.mxu0 0.0
        %2201 = vmatpush2.msra.mxu0 0.0
        %2202 = vmatprep.subr.mxu0 0.0
        %2203 = vmatpush2.msra.mxu0 0.0
        %2204 = vmatprep.subr.mxu0 0.0
        %2205 = vmatpush2.msra.mxu0 0.0
        %2206 = vmatprep.subr.mxu0 0.0
        %2207 = vmatpush2.msra.mxu0 0.0
        %2208 = vmatprep.mubr.f32.mxu0 0.0
        %2209 = vmatmul.mubr.f32.gmra.mxu0 %v2136
        %v2210 = vpop.f32.mrf.mxu0
        %v2211 = vadd.f32 %v2133, %v2210
        %v2212 = vpop.f32.mrf.mxu0
        %2213 = vmatprep.mubr.f32.mxu0 0.0
        %2214 = vmatmul.mubr.f32.gmra.mxu0 %v2139
        %v2215 = vpop.f32.mrf.mxu0
        %v2216 = vadd.f32 %v2133, %v2215
        %v2217 = vpop.f32.mrf.mxu0
        %2218 = vmatprep.mubr.f32.mxu0 0.0
        %2219 = vmatmul.mubr.f32.gmra.mxu0 %v2142
        %v2220 = vpop.f32.mrf.mxu0
        %v2221 = vadd.f32 %v2133, %v2220
        %v2222 = vpop.f32.mrf.mxu0
        %2223 = vdwg.mxu0
        %v2224 = vmax.f32 %v2211, 0.0
        %v2225 = vmax.f32 %v2216, 0.0
        %v2226 = vmax.f32 %v2221, 0.0
        %v2227 = vld [vmem:[%s9] sm:$0xff]
        %v2228 = vld [vmem:[%s9 + $0x8] sm:$0xff]
        %v2229 = vld [vmem:[%s9 + $0x10] sm:$0xff]
        %v2230 = vld [vmem:[%s9 + $0x18] sm:$0xff]
        %v2231 = vld [vmem:[%s9 + $0x20] sm:$0xff]
        %v2232 = vld [vmem:[%s9 + $0x28] sm:$0xff]
        %v2233 = vld [vmem:[%s9 + $0x30] sm:$0xff]
        %v2234 = vld [vmem:[%s9 + $0x38] sm:$0xff]
        %v2235 = vld [vmem:[%s10] sm:$0x1]
        %v2237 = vlaneseq
        %v2238 = vshrl.u32 %v2237, 7
        %v2239 = vsub.s32 0, %v2238
        %v2240 = vrot.slane %v2235, %v2239
        %vm2242 = vcmask 523264
        %v2244 = vsel %vm2242, %v2224, 0
        %v2247 = vsel %vm2242, %v2225, 0
        %v2250 = vsel %vm2242, %v2226, 0
        %2252 = vmatprep.subr.mxu0 0.0
        %2253 = vmatpush1.msra.mxu0 0.0
        %2254 = vmatprep.subr.mxu0 0.0
        %2255 = vmatpush1.msra.mxu0 0.0
        %2256 = vmatprep.subr.mxu0 0.0
        %2257 = vmatpush1.msra.mxu0 0.0
        %2258 = vmatprep.subr.mxu0 0.0
        %2259 = vmatpush1.msra.mxu0 0.0
        %2260 = vmatprep.subr.mxu0 0.0
        %2261 = vmatpush1.msra.mxu0 0.0
        %2262 = vmatprep.subr.mxu0 0.0
        %2263 = vmatpush1.msra.mxu0 0.0
        %2264 = vmatprep.subr.mxu0 0.0
        %2265 = vmatpush1.msra.mxu0 0.0
        %2266 = vmatprep.subr.mxu0 0.0
        %2267 = vmatpush1.msra.mxu0 0.0
        %2268 = vmatprep.subr.mxu0 0.0
        %2269 = vmatpush1.msra.mxu0 %v2234
        %2270 = vmatprep.subr.mxu0 0.0
        %2271 = vmatpush1.msra.mxu0 %v2233
        %2272 = vmatprep.subr.mxu0 0.0
        %2273 = vmatpush1.msra.mxu0 %v2232
        %2274 = vmatprep.subr.mxu0 0.0
        %2275 = vmatpush1.msra.mxu0 %v2231
        %2276 = vmatprep.subr.mxu0 0.0
        %2277 = vmatpush1.msra.mxu0 %v2230
        %2278 = vmatprep.subr.mxu0 0.0
        %2279 = vmatpush1.msra.mxu0 %v2229
        %2280 = vmatprep.subr.mxu0 0.0
        %2281 = vmatpush1.msra.mxu0 %v2228
        %2282 = vmatprep.subr.mxu0 0.0
        %2283 = vmatpush1.msra.mxu0 %v2227
        %2284 = vmatprep.subr.mxu0 0.0
        %2285 = vmatpush2.msra.mxu0 0.0
        %2286 = vmatprep.subr.mxu0 0.0
        %2287 = vmatpush2.msra.mxu0 0.0
        %2288 = vmatprep.subr.mxu0 0.0
        %2289 = vmatpush2.msra.mxu0 0.0
        %2290 = vmatprep.subr.mxu0 0.0
        %2291 = vmatpush2.msra.mxu0 0.0
        %2292 = vmatprep.subr.mxu0 0.0
        %2293 = vmatpush2.msra.mxu0 0.0
        %2294 = vmatprep.subr.mxu0 0.0
        %2295 = vmatpush2.msra.mxu0 0.0
        %2296 = vmatprep.subr.mxu0 0.0
        %2297 = vmatpush2.msra.mxu0 0.0
        %2298 = vmatprep.subr.mxu0 0.0
        %2299 = vmatpush2.msra.mxu0 0.0
        %2300 = vmatprep.subr.mxu0 0.0
        %2301 = vmatpush2.msra.mxu0 0.0
        %2302 = vmatprep.subr.mxu0 0.0
        %2303 = vmatpush2.msra.mxu0 0.0
        %2304 = vmatprep.subr.mxu0 0.0
        %2305 = vmatpush2.msra.mxu0 0.0
        %2306 = vmatprep.subr.mxu0 0.0
        %2307 = vmatpush2.msra.mxu0 0.0
        %2308 = vmatprep.subr.mxu0 0.0
        %2309 = vmatpush2.msra.mxu0 0.0
        %2310 = vmatprep.subr.mxu0 0.0
        %2311 = vmatpush2.msra.mxu0 0.0
        %2312 = vmatprep.subr.mxu0 0.0
        %2313 = vmatpush2.msra.mxu0 0.0
        %2314 = vmatprep.subr.mxu0 0.0
        %2315 = vmatpush2.msra.mxu0 0.0
        %2316 = vmatprep.mubr.f32.mxu0 0.0
        %2317 = vmatmul.mubr.f32.gmra.mxu0 %v2244
        %v2318 = vpop.f32.mrf.mxu0
        %v2319 = vadd.f32 %v2240, %v2318
        %v2320 = vpop.f32.mrf.mxu0
        %2321 = vmatprep.mubr.f32.mxu0 0.0
        %2322 = vmatmul.mubr.f32.gmra.mxu0 %v2247
        %v2323 = vpop.f32.mrf.mxu0
        %v2324 = vpop.f32.mrf.mxu0
        %2325 = vmatprep.mubr.f32.mxu0 0.0
        %2326 = vmatmul.mubr.f32.gmra.mxu0 %v2250
        %v2327 = vpop.f32.mrf.mxu0
        %v2328 = vpop.f32.mrf.mxu0
        %2329 = vdwg.mxu0
        %v2330 = vadd.f32 %v2121, %v2319
        %v2331 = vsel %vm637, %v2330, 0.0
        %2332 = vadd.xlane.f32.xlu0 %v2331
        %v2333 = vpop.xlane.xlu0 %2332
        %v2334 = vmul.f32 %v2333, %v2073
        %v2335 = vsub.f32 %v2330, %v2334
        %v2336 = vmul.f32 %v2335, %v2335
        %v2337 = vsel %vm637, %v2336, 0.0
        %2338 = vadd.xlane.f32.xlu0 %v2337
        %v2339 = vpop.xlane.xlu0 %2338
        %v2340 = vmul.f32 %v2339, %v2073
        %v2341 = vadd.f32 %v2340, 1e-05
        %v2342 = vrsqrt.pop %v2341
        %v2343 = vmul.f32 %v2335, %v2342
        %v2344 = vld [vmem:[%s11] sm:$0x1]
        %v2346 = vlaneseq
        %v2347 = vshrl.u32 %v2346, 7
        %v2348 = vsub.s32 0, %v2347
        %v2349 = vrot.slane %v2344, %v2348
        %v2351 = vmul.f32 %v2343, %v2349
        %v2352 = vld [vmem:[%s12] sm:$0x1]
        %v2354 = vlaneseq
        %v2355 = vshrl.u32 %v2354, 7
        %v2356 = vsub.s32 0, %v2355
        %v2357 = vrot.slane %v2352, %v2356
        %v2359 = vadd.f32 %v2351, %v2357
        %v2360 = vld [vmem:[%s13] sm:$0xff]
        %v2361 = vld [vmem:[%s13 + $0x8] sm:$0xff]
        %v2362 = vld [vmem:[%s13 + $0x10] sm:$0xff]
        %v2363 = vld [vmem:[%s13 + $0x18] sm:$0xff]
        %v2364 = vld [vmem:[%s13 + $0x20] sm:$0xff]
        %v2365 = vld [vmem:[%s13 + $0x28] sm:$0xff]
        %v2366 = vld [vmem:[%s13 + $0x30] sm:$0xff]
        %v2367 = vld [vmem:[%s13 + $0x38] sm:$0xff]
        %v2368 = vld [vmem:[%s14] sm:$0x3]
        %v2370 = vlaneseq
        %v2371 = vshrl.u32 %v2370, 7
        %v2372 = vsub.s32 0, %v2371
        %v2373 = vrot.slane %v2368, %v2372
        %v2374 = vlaneseq
        %v2375 = vshrl.u32 %v2374, 7
        %v2376 = vsub.s32 1, %v2375
        %v2377 = vrot.slane %v2368, %v2376
        %v2381 = vsel %vm637, %v2359, 0
        %2383 = vmatprep.subr.mxu0 0.0
        %2384 = vmatpush1.msra.mxu0 0.0
        %2385 = vmatprep.subr.mxu0 0.0
        %2386 = vmatpush1.msra.mxu0 0.0
        %2387 = vmatprep.subr.mxu0 0.0
        %2388 = vmatpush1.msra.mxu0 0.0
        %2389 = vmatprep.subr.mxu0 0.0
        %2390 = vmatpush1.msra.mxu0 0.0
        %2391 = vmatprep.subr.mxu0 0.0
        %2392 = vmatpush1.msra.mxu0 0.0
        %2393 = vmatprep.subr.mxu0 0.0
        %2394 = vmatpush1.msra.mxu0 0.0
        %2395 = vmatprep.subr.mxu0 0.0
        %2396 = vmatpush1.msra.mxu0 0.0
        %2397 = vmatprep.subr.mxu0 0.0
        %2398 = vmatpush1.msra.mxu0 0.0
        %2399 = vmatprep.subr.mxu0 0.0
        %2400 = vmatpush1.msra.mxu0 0.0
        %2401 = vmatprep.subr.mxu0 0.0
        %2402 = vmatpush1.msra.mxu0 0.0
        %2403 = vmatprep.subr.mxu0 0.0
        %2404 = vmatpush1.msra.mxu0 0.0
        %2405 = vmatprep.subr.mxu0 0.0
        %2406 = vmatpush1.msra.mxu0 0.0
        %2407 = vmatprep.subr.mxu0 %v2367
        %2408 = vmatpush1.msra.mxu0 %v2366
        %2409 = vmatprep.subr.mxu0 %v2365
        %2410 = vmatpush1.msra.mxu0 %v2364
        %2411 = vmatprep.subr.mxu0 %v2363
        %2412 = vmatpush1.msra.mxu0 %v2362
        %2413 = vmatprep.subr.mxu0 %v2361
        %2414 = vmatpush1.msra.mxu0 %v2360
        %2415 = vmatprep.subr.mxu0 0.0
        %2416 = vmatpush2.msra.mxu0 0.0
        %2417 = vmatprep.subr.mxu0 0.0
        %2418 = vmatpush2.msra.mxu0 0.0
        %2419 = vmatprep.subr.mxu0 0.0
        %2420 = vmatpush2.msra.mxu0 0.0
        %2421 = vmatprep.subr.mxu0 0.0
        %2422 = vmatpush2.msra.mxu0 0.0
        %2423 = vmatprep.subr.mxu0 0.0
        %2424 = vmatpush2.msra.mxu0 0.0
        %2425 = vmatprep.subr.mxu0 0.0
        %2426 = vmatpush2.msra.mxu0 0.0
        %2427 = vmatprep.subr.mxu0 0.0
        %2428 = vmatpush2.msra.mxu0 0.0
        %2429 = vmatprep.subr.mxu0 0.0
        %2430 = vmatpush2.msra.mxu0 0.0
        %2431 = vmatprep.subr.mxu0 0.0
        %2432 = vmatpush2.msra.mxu0 0.0
        %2433 = vmatprep.subr.mxu0 0.0
        %2434 = vmatpush2.msra.mxu0 0.0
        %2435 = vmatprep.subr.mxu0 0.0
        %2436 = vmatpush2.msra.mxu0 0.0
        %2437 = vmatprep.subr.mxu0 0.0
        %2438 = vmatpush2.msra.mxu0 0.0
        %2439 = vmatprep.subr.mxu0 0.0
        %2440 = vmatpush2.msra.mxu0 0.0
        %2441 = vmatprep.subr.mxu0 0.0
        %2442 = vmatpush2.msra.mxu0 0.0
        %2443 = vmatprep.subr.mxu0 0.0
        %2444 = vmatpush2.msra.mxu0 0.0
        %2445 = vmatprep.subr.mxu0 0.0
        %2446 = vmatpush2.msra.mxu0 0.0
        %2447 = vmatprep.mubr.f32.mxu0 0.0
        %2448 = vmatmul.mubr.f32.gmra.mxu0 %v2381
        %v2449 = vpop.f32.mrf.mxu0
        %v2450 = vadd.f32 %v2373, %v2449
        %v2451 = vpop.f32.mrf.mxu0
        %v2452 = vadd.f32 %v2377, %v2451
        %2453 = vdwg.mxu0
        %v2454 = vxor.u32 %v2450, 2147483648
        %v2455 = vxor.u32 %v2452, 2147483648
        %v2456 = vmul.f32 %v2454, 1.442695
        %v2457 = vpow.pop %v2456
        %v2458 = vmul.f32 %v2455, 1.442695
        %v2459 = vpow.pop %v2458
        %v2460 = vadd.f32 %v2457, 1.0
        %v2461 = vadd.f32 %v2459, 1.0
        %v2462 = vrcp.pop %v2460
        %v2463 = vmul.f32 1.0, %v2462
        %v2464 = vrcp.pop %v2461
        %v2465 = vmul.f32 1.0, %v2464
        %v2466 = vmul.f32 %v2450, %v2463
        %v2467 = vmul.f32 %v2452, %v2465
        %v2468 = vmul.f32 %v2452, 0.5
        %v2469 = vmul.f32 %v2452, 0.70710677
        %v2470 = verf.f32.pop %v2469
        %v2471 = vadd.f32 %v2470, 1.0
        %v2472 = vmul.f32 %v2468, %v2471
        %v2473 = vld [vmem:[%s15] sm:$0xff]
        %v2474 = vld [vmem:[%s15 + $0x8] sm:$0xff]
        %v2475 = vld [vmem:[%s15 + $0x10] sm:$0xff]
        %v2476 = vld [vmem:[%s15 + $0x18] sm:$0xff]
        %v2477 = vld [vmem:[%s15 + $0x20] sm:$0xff]
        %v2478 = vld [vmem:[%s15 + $0x28] sm:$0xff]
        %v2479 = vld [vmem:[%s15 + $0x30] sm:$0xff]
        %v2480 = vld [vmem:[%s15 + $0x38] sm:$0xff]
        %v2481 = vld [vmem:[%s16] sm:$0x3]
        %v2483 = vlaneseq
        %v2484 = vshrl.u32 %v2483, 7
        %v2485 = vsub.s32 0, %v2484
        %v2486 = vrot.slane %v2481, %v2485
        %v2487 = vlaneseq
        %v2488 = vshrl.u32 %v2487, 7
        %v2489 = vsub.s32 1, %v2488
        %v2490 = vrot.slane %v2481, %v2489
        %2493 = vmatprep.subr.mxu0 0.0
        %2494 = vmatpush1.msra.mxu0 0.0
        %2495 = vmatprep.subr.mxu0 0.0
        %2496 = vmatpush1.msra.mxu0 0.0
        %2497 = vmatprep.subr.mxu0 0.0
        %2498 = vmatpush1.msra.mxu0 0.0
        %2499 = vmatprep.subr.mxu0 0.0
        %2500 = vmatpush1.msra.mxu0 0.0
        %2501 = vmatprep.subr.mxu0 0.0
        %2502 = vmatpush1.msra.mxu0 0.0
        %2503 = vmatprep.subr.mxu0 0.0
        %2504 = vmatpush1.msra.mxu0 0.0
        %2505 = vmatprep.subr.mxu0 0.0
        %2506 = vmatpush1.msra.mxu0 0.0
        %2507 = vmatprep.subr.mxu0 0.0
        %2508 = vmatpush1.msra.mxu0 0.0
        %2509 = vmatprep.subr.mxu0 0.0
        %2510 = vmatpush1.msra.mxu0 0.0
        %2511 = vmatprep.subr.mxu0 0.0
        %2512 = vmatpush1.msra.mxu0 0.0
        %2513 = vmatprep.subr.mxu0 0.0
        %2514 = vmatpush1.msra.mxu0 0.0
        %2515 = vmatprep.subr.mxu0 0.0
        %2516 = vmatpush1.msra.mxu0 0.0
        %2517 = vmatprep.subr.mxu0 %v2480
        %2518 = vmatpush1.msra.mxu0 %v2479
        %2519 = vmatprep.subr.mxu0 %v2478
        %2520 = vmatpush1.msra.mxu0 %v2477
        %2521 = vmatprep.subr.mxu0 %v2476
        %2522 = vmatpush1.msra.mxu0 %v2475
        %2523 = vmatprep.subr.mxu0 %v2474
        %2524 = vmatpush1.msra.mxu0 %v2473
        %2525 = vmatprep.subr.mxu0 0.0
        %2526 = vmatpush2.msra.mxu0 0.0
        %2527 = vmatprep.subr.mxu0 0.0
        %2528 = vmatpush2.msra.mxu0 0.0
        %2529 = vmatprep.subr.mxu0 0.0
        %2530 = vmatpush2.msra.mxu0 0.0
        %2531 = vmatprep.subr.mxu0 0.0
        %2532 = vmatpush2.msra.mxu0 0.0
        %2533 = vmatprep.subr.mxu0 0.0
        %2534 = vmatpush2.msra.mxu0 0.0
        %2535 = vmatprep.subr.mxu0 0.0
        %2536 = vmatpush2.msra.mxu0 0.0
        %2537 = vmatprep.subr.mxu0 0.0
        %2538 = vmatpush2.msra.mxu0 0.0
        %2539 = vmatprep.subr.mxu0 0.0
        %2540 = vmatpush2.msra.mxu0 0.0
        %2541 = vmatprep.subr.mxu0 0.0
        %2542 = vmatpush2.msra.mxu0 0.0
        %2543 = vmatprep.subr.mxu0 0.0
        %2544 = vmatpush2.msra.mxu0 0.0
        %2545 = vmatprep.subr.mxu0 0.0
        %2546 = vmatpush2.msra.mxu0 0.0
        %2547 = vmatprep.subr.mxu0 0.0
        %2548 = vmatpush2.msra.mxu0 0.0
        %2549 = vmatprep.subr.mxu0 0.0
        %2550 = vmatpush2.msra.mxu0 0.0
        %2551 = vmatprep.subr.mxu0 0.0
        %2552 = vmatpush2.msra.mxu0 0.0
        %2553 = vmatprep.subr.mxu0 0.0
        %2554 = vmatpush2.msra.mxu0 0.0
        %2555 = vmatprep.subr.mxu0 0.0
        %2556 = vmatpush2.msra.mxu0 0.0
        %2557 = vmatprep.mubr.f32.mxu0 0.0
        %2558 = vmatmul.mubr.f32.gmra.mxu0 %v2381
        %v2559 = vpop.f32.mrf.mxu0
        %v2560 = vadd.f32 %v2486, %v2559
        %v2561 = vpop.f32.mrf.mxu0
        %v2562 = vadd.f32 %v2490, %v2561
        %2563 = vdwg.mxu0
        %v2564 = vmul.f32 %v2466, %v2560
        %v2565 = vmul.f32 %v2467, %v2562
        %v2566 = vld [vmem:[%s17] sm:$0xff]
        %v2567 = vld [vmem:[%s17 + $0x8] sm:$0xff]
        %v2568 = vld [vmem:[%s17 + $0x10] sm:$0xff]
        %v2569 = vld [vmem:[%s17 + $0x18] sm:$0xff]
        %v2570 = vld [vmem:[%s17 + $0x20] sm:$0xff]
        %v2571 = vld [vmem:[%s17 + $0x28] sm:$0xff]
        %v2572 = vld [vmem:[%s17 + $0x30] sm:$0xff]
        %v2573 = vld [vmem:[%s17 + $0x38] sm:$0xff]
        %v2574 = vld [vmem:[%s17 + $0x40] sm:$0xff]
        %v2575 = vld [vmem:[%s17 + $0x48] sm:$0xff]
        %v2576 = vld [vmem:[%s17 + $0x50] sm:$0xff]
        %v2577 = vld [vmem:[%s17 + $0x58] sm:$0xff]
        %v2578 = vld [vmem:[%s17 + $0x60] sm:$0xff]
        %v2579 = vld [vmem:[%s17 + $0x68] sm:$0xff]
        %v2580 = vld [vmem:[%s17 + $0x70] sm:$0xff]
        %v2581 = vld [vmem:[%s17 + $0x78] sm:$0xff]
        %v2582 = vld [vmem:[%s17 + $0x80] sm:$0xff]
        %v2583 = vld [vmem:[%s17 + $0x88] sm:$0xff]
        %v2584 = vld [vmem:[%s17 + $0x90] sm:$0xff]
        %v2585 = vld [vmem:[%s17 + $0x98] sm:$0xff]
        %v2586 = vld [vmem:[%s17 + $0xa0] sm:$0xff]
        %v2587 = vld [vmem:[%s17 + $0xa8] sm:$0xff]
        %v2588 = vld [vmem:[%s17 + $0xb0] sm:$0xff]
        %v2589 = vld [vmem:[%s17 + $0xb8] sm:$0xff]
        %v2590 = vld [vmem:[%s17 + $0xc0] sm:$0x3f]
        %v2591 = vld [vmem:[%s18] sm:$0xff]
        %v2592 = vld [vmem:[%s18 + $0x8] sm:$0xff]
        %v2593 = vld [vmem:[%s18 + $0x10] sm:$0xff]
        %v2594 = vld [vmem:[%s18 + $0x18] sm:$0xff]
        %v2595 = vld [vmem:[%s19] sm:$0x1]
        %2597 = vrot.lane.b32.xlu0 %v2472, 58
        %v2598 = vpop.permute.xlu0 %2597
        %v2599 = vsel %vm637, %v2598, 0
        %2601 = vmatprep.subr.mxu0 0.0
        %2602 = vmatpush1.msra.mxu0 0.0
        %2603 = vmatprep.subr.mxu0 0.0
        %2604 = vmatpush1.msra.mxu0 0.0
        %2605 = vmatprep.subr.mxu0 0.0
        %2606 = vmatpush1.msra.mxu0 0.0
        %2607 = vmatprep.subr.mxu0 0.0
        %2608 = vmatpush1.msra.mxu0 0.0
        %2609 = vmatprep.subr.mxu0 0.0
        %2610 = vmatpush1.msra.mxu0 0.0
        %2611 = vmatprep.subr.mxu0 0.0
        %2612 = vmatpush1.msra.mxu0 0.0
        %2613 = vmatprep.subr.mxu0 0.0
        %2614 = vmatpush1.msra.mxu0 0.0
        %2615 = vmatprep.subr.mxu0 0.0
        %2616 = vmatpush1.msra.mxu0 0.0
        %2617 = vmatprep.subr.mxu0 0.0
        %2618 = vmatpush1.msra.mxu0 0.0
        %2619 = vmatprep.subr.mxu0 0.0
        %2620 = vmatpush1.msra.mxu0 0.0
        %2621 = vmatprep.subr.mxu0 0.0
        %2622 = vmatpush1.msra.mxu0 0.0
        %2623 = vmatprep.subr.mxu0 0.0
        %2624 = vmatpush1.msra.mxu0 0.0
        %2625 = vmatprep.subr.mxu0 0.0
        %2626 = vmatpush1.msra.mxu0 %v2594
        %2627 = vmatprep.subr.mxu0 0.0
        %2628 = vmatpush1.msra.mxu0 %v2593
        %2629 = vmatprep.subr.mxu0 0.0
        %2630 = vmatpush1.msra.mxu0 %v2592
        %2631 = vmatprep.subr.mxu0 0.0
        %2632 = vmatpush1.msra.mxu0 %v2591
        %2633 = vmatprep.subr.mxu0 0.0
        %2634 = vmatpush2.msra.mxu0 0.0
        %2635 = vmatprep.subr.mxu0 0.0
        %2636 = vmatpush2.msra.mxu0 0.0
        %2637 = vmatprep.subr.mxu0 0.0
        %2638 = vmatpush2.msra.mxu0 0.0
        %2639 = vmatprep.subr.mxu0 0.0
        %2640 = vmatpush2.msra.mxu0 0.0
        %2641 = vmatprep.subr.mxu0 0.0
        %2642 = vmatpush2.msra.mxu0 0.0
        %2643 = vmatprep.subr.mxu0 0.0
        %2644 = vmatpush2.msra.mxu0 0.0
        %2645 = vmatprep.subr.mxu0 0.0
        %2646 = vmatpush2.msra.mxu0 0.0
        %2647 = vmatprep.subr.mxu0 0.0
        %2648 = vmatpush2.msra.mxu0 0.0
        %2649 = vmatprep.subr.mxu0 0.0
        %2650 = vmatpush2.msra.mxu0 0.0
        %2651 = vmatprep.subr.mxu0 0.0
        %2652 = vmatpush2.msra.mxu0 0.0
        %2653 = vmatprep.subr.mxu0 0.0
        %2654 = vmatpush2.msra.mxu0 0.0
        %2655 = vmatprep.subr.mxu0 0.0
        %2656 = vmatpush2.msra.mxu0 0.0
        %2657 = vmatprep.subr.mxu0 0.0
        %2658 = vmatpush2.msra.mxu0 0.0
        %2659 = vmatprep.subr.mxu0 0.0
        %2660 = vmatpush2.msra.mxu0 0.0
        %2661 = vmatprep.subr.mxu0 0.0
        %2662 = vmatpush2.msra.mxu0 0.0
        %2663 = vmatprep.subr.mxu0 0.0
        %2664 = vmatpush2.msra.mxu0 0.0
        %2665 = vmatprep.mubr.f32.mxu0 0.0
        %2666 = vmatmul.mubr.f32.gmra.mxu0 %v2599
        %v2667 = vpop.f32.mrf.mxu0
        %v2668 = vadd.f32 %v2595, %v2667
        %v2669 = vpop.f32.mrf.mxu0
        %2670 = vdwg.mxu0
        %vm2671 = vcmask 572416
        %v2673 = vsel %vm2671, %v2565, 0
        %vm2675 = vcmask 1045504
        %v2677 = vsel %vm2675, %v2590, 0
        %2679 = vmatprep.subr.mxu0 0.0
        %2680 = vmatpush1.msra.mxu0 %v2581
        %2681 = vmatprep.subr.mxu0 0.0
        %2682 = vmatpush1.msra.mxu0 %v2580
        %2683 = vmatprep.subr.mxu0 0.0
        %2684 = vmatpush1.msra.mxu0 %v2579
        %2685 = vmatprep.subr.mxu0 0.0
        %2686 = vmatpush1.msra.mxu0 %v2578
        %2687 = vmatprep.subr.mxu0 0.0
        %2688 = vmatpush1.msra.mxu0 %v2577
        %2689 = vmatprep.subr.mxu0 0.0
        %2690 = vmatpush1.msra.mxu0 %v2576
        %2691 = vmatprep.subr.mxu0 0.0
        %2692 = vmatpush1.msra.mxu0 %v2575
        %2693 = vmatprep.subr.mxu0 0.0
        %2694 = vmatpush1.msra.mxu0 %v2574
        %2695 = vmatprep.subr.mxu0 0.0
        %2696 = vmatpush1.msra.mxu0 %v2573
        %2697 = vmatprep.subr.mxu0 0.0
        %2698 = vmatpush1.msra.mxu0 %v2572
        %2699 = vmatprep.subr.mxu0 0.0
        %2700 = vmatpush1.msra.mxu0 %v2571
        %2701 = vmatprep.subr.mxu0 0.0
        %2702 = vmatpush1.msra.mxu0 %v2570
        %2703 = vmatprep.subr.mxu0 0.0
        %2704 = vmatpush1.msra.mxu0 %v2569
        %2705 = vmatprep.subr.mxu0 0.0
        %2706 = vmatpush1.msra.mxu0 %v2568
        %2707 = vmatprep.subr.mxu0 0.0
        %2708 = vmatpush1.msra.mxu0 %v2567
        %2709 = vmatprep.subr.mxu0 0.0
        %2710 = vmatpush1.msra.mxu0 %v2566
        %2711 = vmatprep.subr.mxu0 0.0
        %2712 = vmatpush2.msra.mxu0 0.0
        %2713 = vmatprep.subr.mxu0 0.0
        %2714 = vmatpush2.msra.mxu0 0.0
        %2715 = vmatprep.subr.mxu0 0.0
        %2716 = vmatpush2.msra.mxu0 0.0
        %2717 = vmatprep.subr.mxu0 0.0
        %2718 = vmatpush2.msra.mxu0 0.0
        %2719 = vmatprep.subr.mxu0 0.0
        %2720 = vmatpush2.msra.mxu0 0.0
        %2721 = vmatprep.subr.mxu0 0.0
        %2722 = vmatpush2.msra.mxu0 0.0
        %2723 = vmatprep.subr.mxu0 0.0
        %2724 = vmatpush2.msra.mxu0 0.0
        %2725 = vmatprep.subr.mxu0 0.0
        %2726 = vmatpush2.msra.mxu0 %v2677
        %2727 = vmatprep.subr.mxu0 0.0
        %2728 = vmatpush2.msra.mxu0 %v2589
        %2729 = vmatprep.subr.mxu0 0.0
        %2730 = vmatpush2.msra.mxu0 %v2588
        %2731 = vmatprep.subr.mxu0 0.0
        %2732 = vmatpush2.msra.mxu0 %v2587
        %2733 = vmatprep.subr.mxu0 0.0
        %2734 = vmatpush2.msra.mxu0 %v2586
        %2735 = vmatprep.subr.mxu0 0.0
        %2736 = vmatpush2.msra.mxu0 %v2585
        %2737 = vmatprep.subr.mxu0 0.0
        %2738 = vmatpush2.msra.mxu0 %v2584
        %2739 = vmatprep.subr.mxu0 0.0
        %2740 = vmatpush2.msra.mxu0 %v2583
        %2741 = vmatprep.subr.mxu0 0.0
        %2742 = vmatpush2.msra.mxu0 %v2582
        %2743 = vmatprep.mubr.f32.mxu0 %v2673
        %2744 = vmatmul.mubr.f32.gmra.mxu0 %v2564
        %v2745 = vpop.f32.mrf.mxu0
        %v2746 = vadd.f32 %v2668, %v2745
        %v2747 = vpop.f32.mrf.mxu0
        %2748 = vdwg.mxu0
        %vm2749 = vcmask 40960
        %2750 = vst.msk [vmem:[%s621] sm:$0x1] %vm2749, %v2746
        %s2751 = sand.u32 %s467, 1
        %s2752 = scalar_lea.sflag [#allocation3], %s2751
        %s2753 = sand.u32 %s467, 1
        %s2754 = scalar_lea.vmem [#allocation2], %s2753
        // Predicated region
        $region101: #{tpu_custom_call.1} parent=99 // pred_check
          %p2755 = pneg %p477
        $region102: #{tpu_custom_call.1} parent=99 // pred_check_branch
          %2757 = sbr.rel (%p2755) target = $region104
        $region103: #{tpu_custom_call.1} parent=99 // pred_region
          %s2759 = ssub.s32 16, 16
          %2760 = vsyncadd %s2752, %s2759
          %s2761 = smul.addr %s34, 16
          %s2762 = scalar_lea.hbm %s20, %s2761
          %s2764 = sshll.u32 %s2754, 4
          %s2765 = int_to_ptr.vmem [resolvable:$true] %s2764
          %2767 = dma.vmem_to_hbm [thread:$0]  %s2765, 16, %s2762, %s2752
        $region104: #{tpu_custom_call.1} parent=99 // pred_fallthru
          _
      $region100: #{tpu_custom_call.1} parent=5 // pred_fallthru
        _
      %p2768 = scmp.le.s32.totalorder 2, %s29
      // Predicated region
      $region105: #{tpu_custom_call.1} parent=5 // pred_check
        %p2769 = pneg %p2768
      $region106: #{tpu_custom_call.1} parent=5 // pred_check_branch
        %2771 = sbr.rel (%p2769) target = $region108
      $region107: #{tpu_custom_call.1} parent=5 // pred_region
        %s2772 = ssub.s32 %s29, 2
        // Predicated region
        $region109: #{tpu_custom_call.1} parent=107 // pred_check
          %p2773 = pneg %p483
        $region110: #{tpu_custom_call.1} parent=107 // pred_check_branch
          %2775 = sbr.rel (%p2773) target = $region112
        $region111: #{tpu_custom_call.1} parent=107 // pred_region
          %s2776 = sand.u32 %s468, 1
          %s2777 = scalar_lea.sflag [#allocation3], %s2776
          %s2778 = sand.u32 %s468, 1
          %s2779 = scalar_lea.vmem [#allocation2], %s2778
          %2780 = dma.done %s2777, 16
        $region112: #{tpu_custom_call.1} parent=107 // pred_fallthru
          _
      $region108: #{tpu_custom_call.1} parent=5 // pred_fallthru
        _
    $region6: #{tpu_custom_call.1} parent=1 // loop_footer
      %s33 = sadd.s32 1, %s29
    $region7: #{tpu_custom_call.1} parent=1 // loop_footer_branch
      %28 = sbr.rel target = $region3
    $region8: #{tpu_custom_call.1} parent=1 // loop_exit
      _
    %2781 = vsyncpa [#allocation3], 1
    %s2782 = scalar_lea.sflag [#allocation3], 1
    %2783 = vsyncpa %s2782, 1

</llo_original>
